<compile_context>
chip_gen: v7x
topology: tpu7x:2x2x1
jax: 0.10.0
libtpu: 0.0.40
codegen_flags: <defaults>
</compile_context>

<pallas_src>
import math
from functools import partial

import jax
import jax.numpy as jnp
from jax.experimental import pallas as pl
from jax.experimental.pallas import tpu as pltpu


# ----------------------------- fused Pallas kernel -----------------------------

def _fused_attn_bn_kernel(q_ref, k_ref, v_ref,
                          wq_ref, wk_ref, wv_ref,
                          bq_ref, bk_ref, bv_ref,
                          wo_ref, bo_ref,
                          g_ref, beta_ref,
                          o_ref, *, num_heads, eps):
    B, S, C = q_ref.shape
    dh = C // num_heads
    scale = 1.0 / math.sqrt(dh)

    # ---- in-projections: plain 2-D MXU matmuls on (B*S, C) token matrices ----
    q2 = q_ref[...].reshape(B * S, C)
    k2 = k_ref[...].reshape(B * S, C)
    v2 = v_ref[...].reshape(B * S, C)
    # fold the attention scale into the projected Q once (instead of per head)
    qp = ((jnp.dot(q2, wq_ref[...], preferred_element_type=jnp.float32)
           + bq_ref[...]) * scale).reshape(B, S, C)
    kp = (jnp.dot(k2, wk_ref[...], preferred_element_type=jnp.float32)
          + bk_ref[...]).reshape(B, S, C)
    vp = (jnp.dot(v2, wv_ref[...], preferred_element_type=jnp.float32)
          + bv_ref[...]).reshape(B, S, C)

    # ---- attention (batched over B via dot_general batch dims); the per-head
    #      out-projection is accumulated so no head concatenation is needed ----
    out = None
    for h in range(num_heads):                              # unrolled at trace time
        lo, hi = h * dh, (h + 1) * dh
        qh = qp[:, :, lo:hi]                                # (B, S, dh), pre-scaled
        kh = kp[:, :, lo:hi]
        vh = vp[:, :, lo:hi]

        s = jnp.einsum('bqd,bkd->bqk', qh, kh,
                       preferred_element_type=jnp.float32)  # (B, S, S)
        s = s - jnp.max(s, axis=-1, keepdims=True)
        p = jnp.exp(s)
        p = p * pl.reciprocal(jnp.sum(p, axis=-1, keepdims=True), approx=True)

        oh = jnp.einsum('bqk,bkd->bqd', p, vh,
                        preferred_element_type=jnp.float32)  # (B, S, dh)
        ctx = jnp.dot(oh.reshape(B * S, dh), wo_ref[lo:hi, :],
                      preferred_element_type=jnp.float32)    # (B*S, C)
        out = ctx if out is None else out + ctx
    out = out + bo_ref[...]                                  # (B*S, C)

    # ---- BatchNorm2d (training mode): per-channel stats over all B*H*W tokens,
    #      single-pass variance, fused with the producer ----
    mean = jnp.mean(out, axis=0, keepdims=True)
    var = jnp.mean(out * out, axis=0, keepdims=True) - mean * mean
    o_ref[...] = (out - mean) * jax.lax.rsqrt(var + eps) * g_ref[...] + beta_ref[...]


# ----------------------------- wrapper -----------------------------

def encoder_attention_block(query, key, value, params, *, num_heads, eps=1e-5):
    """EncoderAttentionBlock.forward: query/key/value are (B, C, H, W) float32."""
    B, C, H, W = query.shape
    S = H * W

    def to_tokens(x):  # NCHW -> (B, S, C), channels on the lane axis
        return x.transpose(0, 2, 3, 1).reshape(B, S, C)

    q, k, v = to_tokens(query), to_tokens(key), to_tokens(value)

    full3 = pl.BlockSpec((B, S, C), lambda i: (0, 0, 0))
    w_spec = pl.BlockSpec((C, C), lambda i: (0, 0))
    vec_spec = pl.BlockSpec((1, C), lambda i: (0, 0))

    out2 = pl.pallas_call(
        partial(_fused_attn_bn_kernel, num_heads=num_heads, eps=eps),
        out_shape=jax.ShapeDtypeStruct((B * S, C), jnp.float32),
        grid=(1,),
        in_specs=[
            full3, full3, full3,                 # q, k, v tokens
            w_spec, w_spec, w_spec,              # Wq^T, Wk^T, Wv^T
            vec_spec, vec_spec, vec_spec,        # bq, bk, bv
            w_spec, vec_spec,                    # Wo^T, bo
            vec_spec, vec_spec,                  # BN gamma, beta
        ],
        out_specs=pl.BlockSpec((B * S, C), lambda i: (0, 0)),
        compiler_params=pltpu.CompilerParams(dimension_semantics=("arbitrary",)),
    )(q, k, v,
      params["wq_t"], params["wk_t"], params["wv_t"],
      params["bq"], params["bk"], params["bv"],
      params["wo_t"], params["bo"],
      params["bn_g"], params["bn_b"])

    return out2.reshape(B, H, W, C).transpose(0, 3, 1, 2)   # back to NCHW


# ----------------------------- parameter init -----------------------------

def init_params(key, C):
    k0, k1 = jax.random.split(key, 2)

    def nrm(k, shape, std=0.02):
        return (std * jax.random.normal(k, shape)).astype(jnp.float32)

    in_proj_w = nrm(k0, (3 * C, C))          # nn.MultiheadAttention.in_proj_weight
    in_proj_b = jnp.zeros((3 * C,), jnp.float32)
    out_w = nrm(k1, (C, C))                  # out_proj.weight
    out_b = jnp.zeros((C,), jnp.float32)

    return dict(
        wq_t=jnp.asarray(in_proj_w[:C].T),
        wk_t=jnp.asarray(in_proj_w[C:2 * C].T),
        wv_t=jnp.asarray(in_proj_w[2 * C:].T),
        bq=in_proj_b[:C].reshape(1, C),
        bk=in_proj_b[C:2 * C].reshape(1, C),
        bv=in_proj_b[2 * C:].reshape(1, C),
        wo_t=jnp.asarray(out_w.T),
        bo=out_b.reshape(1, C),
        bn_g=jnp.ones((1, C), jnp.float32),
        bn_b=jnp.zeros((1, C), jnp.float32),
    )


# ----------------------------- main -----------------------------

if __name__ == "__main__":
    B, C, H, W = 2, 32, 8, 8
    num_heads = 4      # head_dim = 8
    # dropout = 0.0 -> attention dropout is a no-op.

    root = jax.random.PRNGKey(0)
    kparam, kq, kk, kv = jax.random.split(root, 4)

    params = init_params(kparam, C)
    query = jax.random.normal(kq, (B, C, H, W), dtype=jnp.float32)
    key_in = jax.random.normal(kk, (B, C, H, W), dtype=jnp.float32)
    value = jax.random.normal(kv, (B, C, H, W), dtype=jnp.float32)

    fwd = jax.jit(encoder_attention_block, static_argnames=("num_heads", "eps"))
    out = fwd(query, key_in, value, params, num_heads=num_heads)
    out = jax.block_until_ready(out)

    assert out.shape == (B, C, H, W)
    assert bool(jnp.all(jnp.isfinite(out)))
    print("KERNEL_OK")
</pallas_src>

<mosaic_0001>
module attributes {stable_mosaic.version = 11 : i64} {
  func.func @_fused_attn_bn_kernel(%arg0: i32, %arg1: memref<2x64x32xf32, #tpu.memory_space<vmem>>, %arg2: memref<2x64x32xf32, #tpu.memory_space<vmem>>, %arg3: memref<2x64x32xf32, #tpu.memory_space<vmem>>, %arg4: memref<32x32xf32, #tpu.memory_space<vmem>>, %arg5: memref<32x32xf32, #tpu.memory_space<vmem>>, %arg6: memref<32x32xf32, #tpu.memory_space<vmem>>, %arg7: memref<1x32xf32, #tpu.memory_space<vmem>>, %arg8: memref<1x32xf32, #tpu.memory_space<vmem>>, %arg9: memref<1x32xf32, #tpu.memory_space<vmem>>, %arg10: memref<32x32xf32, #tpu.memory_space<vmem>>, %arg11: memref<1x32xf32, #tpu.memory_space<vmem>>, %arg12: memref<1x32xf32, #tpu.memory_space<vmem>>, %arg13: memref<1x32xf32, #tpu.memory_space<vmem>>, %arg14: memref<128x32xf32, #tpu.memory_space<vmem>>) attributes {dimension_semantics = [#tpu.dimension_semantics<arbitrary>], iteration_bounds = array<i64: 1>, scalar_prefetch = 0 : i64, scratch_operands = 0 : i64, tpu.core_type = #tpu.core_type<tc>, window_params = [{pipeline_mode = #tpu.pipeline_mode<synchronous>, transform_indices = @transform_0, window_bounds = array<i64: 2, 64, 32>}, {pipeline_mode = #tpu.pipeline_mode<synchronous>, transform_indices = @transform_1, window_bounds = array<i64: 2, 64, 32>}, {pipeline_mode = #tpu.pipeline_mode<synchronous>, transform_indices = @transform_2, window_bounds = array<i64: 2, 64, 32>}, {pipeline_mode = #tpu.pipeline_mode<synchronous>, transform_indices = @transform_3, window_bounds = array<i64: 32, 32>}, {pipeline_mode = #tpu.pipeline_mode<synchronous>, transform_indices = @transform_4, window_bounds = array<i64: 32, 32>}, {pipeline_mode = #tpu.pipeline_mode<synchronous>, transform_indices = @transform_5, window_bounds = array<i64: 32, 32>}, {pipeline_mode = #tpu.pipeline_mode<synchronous>, transform_indices = @transform_6, window_bounds = array<i64: 1, 32>}, {pipeline_mode = #tpu.pipeline_mode<synchronous>, transform_indices = @transform_7, window_bounds = array<i64: 1, 32>}, {pipeline_mode = #tpu.pipeline_mode<synchronous>, transform_indices = @transform_8, window_bounds = array<i64: 1, 32>}, {pipeline_mode = #tpu.pipeline_mode<synchronous>, transform_indices = @transform_9, window_bounds = array<i64: 32, 32>}, {pipeline_mode = #tpu.pipeline_mode<synchronous>, transform_indices = @transform_10, window_bounds = array<i64: 1, 32>}, {pipeline_mode = #tpu.pipeline_mode<synchronous>, transform_indices = @transform_11, window_bounds = array<i64: 1, 32>}, {pipeline_mode = #tpu.pipeline_mode<synchronous>, transform_indices = @transform_12, window_bounds = array<i64: 1, 32>}, {pipeline_mode = #tpu.pipeline_mode<synchronous>, transform_indices = @transform_13, window_bounds = array<i64: 128, 32>}]} {
    %c0 = arith.constant 0 : index
    %c0_0 = arith.constant 0 : index
    %c0_1 = arith.constant 0 : index
    %0 = vector.load %arg1[%c0, %c0_0, %c0_1] : memref<2x64x32xf32, #tpu.memory_space<vmem>>, vector<2x64x32xf32>
    %1 = vector.shape_cast %0 : vector<2x64x32xf32> to vector<128x32xf32>
    %c0_2 = arith.constant 0 : index
    %c0_3 = arith.constant 0 : index
    %c0_4 = arith.constant 0 : index
    %2 = vector.load %arg2[%c0_2, %c0_3, %c0_4] : memref<2x64x32xf32, #tpu.memory_space<vmem>>, vector<2x64x32xf32>
    %3 = vector.shape_cast %2 : vector<2x64x32xf32> to vector<128x32xf32>
    %c0_5 = arith.constant 0 : index
    %c0_6 = arith.constant 0 : index
    %c0_7 = arith.constant 0 : index
    %4 = vector.load %arg3[%c0_5, %c0_6, %c0_7] : memref<2x64x32xf32, #tpu.memory_space<vmem>>, vector<2x64x32xf32>
    %5 = vector.shape_cast %4 : vector<2x64x32xf32> to vector<128x32xf32>
    %c0_8 = arith.constant 0 : index
    %c0_9 = arith.constant 0 : index
    %6 = vector.load %arg4[%c0_8, %c0_9] : memref<32x32xf32, #tpu.memory_space<vmem>>, vector<32x32xf32>
    %cst = arith.constant dense<0.000000e+00> : vector<128x32xf32>
    %7 = tpu.matmul %1, %6, %cst {dimension_numbers = #tpu.dot_dimension_numbers<[1], [0], [0], [1], [0, 0, 1, 1], [], []>} : vector<128x32xf32>, vector<32x32xf32>, vector<128x32xf32> -> vector<128x32xf32>
    %c0_10 = arith.constant 0 : index
    %c0_11 = arith.constant 0 : index
    %8 = vector.load %arg7[%c0_10, %c0_11] : memref<1x32xf32, #tpu.memory_space<vmem>>, vector<1x32xf32>
    %9 = vector.broadcast %8 : vector<1x32xf32> to vector<128x32xf32>
    %10 = arith.addf %7, %9 : vector<128x32xf32>
    %cst_12 = arith.constant 0.353553385 : f32
    %11 = vector.broadcast %cst_12 : f32 to vector<128x32xf32>
    %12 = arith.mulf %10, %11 : vector<128x32xf32>
    %13 = vector.shape_cast %12 : vector<128x32xf32> to vector<2x64x32xf32>
    %c0_13 = arith.constant 0 : index
    %c0_14 = arith.constant 0 : index
    %14 = vector.load %arg5[%c0_13, %c0_14] : memref<32x32xf32, #tpu.memory_space<vmem>>, vector<32x32xf32>
    %cst_15 = arith.constant dense<0.000000e+00> : vector<128x32xf32>
    %15 = tpu.matmul %3, %14, %cst_15 {dimension_numbers = #tpu.dot_dimension_numbers<[1], [0], [0], [1], [0, 0, 1, 1], [], []>} : vector<128x32xf32>, vector<32x32xf32>, vector<128x32xf32> -> vector<128x32xf32>
    %c0_16 = arith.constant 0 : index
    %c0_17 = arith.constant 0 : index
    %16 = vector.load %arg8[%c0_16, %c0_17] : memref<1x32xf32, #tpu.memory_space<vmem>>, vector<1x32xf32>
    %17 = vector.broadcast %16 : vector<1x32xf32> to vector<128x32xf32>
    %18 = arith.addf %15, %17 : vector<128x32xf32>
    %19 = vector.shape_cast %18 : vector<128x32xf32> to vector<2x64x32xf32>
    %c0_18 = arith.constant 0 : index
    %c0_19 = arith.constant 0 : index
    %20 = vector.load %arg6[%c0_18, %c0_19] : memref<32x32xf32, #tpu.memory_space<vmem>>, vector<32x32xf32>
    %cst_20 = arith.constant dense<0.000000e+00> : vector<128x32xf32>
    %21 = tpu.matmul %5, %20, %cst_20 {dimension_numbers = #tpu.dot_dimension_numbers<[1], [0], [0], [1], [0, 0, 1, 1], [], []>} : vector<128x32xf32>, vector<32x32xf32>, vector<128x32xf32> -> vector<128x32xf32>
    %c0_21 = arith.constant 0 : index
    %c0_22 = arith.constant 0 : index
    %22 = vector.load %arg9[%c0_21, %c0_22] : memref<1x32xf32, #tpu.memory_space<vmem>>, vector<1x32xf32>
    %23 = vector.broadcast %22 : vector<1x32xf32> to vector<128x32xf32>
    %24 = arith.addf %21, %23 : vector<128x32xf32>
    %25 = vector.shape_cast %24 : vector<128x32xf32> to vector<2x64x32xf32>
    %26 = vector.extract_strided_slice %13 {offsets = [0, 0, 0], sizes = [2, 64, 8], strides = [1, 1, 1]} : vector<2x64x32xf32> to vector<2x64x8xf32>
    %27 = vector.extract_strided_slice %19 {offsets = [0, 0, 0], sizes = [2, 64, 8], strides = [1, 1, 1]} : vector<2x64x32xf32> to vector<2x64x8xf32>
    %28 = vector.extract_strided_slice %25 {offsets = [0, 0, 0], sizes = [2, 64, 8], strides = [1, 1, 1]} : vector<2x64x32xf32> to vector<2x64x8xf32>
    "tpu.trace_start"() <{level = 10 : i32, message = "bqd,bkd->bqk"}> : () -> ()
    %cst_23 = arith.constant dense<0.000000e+00> : vector<2x64x64xf32>
    %29 = tpu.matmul %26, %27, %cst_23 {dimension_numbers = #tpu.dot_dimension_numbers<[2], [2], [1], [1], [0, 0, 0, 1, 1, 1], [0], [0]>} : vector<2x64x8xf32>, vector<2x64x8xf32>, vector<2x64x64xf32> -> vector<2x64x64xf32>
    "tpu.trace_stop"() : () -> ()
    %cst_24 = arith.constant dense<0xFF800000> : vector<2x64xf32>
    %30 = vector.multi_reduction <maximumf>, %29, %cst_24 [2] : vector<2x64x64xf32> to vector<2x64xf32>
    %31 = vector.shape_cast %30 : vector<2x64xf32> to vector<2x64x1xf32>
    %32 = vector.broadcast %31 : vector<2x64x1xf32> to vector<2x64x64xf32>
    %33 = arith.subf %29, %32 : vector<2x64x64xf32>
    %34 = math.exp %33 : vector<2x64x64xf32>
    %cst_25 = arith.constant dense<0.000000e+00> : vector<2x64xf32>
    %35 = vector.multi_reduction <add>, %34, %cst_25 [2] : vector<2x64x64xf32> to vector<2x64xf32>
    %36 = vector.shape_cast %35 : vector<2x64xf32> to vector<2x64x1xf32>
    %37 = tpu.reciprocal %36 {approx = true} : vector<2x64x1xf32> -> vector<2x64x1xf32>
    %38 = vector.broadcast %37 : vector<2x64x1xf32> to vector<2x64x64xf32>
    %39 = arith.mulf %34, %38 : vector<2x64x64xf32>
    "tpu.trace_start"() <{level = 10 : i32, message = "bqk,bkd->bqd"}> : () -> ()
    %cst_26 = arith.constant dense<0.000000e+00> : vector<2x64x8xf32>
    %40 = tpu.matmul %39, %28, %cst_26 {dimension_numbers = #tpu.dot_dimension_numbers<[2], [1], [1], [2], [0, 0, 0, 1, 1, 2], [0], [0]>} : vector<2x64x64xf32>, vector<2x64x8xf32>, vector<2x64x8xf32> -> vector<2x64x8xf32>
    "tpu.trace_stop"() : () -> ()
    %41 = vector.shape_cast %40 : vector<2x64x8xf32> to vector<128x8xf32>
    %c0_27 = arith.constant 0 : index
    %c0_28 = arith.constant 0 : index
    %42 = vector.load %arg10[%c0_27, %c0_28] : memref<32x32xf32, #tpu.memory_space<vmem>>, vector<8x32xf32>
    %cst_29 = arith.constant dense<0.000000e+00> : vector<128x32xf32>
    %43 = tpu.matmul %41, %42, %cst_29 {dimension_numbers = #tpu.dot_dimension_numbers<[1], [0], [0], [1], [0, 0, 1, 1], [], []>} : vector<128x8xf32>, vector<8x32xf32>, vector<128x32xf32> -> vector<128x32xf32>
    %44 = vector.extract_strided_slice %13 {offsets = [0, 0, 8], sizes = [2, 64, 8], strides = [1, 1, 1]} : vector<2x64x32xf32> to vector<2x64x8xf32>
    %45 = vector.extract_strided_slice %19 {offsets = [0, 0, 8], sizes = [2, 64, 8], strides = [1, 1, 1]} : vector<2x64x32xf32> to vector<2x64x8xf32>
    %46 = vector.extract_strided_slice %25 {offsets = [0, 0, 8], sizes = [2, 64, 8], strides = [1, 1, 1]} : vector<2x64x32xf32> to vector<2x64x8xf32>
    "tpu.trace_start"() <{level = 10 : i32, message = "bqd,bkd->bqk"}> : () -> ()
    %cst_30 = arith.constant dense<0.000000e+00> : vector<2x64x64xf32>
    %47 = tpu.matmul %44, %45, %cst_30 {dimension_numbers = #tpu.dot_dimension_numbers<[2], [2], [1], [1], [0, 0, 0, 1, 1, 1], [0], [0]>} : vector<2x64x8xf32>, vector<2x64x8xf32>, vector<2x64x64xf32> -> vector<2x64x64xf32>
    "tpu.trace_stop"() : () -> ()
    %cst_31 = arith.constant dense<0xFF800000> : vector<2x64xf32>
    %48 = vector.multi_reduction <maximumf>, %47, %cst_31 [2] : vector<2x64x64xf32> to vector<2x64xf32>
    %49 = vector.shape_cast %48 : vector<2x64xf32> to vector<2x64x1xf32>
    %50 = vector.broadcast %49 : vector<2x64x1xf32> to vector<2x64x64xf32>
    %51 = arith.subf %47, %50 : vector<2x64x64xf32>
    %52 = math.exp %51 : vector<2x64x64xf32>
    %cst_32 = arith.constant dense<0.000000e+00> : vector<2x64xf32>
    %53 = vector.multi_reduction <add>, %52, %cst_32 [2] : vector<2x64x64xf32> to vector<2x64xf32>
    %54 = vector.shape_cast %53 : vector<2x64xf32> to vector<2x64x1xf32>
    %55 = tpu.reciprocal %54 {approx = true} : vector<2x64x1xf32> -> vector<2x64x1xf32>
    %56 = vector.broadcast %55 : vector<2x64x1xf32> to vector<2x64x64xf32>
    %57 = arith.mulf %52, %56 : vector<2x64x64xf32>
    "tpu.trace_start"() <{level = 10 : i32, message = "bqk,bkd->bqd"}> : () -> ()
    %cst_33 = arith.constant dense<0.000000e+00> : vector<2x64x8xf32>
    %58 = tpu.matmul %57, %46, %cst_33 {dimension_numbers = #tpu.dot_dimension_numbers<[2], [1], [1], [2], [0, 0, 0, 1, 1, 2], [0], [0]>} : vector<2x64x64xf32>, vector<2x64x8xf32>, vector<2x64x8xf32> -> vector<2x64x8xf32>
    "tpu.trace_stop"() : () -> ()
    %59 = vector.shape_cast %58 : vector<2x64x8xf32> to vector<128x8xf32>
    %c8 = arith.constant 8 : index
    %c0_34 = arith.constant 0 : index
    %60 = vector.load %arg10[%c8, %c0_34] : memref<32x32xf32, #tpu.memory_space<vmem>>, vector<8x32xf32>
    %cst_35 = arith.constant dense<0.000000e+00> : vector<128x32xf32>
    %61 = tpu.matmul %59, %60, %cst_35 {dimension_numbers = #tpu.dot_dimension_numbers<[1], [0], [0], [1], [0, 0, 1, 1], [], []>} : vector<128x8xf32>, vector<8x32xf32>, vector<128x32xf32> -> vector<128x32xf32>
    %62 = arith.addf %43, %61 : vector<128x32xf32>
    %63 = vector.extract_strided_slice %13 {offsets = [0, 0, 16], sizes = [2, 64, 8], strides = [1, 1, 1]} : vector<2x64x32xf32> to vector<2x64x8xf32>
    %64 = vector.extract_strided_slice %19 {offsets = [0, 0, 16], sizes = [2, 64, 8], strides = [1, 1, 1]} : vector<2x64x32xf32> to vector<2x64x8xf32>
    %65 = vector.extract_strided_slice %25 {offsets = [0, 0, 16], sizes = [2, 64, 8], strides = [1, 1, 1]} : vector<2x64x32xf32> to vector<2x64x8xf32>
    "tpu.trace_start"() <{level = 10 : i32, message = "bqd,bkd->bqk"}> : () -> ()
    %cst_36 = arith.constant dense<0.000000e+00> : vector<2x64x64xf32>
    %66 = tpu.matmul %63, %64, %cst_36 {dimension_numbers = #tpu.dot_dimension_numbers<[2], [2], [1], [1], [0, 0, 0, 1, 1, 1], [0], [0]>} : vector<2x64x8xf32>, vector<2x64x8xf32>, vector<2x64x64xf32> -> vector<2x64x64xf32>
    "tpu.trace_stop"() : () -> ()
    %cst_37 = arith.constant dense<0xFF800000> : vector<2x64xf32>
    %67 = vector.multi_reduction <maximumf>, %66, %cst_37 [2] : vector<2x64x64xf32> to vector<2x64xf32>
    %68 = vector.shape_cast %67 : vector<2x64xf32> to vector<2x64x1xf32>
    %69 = vector.broadcast %68 : vector<2x64x1xf32> to vector<2x64x64xf32>
    %70 = arith.subf %66, %69 : vector<2x64x64xf32>
    %71 = math.exp %70 : vector<2x64x64xf32>
    %cst_38 = arith.constant dense<0.000000e+00> : vector<2x64xf32>
    %72 = vector.multi_reduction <add>, %71, %cst_38 [2] : vector<2x64x64xf32> to vector<2x64xf32>
    %73 = vector.shape_cast %72 : vector<2x64xf32> to vector<2x64x1xf32>
    %74 = tpu.reciprocal %73 {approx = true} : vector<2x64x1xf32> -> vector<2x64x1xf32>
    %75 = vector.broadcast %74 : vector<2x64x1xf32> to vector<2x64x64xf32>
    %76 = arith.mulf %71, %75 : vector<2x64x64xf32>
    "tpu.trace_start"() <{level = 10 : i32, message = "bqk,bkd->bqd"}> : () -> ()
    %cst_39 = arith.constant dense<0.000000e+00> : vector<2x64x8xf32>
    %77 = tpu.matmul %76, %65, %cst_39 {dimension_numbers = #tpu.dot_dimension_numbers<[2], [1], [1], [2], [0, 0, 0, 1, 1, 2], [0], [0]>} : vector<2x64x64xf32>, vector<2x64x8xf32>, vector<2x64x8xf32> -> vector<2x64x8xf32>
    "tpu.trace_stop"() : () -> ()
    %78 = vector.shape_cast %77 : vector<2x64x8xf32> to vector<128x8xf32>
    %c16 = arith.constant 16 : index
    %c0_40 = arith.constant 0 : index
    %79 = vector.load %arg10[%c16, %c0_40] : memref<32x32xf32, #tpu.memory_space<vmem>>, vector<8x32xf32>
    %cst_41 = arith.constant dense<0.000000e+00> : vector<128x32xf32>
    %80 = tpu.matmul %78, %79, %cst_41 {dimension_numbers = #tpu.dot_dimension_numbers<[1], [0], [0], [1], [0, 0, 1, 1], [], []>} : vector<128x8xf32>, vector<8x32xf32>, vector<128x32xf32> -> vector<128x32xf32>
    %81 = arith.addf %62, %80 : vector<128x32xf32>
    %82 = vector.extract_strided_slice %13 {offsets = [0, 0, 24], sizes = [2, 64, 8], strides = [1, 1, 1]} : vector<2x64x32xf32> to vector<2x64x8xf32>
    %83 = vector.extract_strided_slice %19 {offsets = [0, 0, 24], sizes = [2, 64, 8], strides = [1, 1, 1]} : vector<2x64x32xf32> to vector<2x64x8xf32>
    %84 = vector.extract_strided_slice %25 {offsets = [0, 0, 24], sizes = [2, 64, 8], strides = [1, 1, 1]} : vector<2x64x32xf32> to vector<2x64x8xf32>
    "tpu.trace_start"() <{level = 10 : i32, message = "bqd,bkd->bqk"}> : () -> ()
    %cst_42 = arith.constant dense<0.000000e+00> : vector<2x64x64xf32>
    %85 = tpu.matmul %82, %83, %cst_42 {dimension_numbers = #tpu.dot_dimension_numbers<[2], [2], [1], [1], [0, 0, 0, 1, 1, 1], [0], [0]>} : vector<2x64x8xf32>, vector<2x64x8xf32>, vector<2x64x64xf32> -> vector<2x64x64xf32>
    "tpu.trace_stop"() : () -> ()
    %cst_43 = arith.constant dense<0xFF800000> : vector<2x64xf32>
    %86 = vector.multi_reduction <maximumf>, %85, %cst_43 [2] : vector<2x64x64xf32> to vector<2x64xf32>
    %87 = vector.shape_cast %86 : vector<2x64xf32> to vector<2x64x1xf32>
    %88 = vector.broadcast %87 : vector<2x64x1xf32> to vector<2x64x64xf32>
    %89 = arith.subf %85, %88 : vector<2x64x64xf32>
    %90 = math.exp %89 : vector<2x64x64xf32>
    %cst_44 = arith.constant dense<0.000000e+00> : vector<2x64xf32>
    %91 = vector.multi_reduction <add>, %90, %cst_44 [2] : vector<2x64x64xf32> to vector<2x64xf32>
    %92 = vector.shape_cast %91 : vector<2x64xf32> to vector<2x64x1xf32>
    %93 = tpu.reciprocal %92 {approx = true} : vector<2x64x1xf32> -> vector<2x64x1xf32>
    %94 = vector.broadcast %93 : vector<2x64x1xf32> to vector<2x64x64xf32>
    %95 = arith.mulf %90, %94 : vector<2x64x64xf32>
    "tpu.trace_start"() <{level = 10 : i32, message = "bqk,bkd->bqd"}> : () -> ()
    %cst_45 = arith.constant dense<0.000000e+00> : vector<2x64x8xf32>
    %96 = tpu.matmul %95, %84, %cst_45 {dimension_numbers = #tpu.dot_dimension_numbers<[2], [1], [1], [2], [0, 0, 0, 1, 1, 2], [0], [0]>} : vector<2x64x64xf32>, vector<2x64x8xf32>, vector<2x64x8xf32> -> vector<2x64x8xf32>
    "tpu.trace_stop"() : () -> ()
    %97 = vector.shape_cast %96 : vector<2x64x8xf32> to vector<128x8xf32>
    %c24 = arith.constant 24 : index
    %c0_46 = arith.constant 0 : index
    %98 = vector.load %arg10[%c24, %c0_46] : memref<32x32xf32, #tpu.memory_space<vmem>>, vector<8x32xf32>
    %cst_47 = arith.constant dense<0.000000e+00> : vector<128x32xf32>
    %99 = tpu.matmul %97, %98, %cst_47 {dimension_numbers = #tpu.dot_dimension_numbers<[1], [0], [0], [1], [0, 0, 1, 1], [], []>} : vector<128x8xf32>, vector<8x32xf32>, vector<128x32xf32> -> vector<128x32xf32>
    %100 = arith.addf %81, %99 : vector<128x32xf32>
    %c0_48 = arith.constant 0 : index
    %c0_49 = arith.constant 0 : index
    %101 = vector.load %arg11[%c0_48, %c0_49] : memref<1x32xf32, #tpu.memory_space<vmem>>, vector<1x32xf32>
    %102 = vector.broadcast %101 : vector<1x32xf32> to vector<128x32xf32>
    %103 = arith.addf %100, %102 : vector<128x32xf32>
    %cst_50 = arith.constant dense<0.000000e+00> : vector<32xf32>
    %104 = vector.multi_reduction <add>, %103, %cst_50 [0] : vector<128x32xf32> to vector<32xf32>
    %105 = vector.shape_cast %104 : vector<32xf32> to vector<1x32xf32>
    %cst_51 = arith.constant 1.280000e+02 : f32
    %106 = vector.broadcast %cst_51 : f32 to vector<1x32xf32>
    %107 = arith.divf %105, %106 : vector<1x32xf32>
    %108 = arith.mulf %103, %103 : vector<128x32xf32>
    %cst_52 = arith.constant dense<0.000000e+00> : vector<32xf32>
    %109 = vector.multi_reduction <add>, %108, %cst_52 [0] : vector<128x32xf32> to vector<32xf32>
    %110 = vector.shape_cast %109 : vector<32xf32> to vector<1x32xf32>
    %cst_53 = arith.constant 1.280000e+02 : f32
    %111 = vector.broadcast %cst_53 : f32 to vector<1x32xf32>
    %112 = arith.divf %110, %111 : vector<1x32xf32>
    %113 = arith.mulf %107, %107 : vector<1x32xf32>
    %114 = arith.subf %112, %113 : vector<1x32xf32>
    %115 = vector.broadcast %107 : vector<1x32xf32> to vector<128x32xf32>
    %116 = arith.subf %103, %115 : vector<128x32xf32>
    %cst_54 = arith.constant 9.99999974E-6 : f32
    %117 = vector.broadcast %cst_54 : f32 to vector<1x32xf32>
    %118 = arith.addf %114, %117 : vector<1x32xf32>
    %119 = math.rsqrt %118 : vector<1x32xf32>
    %120 = vector.broadcast %119 : vector<1x32xf32> to vector<128x32xf32>
    %121 = arith.mulf %116, %120 : vector<128x32xf32>
    %c0_55 = arith.constant 0 : index
    %c0_56 = arith.constant 0 : index
    %122 = vector.load %arg12[%c0_55, %c0_56] : memref<1x32xf32, #tpu.memory_space<vmem>>, vector<1x32xf32>
    %123 = vector.broadcast %122 : vector<1x32xf32> to vector<128x32xf32>
    %124 = arith.mulf %121, %123 : vector<128x32xf32>
    %c0_57 = arith.constant 0 : index
    %c0_58 = arith.constant 0 : index
    %125 = vector.load %arg13[%c0_57, %c0_58] : memref<1x32xf32, #tpu.memory_space<vmem>>, vector<1x32xf32>
    %126 = vector.broadcast %125 : vector<1x32xf32> to vector<128x32xf32>
    %127 = arith.addf %124, %126 : vector<128x32xf32>
    %c0_59 = arith.constant 0 : index
    %c0_60 = arith.constant 0 : index
    %128 = vector.load %arg14[%c0_59, %c0_60] : memref<128x32xf32, #tpu.memory_space<vmem>>, vector<128x32xf32>
    tpu.vector_store %arg14[%c0_59, %c0_60], %127 {strides = array<i32>} : memref<128x32xf32, #tpu.memory_space<vmem>>, vector<128x32xf32>,
    return
  }
  func.func @transform_0(%arg0: i32) -> (i32, i32, i32) {
    %c0_i32 = arith.constant 0 : i32
    %c0_i32_0 = arith.constant 0 : i32
    %c0_i32_1 = arith.constant 0 : i32
    %c0_i32_2 = arith.constant 0 : i32
    return %c0_i32, %c0_i32_0, %c0_i32_1 : i32, i32, i32
  }
  func.func @transform_1(%arg0: i32) -> (i32, i32, i32) {
    %c0_i32 = arith.constant 0 : i32
    %c0_i32_0 = arith.constant 0 : i32
    %c0_i32_1 = arith.constant 0 : i32
    %c0_i32_2 = arith.constant 0 : i32
    return %c0_i32, %c0_i32_0, %c0_i32_1 : i32, i32, i32
  }
  func.func @transform_2(%arg0: i32) -> (i32, i32, i32) {
    %c0_i32 = arith.constant 0 : i32
    %c0_i32_0 = arith.constant 0 : i32
    %c0_i32_1 = arith.constant 0 : i32
    %c0_i32_2 = arith.constant 0 : i32
    return %c0_i32, %c0_i32_0, %c0_i32_1 : i32, i32, i32
  }
  func.func @transform_3(%arg0: i32) -> (i32, i32) {
    %c0_i32 = arith.constant 0 : i32
    %c0_i32_0 = arith.constant 0 : i32
    %c0_i32_1 = arith.constant 0 : i32
    return %c0_i32, %c0_i32_0 : i32, i32
  }
  func.func @transform_4(%arg0: i32) -> (i32, i32) {
    %c0_i32 = arith.constant 0 : i32
    %c0_i32_0 = arith.constant 0 : i32
    %c0_i32_1 = arith.constant 0 : i32
    return %c0_i32, %c0_i32_0 : i32, i32
  }
  func.func @transform_5(%arg0: i32) -> (i32, i32) {
    %c0_i32 = arith.constant 0 : i32
    %c0_i32_0 = arith.constant 0 : i32
    %c0_i32_1 = arith.constant 0 : i32
    return %c0_i32, %c0_i32_0 : i32, i32
  }
  func.func @transform_6(%arg0: i32) -> (i32, i32) {
    %c0_i32 = arith.constant 0 : i32
    %c0_i32_0 = arith.constant 0 : i32
    %c0_i32_1 = arith.constant 0 : i32
    return %c0_i32, %c0_i32_0 : i32, i32
  }
  func.func @transform_7(%arg0: i32) -> (i32, i32) {
    %c0_i32 = arith.constant 0 : i32
    %c0_i32_0 = arith.constant 0 : i32
    %c0_i32_1 = arith.constant 0 : i32
    return %c0_i32, %c0_i32_0 : i32, i32
  }
  func.func @transform_8(%arg0: i32) -> (i32, i32) {
    %c0_i32 = arith.constant 0 : i32
    %c0_i32_0 = arith.constant 0 : i32
    %c0_i32_1 = arith.constant 0 : i32
    return %c0_i32, %c0_i32_0 : i32, i32
  }
  func.func @transform_9(%arg0: i32) -> (i32, i32) {
    %c0_i32 = arith.constant 0 : i32
    %c0_i32_0 = arith.constant 0 : i32
    %c0_i32_1 = arith.constant 0 : i32
    return %c0_i32, %c0_i32_0 : i32, i32
  }
  func.func @transform_10(%arg0: i32) -> (i32, i32) {
    %c0_i32 = arith.constant 0 : i32
    %c0_i32_0 = arith.constant 0 : i32
    %c0_i32_1 = arith.constant 0 : i32
    return %c0_i32, %c0_i32_0 : i32, i32
  }
  func.func @transform_11(%arg0: i32) -> (i32, i32) {
    %c0_i32 = arith.constant 0 : i32
    %c0_i32_0 = arith.constant 0 : i32
    %c0_i32_1 = arith.constant 0 : i32
    return %c0_i32, %c0_i32_0 : i32, i32
  }
  func.func @transform_12(%arg0: i32) -> (i32, i32) {
    %c0_i32 = arith.constant 0 : i32
    %c0_i32_0 = arith.constant 0 : i32
    %c0_i32_1 = arith.constant 0 : i32
    return %c0_i32, %c0_i32_0 : i32, i32
  }
  func.func @transform_13(%arg0: i32) -> (i32, i32) {
    %c0_i32 = arith.constant 0 : i32
    %c0_i32_0 = arith.constant 0 : i32
    %c0_i32_1 = arith.constant 0 : i32
    return %c0_i32, %c0_i32_0 : i32, i32
  }
}

</mosaic_0001>

<llo_original>
// kernel: encoder_attention_block.1
$region0: #{encoder_attention_block.1}
  #allocation0 [shape = 'u32[]', space=smem, size = 0x4, offset = 0x4, fixed_abs, tag = 'smem constant byte address 0x4 - core index']
  #allocation1 [shape = 'u32[144,128]{1,0:T(1,128)}', space=vmem, size = 0x12000, scoped, tag = 'internal scratch']
  %s0 = inlined_call_operand.hbm [shape: f32[2,64,32], index: 0, kind: input, shape index: {}]
  %s1 = inlined_call_operand.hbm [shape: f32[2,64,32], index: 1, kind: input, shape index: {}]
  %s2 = inlined_call_operand.hbm [shape: f32[2,64,32], index: 2, kind: input, shape index: {}]
  %s3 = inlined_call_operand.vmem [shape: f32[32,32], index: 3, kind: input, shape index: {}]
  %s4 = inlined_call_operand.hbm [shape: f32[32,32], index: 4, kind: input, shape index: {}]
  %s5 = inlined_call_operand.hbm [shape: f32[32,32], index: 5, kind: input, shape index: {}]
  %s6 = inlined_call_operand.vmem [shape: f32[1,32], index: 6, kind: input, shape index: {}]
  %s7 = inlined_call_operand.vmem [shape: f32[1,32], index: 7, kind: input, shape index: {}]
  %s8 = inlined_call_operand.vmem [shape: f32[1,32], index: 8, kind: input, shape index: {}]
  %s9 = inlined_call_operand.hbm [shape: f32[32,32], index: 9, kind: input, shape index: {}]
  %s10 = inlined_call_operand.vmem [shape: f32[1,32], index: 10, kind: input, shape index: {}]
  %s11 = inlined_call_operand.vmem [shape: f32[1,32], index: 11, kind: input, shape index: {}]
  %s12 = inlined_call_operand.vmem [shape: f32[1,32], index: 12, kind: input, shape index: {}]
  %s13 = inlined_call_operand.hbm [shape: f32[128,32], index: 13, kind: output, shape index: {}]
  %s14 = sld [smem:[#allocation0]]
  $region86: #{encoder_attention_block.1} parent=0
    _
  %s16 = ssub.s32 1, %s14
  %s17 = scalar_select 0, %s16, %s14
  $region1: #{encoder_attention_block.1} parent=0
    #allocation2 [shape = 'u8[65536]{0}', space=vmem, size = 0x10000, scoped, tag = 'input window, operand 0, single buffered']
    #allocation3 [shape = 's32[1]{0}', space=sflag, size = 0x4, scoped, tag = 'scoped memory for encoder_attention_block.1']
    #allocation4 [shape = 's32[1]{0}', space=sflag, size = 0x4, scoped, tag = 'scoped memory for encoder_attention_block.1']
    #allocation5 [shape = 'u8[65536]{0}', space=vmem, size = 0x10000, scoped, tag = 'input window, operand 1, single buffered']
    #allocation6 [shape = 's32[1]{0}', space=sflag, size = 0x4, scoped, tag = 'scoped memory for encoder_attention_block.1']
    #allocation7 [shape = 'u8[65536]{0}', space=vmem, size = 0x10000, scoped, tag = 'input window, operand 2, single buffered']
    #allocation8 [shape = 'u8[16384]{0}', space=vmem, size = 0x4000, scoped, tag = 'input window, operand 4, single buffered']
    #allocation9 [shape = 's32[1]{0}', space=sflag, size = 0x4, scoped, tag = 'scoped memory for encoder_attention_block.1']
    #allocation10 [shape = 'u8[16384]{0}', space=vmem, size = 0x4000, scoped, tag = 'input window, operand 5, single buffered']
    #allocation11 [shape = 'u8[16384]{0}', space=vmem, size = 0x4000, scoped, tag = 'input window, operand 9, single buffered']
    #allocation12 [shape = 's32[1]{0}', space=sflag, size = 0x4, scoped, tag = 'scoped memory for encoder_attention_block.1']
    #allocation13 [shape = 'u8[65536]{0}', space=vmem, size = 0x10000, scoped, tag = 'output window, operand 0, single buffered']
    %18 = vsyncpa [#allocation3], 0
    %19 = vsyncpa [#allocation6], 0
    %20 = vsyncpa [#allocation9], 0
    %21 = vsyncpa [#allocation12], 0
    %22 = vsyncpa [#allocation4], 0
    // Predicated region
    $region2: #{encoder_attention_block.1} parent=1 // pred_check
      _
    $region3: #{encoder_attention_block.1} parent=1 // pred_check_branch
      %24 = sbr.rel (0) target = $region5
    $region4: #{encoder_attention_block.1} parent=1 // pred_region
      %s26 = ssub.s32 2048, 2048
      %27 = vsyncadd [#allocation3], %s26
      %s28 = sshll.u32 [#allocation2], 4
      %s29 = int_to_ptr.vmem [resolvable:$true] %s28
      %34 = dma.hbm_to_vmem [thread:$0]  %s0, 2048, %s29, [#allocation3], 128, 128, 8
    $region5: #{encoder_attention_block.1} parent=1 // pred_fallthru
      _
    // Predicated region
    $region6: #{encoder_attention_block.1} parent=1 // pred_check
      _
    $region7: #{encoder_attention_block.1} parent=1 // pred_check_branch
      %36 = sbr.rel (0) target = $region9
    $region8: #{encoder_attention_block.1} parent=1 // pred_region
      %s38 = ssub.s32 2048, 2048
      %39 = vsyncadd [#allocation6], %s38
      %s40 = sshll.u32 [#allocation5], 4
      %s41 = int_to_ptr.vmem [resolvable:$true] %s40
      %46 = dma.hbm_to_vmem [thread:$0]  %s1, 2048, %s41, [#allocation6], 128, 128, 8
    $region9: #{encoder_attention_block.1} parent=1 // pred_fallthru
      _
    // Predicated region
    $region10: #{encoder_attention_block.1} parent=1 // pred_check
      _
    $region11: #{encoder_attention_block.1} parent=1 // pred_check_branch
      %48 = sbr.rel (0) target = $region13
    $region12: #{encoder_attention_block.1} parent=1 // pred_region
      %s50 = ssub.s32 2048, 2048
      %51 = vsyncadd [#allocation6], %s50
      %s52 = sshll.u32 [#allocation7], 4
      %s53 = int_to_ptr.vmem [resolvable:$true] %s52
      %58 = dma.hbm_to_vmem [thread:$0]  %s2, 2048, %s53, [#allocation6], 128, 128, 8
    $region13: #{encoder_attention_block.1} parent=1 // pred_fallthru
      _
    // Predicated region
    $region14: #{encoder_attention_block.1} parent=1 // pred_check
      _
    $region15: #{encoder_attention_block.1} parent=1 // pred_check_branch
      %60 = sbr.rel (0) target = $region17
    $region16: #{encoder_attention_block.1} parent=1 // pred_region
      _
    $region17: #{encoder_attention_block.1} parent=1 // pred_fallthru
      _
    // Predicated region
    $region18: #{encoder_attention_block.1} parent=1 // pred_check
      _
    $region19: #{encoder_attention_block.1} parent=1 // pred_check_branch
      %62 = sbr.rel (0) target = $region21
    $region20: #{encoder_attention_block.1} parent=1 // pred_region
      %s64 = ssub.s32 512, 512
      %65 = vsyncadd [#allocation9], %s64
      %s66 = sshll.u32 [#allocation8], 4
      %s67 = int_to_ptr.vmem [resolvable:$true] %s66
      %72 = dma.hbm_to_vmem [thread:$0]  %s4, 512, %s67, [#allocation9], 128, 128, 8
    $region21: #{encoder_attention_block.1} parent=1 // pred_fallthru
      _
    // Predicated region
    $region22: #{encoder_attention_block.1} parent=1 // pred_check
      _
    $region23: #{encoder_attention_block.1} parent=1 // pred_check_branch
      %74 = sbr.rel (0) target = $region25
    $region24: #{encoder_attention_block.1} parent=1 // pred_region
      %s76 = ssub.s32 512, 512
      %77 = vsyncadd [#allocation9], %s76
      %s78 = sshll.u32 [#allocation10], 4
      %s79 = int_to_ptr.vmem [resolvable:$true] %s78
      %84 = dma.hbm_to_vmem [thread:$0]  %s5, 512, %s79, [#allocation9], 128, 128, 8
    $region25: #{encoder_attention_block.1} parent=1 // pred_fallthru
      _
    // Predicated region
    $region26: #{encoder_attention_block.1} parent=1 // pred_check
      _
    $region27: #{encoder_attention_block.1} parent=1 // pred_check_branch
      %86 = sbr.rel (0) target = $region29
    $region28: #{encoder_attention_block.1} parent=1 // pred_region
      _
    $region29: #{encoder_attention_block.1} parent=1 // pred_fallthru
      _
    // Predicated region
    $region30: #{encoder_attention_block.1} parent=1 // pred_check
      _
    $region31: #{encoder_attention_block.1} parent=1 // pred_check_branch
      %88 = sbr.rel (0) target = $region33
    $region32: #{encoder_attention_block.1} parent=1 // pred_region
      _
    $region33: #{encoder_attention_block.1} parent=1 // pred_fallthru
      _
    // Predicated region
    $region34: #{encoder_attention_block.1} parent=1 // pred_check
      _
    $region35: #{encoder_attention_block.1} parent=1 // pred_check_branch
      %90 = sbr.rel (0) target = $region37
    $region36: #{encoder_attention_block.1} parent=1 // pred_region
      _
    $region37: #{encoder_attention_block.1} parent=1 // pred_fallthru
      _
    // Predicated region
    $region38: #{encoder_attention_block.1} parent=1 // pred_check
      _
    $region39: #{encoder_attention_block.1} parent=1 // pred_check_branch
      %92 = sbr.rel (0) target = $region41
    $region40: #{encoder_attention_block.1} parent=1 // pred_region
      %s94 = ssub.s32 512, 512
      %95 = vsyncadd [#allocation12], %s94
      %s96 = sshll.u32 [#allocation11], 4
      %s97 = int_to_ptr.vmem [resolvable:$true] %s96
      %102 = dma.hbm_to_vmem [thread:$0]  %s9, 512, %s97, [#allocation12], 128, 128, 8
    $region41: #{encoder_attention_block.1} parent=1 // pred_fallthru
      _
    // Predicated region
    $region42: #{encoder_attention_block.1} parent=1 // pred_check
      _
    $region43: #{encoder_attention_block.1} parent=1 // pred_check_branch
      %104 = sbr.rel (0) target = $region45
    $region44: #{encoder_attention_block.1} parent=1 // pred_region
      _
    $region45: #{encoder_attention_block.1} parent=1 // pred_fallthru
      _
    // Predicated region
    $region46: #{encoder_attention_block.1} parent=1 // pred_check
      _
    $region47: #{encoder_attention_block.1} parent=1 // pred_check_branch
      %106 = sbr.rel (0) target = $region49
    $region48: #{encoder_attention_block.1} parent=1 // pred_region
      _
    $region49: #{encoder_attention_block.1} parent=1 // pred_fallthru
      _
    // Predicated region
    $region50: #{encoder_attention_block.1} parent=1 // pred_check
      _
    $region51: #{encoder_attention_block.1} parent=1 // pred_check_branch
      %108 = sbr.rel (0) target = $region53
    $region52: #{encoder_attention_block.1} parent=1 // pred_region
      _
    $region53: #{encoder_attention_block.1} parent=1 // pred_fallthru
      _
    // Predicated region
    $region54: #{encoder_attention_block.1} parent=1 // pred_check
      _
    $region55: #{encoder_attention_block.1} parent=1 // pred_check_branch
      %110 = sbr.rel (0) target = $region57
    $region56: #{encoder_attention_block.1} parent=1 // pred_region
      %111 = dma.done [#allocation3], 2048
    $region57: #{encoder_attention_block.1} parent=1 // pred_fallthru
      _
    // Predicated region
    $region58: #{encoder_attention_block.1} parent=1 // pred_check
      _
    $region59: #{encoder_attention_block.1} parent=1 // pred_check_branch
      %113 = sbr.rel (0) target = $region61
    $region60: #{encoder_attention_block.1} parent=1 // pred_region
      %114 = dma.done [#allocation6], 2048
    $region61: #{encoder_attention_block.1} parent=1 // pred_fallthru
      _
    // Predicated region
    $region62: #{encoder_attention_block.1} parent=1 // pred_check
      _
    $region63: #{encoder_attention_block.1} parent=1 // pred_check_branch
      %116 = sbr.rel (0) target = $region65
    $region64: #{encoder_attention_block.1} parent=1 // pred_region
      %117 = dma.done [#allocation6], 2048
    $region65: #{encoder_attention_block.1} parent=1 // pred_fallthru
      _
    // Predicated region
    $region66: #{encoder_attention_block.1} parent=1 // pred_check
      _
    $region67: #{encoder_attention_block.1} parent=1 // pred_check_branch
      %119 = sbr.rel (0) target = $region69
    $region68: #{encoder_attention_block.1} parent=1 // pred_region
      %120 = dma.done [#allocation9], 512
    $region69: #{encoder_attention_block.1} parent=1 // pred_fallthru
      _
    // Predicated region
    $region70: #{encoder_attention_block.1} parent=1 // pred_check
      _
    $region71: #{encoder_attention_block.1} parent=1 // pred_check_branch
      %122 = sbr.rel (0) target = $region73
    $region72: #{encoder_attention_block.1} parent=1 // pred_region
      %123 = dma.done [#allocation9], 512
    $region73: #{encoder_attention_block.1} parent=1 // pred_fallthru
      _
    // Predicated region
    $region74: #{encoder_attention_block.1} parent=1 // pred_check
      _
    $region75: #{encoder_attention_block.1} parent=1 // pred_check_branch
      %125 = sbr.rel (0) target = $region77
    $region76: #{encoder_attention_block.1} parent=1 // pred_region
      %126 = dma.done [#allocation12], 512
    $region77: #{encoder_attention_block.1} parent=1 // pred_fallthru
      _
    %v127 = vld [vmem:[#allocation2] sm:$0xff]
    %v128 = vld [vmem:[#allocation2 + $0x8] sm:$0xff]
    %v129 = vld [vmem:[#allocation2 + $0x10] sm:$0xff]
    %v130 = vld [vmem:[#allocation2 + $0x18] sm:$0xff]
    %v131 = vld [vmem:[#allocation2 + $0x20] sm:$0xff]
    %v132 = vld [vmem:[#allocation2 + $0x28] sm:$0xff]
    %v133 = vld [vmem:[#allocation2 + $0x30] sm:$0xff]
    %v134 = vld [vmem:[#allocation2 + $0x38] sm:$0xff]
    %v135 = vld [vmem:[#allocation2 + $0x40] sm:$0xff]
    %v136 = vld [vmem:[#allocation2 + $0x48] sm:$0xff]
    %v137 = vld [vmem:[#allocation2 + $0x50] sm:$0xff]
    %v138 = vld [vmem:[#allocation2 + $0x58] sm:$0xff]
    %v139 = vld [vmem:[#allocation2 + $0x60] sm:$0xff]
    %v140 = vld [vmem:[#allocation2 + $0x68] sm:$0xff]
    %v141 = vld [vmem:[#allocation2 + $0x70] sm:$0xff]
    %v142 = vld [vmem:[#allocation2 + $0x78] sm:$0xff]
    %v143 = vld [vmem:[#allocation5] sm:$0xff]
    %v144 = vld [vmem:[#allocation5 + $0x8] sm:$0xff]
    %v145 = vld [vmem:[#allocation5 + $0x10] sm:$0xff]
    %v146 = vld [vmem:[#allocation5 + $0x18] sm:$0xff]
    %v147 = vld [vmem:[#allocation5 + $0x20] sm:$0xff]
    %v148 = vld [vmem:[#allocation5 + $0x28] sm:$0xff]
    %v149 = vld [vmem:[#allocation5 + $0x30] sm:$0xff]
    %v150 = vld [vmem:[#allocation5 + $0x38] sm:$0xff]
    %v151 = vld [vmem:[#allocation5 + $0x40] sm:$0xff]
    %v152 = vld [vmem:[#allocation5 + $0x48] sm:$0xff]
    %v153 = vld [vmem:[#allocation5 + $0x50] sm:$0xff]
    %v154 = vld [vmem:[#allocation5 + $0x58] sm:$0xff]
    %v155 = vld [vmem:[#allocation5 + $0x60] sm:$0xff]
    %v156 = vld [vmem:[#allocation5 + $0x68] sm:$0xff]
    %v157 = vld [vmem:[#allocation5 + $0x70] sm:$0xff]
    %v158 = vld [vmem:[#allocation5 + $0x78] sm:$0xff]
    %v159 = vld [vmem:[#allocation7] sm:$0xff]
    %v160 = vld [vmem:[#allocation7 + $0x8] sm:$0xff]
    %v161 = vld [vmem:[#allocation7 + $0x10] sm:$0xff]
    %v162 = vld [vmem:[#allocation7 + $0x18] sm:$0xff]
    %v163 = vld [vmem:[#allocation7 + $0x20] sm:$0xff]
    %v164 = vld [vmem:[#allocation7 + $0x28] sm:$0xff]
    %v165 = vld [vmem:[#allocation7 + $0x30] sm:$0xff]
    %v166 = vld [vmem:[#allocation7 + $0x38] sm:$0xff]
    %v167 = vld [vmem:[#allocation7 + $0x40] sm:$0xff]
    %v168 = vld [vmem:[#allocation7 + $0x48] sm:$0xff]
    %v169 = vld [vmem:[#allocation7 + $0x50] sm:$0xff]
    %v170 = vld [vmem:[#allocation7 + $0x58] sm:$0xff]
    %v171 = vld [vmem:[#allocation7 + $0x60] sm:$0xff]
    %v172 = vld [vmem:[#allocation7 + $0x68] sm:$0xff]
    %v173 = vld [vmem:[#allocation7 + $0x70] sm:$0xff]
    %v174 = vld [vmem:[#allocation7 + $0x78] sm:$0xff]
    %v175 = vld [vmem:[%s3] sm:$0xff]
    %v176 = vld [vmem:[%s3 + $0x8] sm:$0xff]
    %v177 = vld [vmem:[%s3 + $0x10] sm:$0xff]
    %v178 = vld [vmem:[%s3 + $0x18] sm:$0xff]
    %v179 = vld [vmem:[%s6] sm:$0x1]
    %v181 = vlaneseq
    %v182 = vshrl.u32 %v181, 7
    %v183 = vsub.s32 0, %v182
    %v184 = vrot.slane %v179, %v183
    %vm186 = vcmask 261120
    %v188 = vsel %vm186, %v127, 0
    %v191 = vsel %vm186, %v128, 0
    %v194 = vsel %vm186, %v129, 0
    %v197 = vsel %vm186, %v130, 0
    %v200 = vsel %vm186, %v131, 0
    %v203 = vsel %vm186, %v132, 0
    %v206 = vsel %vm186, %v133, 0
    %v209 = vsel %vm186, %v134, 0
    %v212 = vsel %vm186, %v135, 0
    %v215 = vsel %vm186, %v136, 0
    %v218 = vsel %vm186, %v137, 0
    %v221 = vsel %vm186, %v138, 0
    %v224 = vsel %vm186, %v139, 0
    %v227 = vsel %vm186, %v140, 0
    %v230 = vsel %vm186, %v141, 0
    %v233 = vsel %vm186, %v142, 0
    %235 = vmatprep.subr.mxu0 0.0
    %236 = vmatpush1.msra.mxu0 %v175
    %237 = vmatprep.subr.mxu0 0.0
    %238 = vmatpush1.msra.mxu0 %v176
    %239 = vmatprep.subr.mxu0 0.0
    %240 = vmatpush1.msra.mxu0 %v177
    %241 = vmatprep.subr.mxu0 0.0
    %242 = vmatpush1.msra.mxu0 %v178
    %243 = vmatprep.subr.mxu0 0.0
    %244 = vmatpush1.msra.mxu0 0.0
    %245 = vmatprep.subr.mxu0 0.0
    %246 = vmatpush1.msra.mxu0 0.0
    %247 = vmatprep.subr.mxu0 0.0
    %248 = vmatpush1.msra.mxu0 0.0
    %249 = vmatprep.subr.mxu0 0.0
    %250 = vmatpush1.msra.mxu0 0.0
    %251 = vmatprep.subr.mxu0 0.0
    %252 = vmatpush1.msra.mxu0 0.0
    %253 = vmatprep.subr.mxu0 0.0
    %254 = vmatpush1.msra.mxu0 0.0
    %255 = vmatprep.subr.mxu0 0.0
    %256 = vmatpush1.msra.mxu0 0.0
    %257 = vmatprep.subr.mxu0 0.0
    %258 = vmatpush1.msra.mxu0 0.0
    %259 = vmatprep.subr.mxu0 0.0
    %260 = vmatpush1.msra.mxu0 0.0
    %261 = vmatprep.subr.mxu0 0.0
    %262 = vmatpush1.msra.mxu0 0.0
    %263 = vmatprep.subr.mxu0 0.0
    %264 = vmatpush1.msra.mxu0 0.0
    %265 = vmatprep.subr.mxu0 0.0
    %266 = vmatpush1.msra.mxu0 0.0
    %267 = vmatprep.subr.mxu0 0.0
    %268 = vmatpush1.msra.mxu0 0.0
    %269 = vmatprep.subr.mxu0 0.0
    %270 = vmatpush1.msra.mxu0 0.0
    %271 = vmatprep.subr.mxu0 0.0
    %272 = vmatpush1.msra.mxu0 0.0
    %273 = vmatprep.subr.mxu0 0.0
    %274 = vmatpush1.msra.mxu0 0.0
    %275 = vmatprep.subr.mxu0 0.0
    %276 = vmatpush1.msra.mxu0 0.0
    %277 = vmatprep.subr.mxu0 0.0
    %278 = vmatpush1.msra.mxu0 0.0
    %279 = vmatprep.subr.mxu0 0.0
    %280 = vmatpush1.msra.mxu0 0.0
    %281 = vmatprep.subr.mxu0 0.0
    %282 = vmatpush1.msra.mxu0 0.0
    %283 = vmatprep.subr.mxu0 0.0
    %284 = vmatpush1.msra.mxu0 0.0
    %285 = vmatprep.subr.mxu0 0.0
    %286 = vmatpush1.msra.mxu0 0.0
    %287 = vmatprep.subr.mxu0 0.0
    %288 = vmatpush1.msra.mxu0 0.0
    %289 = vmatprep.subr.mxu0 0.0
    %290 = vmatpush1.msra.mxu0 0.0
    %291 = vmatprep.subr.mxu0 0.0
    %292 = vmatpush1.msra.mxu0 0.0
    %293 = vmatprep.subr.mxu0 0.0
    %294 = vmatpush1.msra.mxu0 0.0
    %295 = vmatprep.subr.mxu0 0.0
    %296 = vmatpush1.msra.mxu0 0.0
    %297 = vmatprep.subr.mxu0 0.0
    %298 = vmatpush1.msra.mxu0 0.0
    %299 = vmatprep.mubr.f32.mxu0 0.0
    %300 = vmatmul.mubr.f32.gmra.mrb[0].mxu0 %v188
    %v301 = vpop.f32.mrb[0].mxu0
    %v302 = vadd.f32 %v184, %v301
    %v303 = vpop.f32.mrb[0].mxu0
    %304 = vmatprep.mubr.f32.mxu0 0.0
    %305 = vmatmul.mubr.f32.gmra.mrb[0].mxu0 %v191
    %v306 = vpop.f32.mrb[0].mxu0
    %v307 = vadd.f32 %v184, %v306
    %v308 = vpop.f32.mrb[0].mxu0
    %309 = vmatprep.mubr.f32.mxu0 0.0
    %310 = vmatmul.mubr.f32.gmra.mrb[0].mxu0 %v194
    %v311 = vpop.f32.mrb[0].mxu0
    %v312 = vadd.f32 %v184, %v311
    %v313 = vpop.f32.mrb[0].mxu0
    %314 = vmatprep.mubr.f32.mxu0 0.0
    %315 = vmatmul.mubr.f32.gmra.mrb[0].mxu0 %v197
    %v316 = vpop.f32.mrb[0].mxu0
    %v317 = vadd.f32 %v184, %v316
    %v318 = vpop.f32.mrb[0].mxu0
    %319 = vmatprep.mubr.f32.mxu0 0.0
    %320 = vmatmul.mubr.f32.gmra.mrb[0].mxu0 %v200
    %v321 = vpop.f32.mrb[0].mxu0
    %v322 = vadd.f32 %v184, %v321
    %v323 = vpop.f32.mrb[0].mxu0
    %324 = vmatprep.mubr.f32.mxu0 0.0
    %325 = vmatmul.mubr.f32.gmra.mrb[0].mxu0 %v203
    %v326 = vpop.f32.mrb[0].mxu0
    %v327 = vadd.f32 %v184, %v326
    %v328 = vpop.f32.mrb[0].mxu0
    %329 = vmatprep.mubr.f32.mxu0 0.0
    %330 = vmatmul.mubr.f32.gmra.mrb[0].mxu0 %v206
    %v331 = vpop.f32.mrb[0].mxu0
    %v332 = vadd.f32 %v184, %v331
    %v333 = vpop.f32.mrb[0].mxu0
    %334 = vmatprep.mubr.f32.mxu0 0.0
    %335 = vmatmul.mubr.f32.gmra.mrb[0].mxu0 %v209
    %v336 = vpop.f32.mrb[0].mxu0
    %v337 = vadd.f32 %v184, %v336
    %v338 = vpop.f32.mrb[0].mxu0
    %339 = vmatprep.mubr.f32.mxu0 0.0
    %340 = vmatmul.mubr.f32.gmra.mrb[0].mxu0 %v212
    %v341 = vpop.f32.mrb[0].mxu0
    %v342 = vadd.f32 %v184, %v341
    %v343 = vpop.f32.mrb[0].mxu0
    %344 = vmatprep.mubr.f32.mxu0 0.0
    %345 = vmatmul.mubr.f32.gmra.mrb[0].mxu0 %v215
    %v346 = vpop.f32.mrb[0].mxu0
    %v347 = vadd.f32 %v184, %v346
    %v348 = vpop.f32.mrb[0].mxu0
    %349 = vmatprep.mubr.f32.mxu0 0.0
    %350 = vmatmul.mubr.f32.gmra.mrb[0].mxu0 %v218
    %v351 = vpop.f32.mrb[0].mxu0
    %v352 = vadd.f32 %v184, %v351
    %v353 = vpop.f32.mrb[0].mxu0
    %354 = vmatprep.mubr.f32.mxu0 0.0
    %355 = vmatmul.mubr.f32.gmra.mrb[0].mxu0 %v221
    %v356 = vpop.f32.mrb[0].mxu0
    %v357 = vadd.f32 %v184, %v356
    %v358 = vpop.f32.mrb[0].mxu0
    %359 = vmatprep.mubr.f32.mxu0 0.0
    %360 = vmatmul.mubr.f32.gmra.mrb[0].mxu0 %v224
    %v361 = vpop.f32.mrb[0].mxu0
    %v362 = vadd.f32 %v184, %v361
    %v363 = vpop.f32.mrb[0].mxu0
    %364 = vmatprep.mubr.f32.mxu0 0.0
    %365 = vmatmul.mubr.f32.gmra.mrb[0].mxu0 %v227
    %v366 = vpop.f32.mrb[0].mxu0
    %v367 = vadd.f32 %v184, %v366
    %v368 = vpop.f32.mrb[0].mxu0
    %369 = vmatprep.mubr.f32.mxu0 0.0
    %370 = vmatmul.mubr.f32.gmra.mrb[0].mxu0 %v230
    %v371 = vpop.f32.mrb[0].mxu0
    %v372 = vadd.f32 %v184, %v371
    %v373 = vpop.f32.mrb[0].mxu0
    %374 = vmatprep.mubr.f32.mxu0 0.0
    %375 = vmatmul.mubr.f32.gmra.mrb[0].mxu0 %v233
    %v376 = vpop.f32.mrb[0].mxu0
    %v377 = vadd.f32 %v184, %v376
    %v378 = vpop.f32.mrb[0].mxu0
    %379 = vdwg.mxu0
    %v380 = vmul.f32 %v302, 0.35355338
    %v381 = vmul.f32 %v307, 0.35355338
    %v382 = vmul.f32 %v312, 0.35355338
    %v383 = vmul.f32 %v317, 0.35355338
    %v384 = vmul.f32 %v322, 0.35355338
    %v385 = vmul.f32 %v327, 0.35355338
    %v386 = vmul.f32 %v332, 0.35355338
    %v387 = vmul.f32 %v337, 0.35355338
    %v388 = vmul.f32 %v342, 0.35355338
    %v389 = vmul.f32 %v347, 0.35355338
    %v390 = vmul.f32 %v352, 0.35355338
    %v391 = vmul.f32 %v357, 0.35355338
    %v392 = vmul.f32 %v362, 0.35355338
    %v393 = vmul.f32 %v367, 0.35355338
    %v394 = vmul.f32 %v372, 0.35355338
    %v395 = vmul.f32 %v377, 0.35355338
    %v396 = vld [vmem:[#allocation8] sm:$0xff]
    %v397 = vld [vmem:[#allocation8 + $0x8] sm:$0xff]
    %v398 = vld [vmem:[#allocation8 + $0x10] sm:$0xff]
    %v399 = vld [vmem:[#allocation8 + $0x18] sm:$0xff]
    %v400 = vld [vmem:[%s7] sm:$0x1]
    %v402 = vlaneseq
    %v403 = vshrl.u32 %v402, 7
    %v404 = vsub.s32 0, %v403
    %v405 = vrot.slane %v400, %v404
    %v408 = vsel %vm186, %v143, 0
    %v411 = vsel %vm186, %v144, 0
    %v414 = vsel %vm186, %v145, 0
    %v417 = vsel %vm186, %v146, 0
    %v420 = vsel %vm186, %v147, 0
    %v423 = vsel %vm186, %v148, 0
    %v426 = vsel %vm186, %v149, 0
    %v429 = vsel %vm186, %v150, 0
    %v432 = vsel %vm186, %v151, 0
    %v435 = vsel %vm186, %v152, 0
    %v438 = vsel %vm186, %v153, 0
    %v441 = vsel %vm186, %v154, 0
    %v444 = vsel %vm186, %v155, 0
    %v447 = vsel %vm186, %v156, 0
    %v450 = vsel %vm186, %v157, 0
    %v453 = vsel %vm186, %v158, 0
    %455 = vmatprep.subr.mxu0 0.0
    %456 = vmatpush1.msra.mxu0 %v396
    %457 = vmatprep.subr.mxu0 0.0
    %458 = vmatpush1.msra.mxu0 %v397
    %459 = vmatprep.subr.mxu0 0.0
    %460 = vmatpush1.msra.mxu0 %v398
    %461 = vmatprep.subr.mxu0 0.0
    %462 = vmatpush1.msra.mxu0 %v399
    %463 = vmatprep.subr.mxu0 0.0
    %464 = vmatpush1.msra.mxu0 0.0
    %465 = vmatprep.subr.mxu0 0.0
    %466 = vmatpush1.msra.mxu0 0.0
    %467 = vmatprep.subr.mxu0 0.0
    %468 = vmatpush1.msra.mxu0 0.0
    %469 = vmatprep.subr.mxu0 0.0
    %470 = vmatpush1.msra.mxu0 0.0
    %471 = vmatprep.subr.mxu0 0.0
    %472 = vmatpush1.msra.mxu0 0.0
    %473 = vmatprep.subr.mxu0 0.0
    %474 = vmatpush1.msra.mxu0 0.0
    %475 = vmatprep.subr.mxu0 0.0
    %476 = vmatpush1.msra.mxu0 0.0
    %477 = vmatprep.subr.mxu0 0.0
    %478 = vmatpush1.msra.mxu0 0.0
    %479 = vmatprep.subr.mxu0 0.0
    %480 = vmatpush1.msra.mxu0 0.0
    %481 = vmatprep.subr.mxu0 0.0
    %482 = vmatpush1.msra.mxu0 0.0
    %483 = vmatprep.subr.mxu0 0.0
    %484 = vmatpush1.msra.mxu0 0.0
    %485 = vmatprep.subr.mxu0 0.0
    %486 = vmatpush1.msra.mxu0 0.0
    %487 = vmatprep.subr.mxu0 0.0
    %488 = vmatpush1.msra.mxu0 0.0
    %489 = vmatprep.subr.mxu0 0.0
    %490 = vmatpush1.msra.mxu0 0.0
    %491 = vmatprep.subr.mxu0 0.0
    %492 = vmatpush1.msra.mxu0 0.0
    %493 = vmatprep.subr.mxu0 0.0
    %494 = vmatpush1.msra.mxu0 0.0
    %495 = vmatprep.subr.mxu0 0.0
    %496 = vmatpush1.msra.mxu0 0.0
    %497 = vmatprep.subr.mxu0 0.0
    %498 = vmatpush1.msra.mxu0 0.0
    %499 = vmatprep.subr.mxu0 0.0
    %500 = vmatpush1.msra.mxu0 0.0
    %501 = vmatprep.subr.mxu0 0.0
    %502 = vmatpush1.msra.mxu0 0.0
    %503 = vmatprep.subr.mxu0 0.0
    %504 = vmatpush1.msra.mxu0 0.0
    %505 = vmatprep.subr.mxu0 0.0
    %506 = vmatpush1.msra.mxu0 0.0
    %507 = vmatprep.subr.mxu0 0.0
    %508 = vmatpush1.msra.mxu0 0.0
    %509 = vmatprep.subr.mxu0 0.0
    %510 = vmatpush1.msra.mxu0 0.0
    %511 = vmatprep.subr.mxu0 0.0
    %512 = vmatpush1.msra.mxu0 0.0
    %513 = vmatprep.subr.mxu0 0.0
    %514 = vmatpush1.msra.mxu0 0.0
    %515 = vmatprep.subr.mxu0 0.0
    %516 = vmatpush1.msra.mxu0 0.0
    %517 = vmatprep.subr.mxu0 0.0
    %518 = vmatpush1.msra.mxu0 0.0
    %519 = vmatprep.mubr.f32.mxu0 0.0
    %520 = vmatmul.mubr.f32.gmra.mrb[0].mxu0 %v408
    %v521 = vpop.f32.mrb[0].mxu0
    %v522 = vadd.f32 %v405, %v521
    %v523 = vpop.f32.mrb[0].mxu0
    %524 = vmatprep.mubr.f32.mxu0 0.0
    %525 = vmatmul.mubr.f32.gmra.mrb[0].mxu0 %v411
    %v526 = vpop.f32.mrb[0].mxu0
    %v527 = vadd.f32 %v405, %v526
    %v528 = vpop.f32.mrb[0].mxu0
    %529 = vmatprep.mubr.f32.mxu0 0.0
    %530 = vmatmul.mubr.f32.gmra.mrb[0].mxu0 %v414
    %v531 = vpop.f32.mrb[0].mxu0
    %v532 = vadd.f32 %v405, %v531
    %v533 = vpop.f32.mrb[0].mxu0
    %534 = vmatprep.mubr.f32.mxu0 0.0
    %535 = vmatmul.mubr.f32.gmra.mrb[0].mxu0 %v417
    %v536 = vpop.f32.mrb[0].mxu0
    %v537 = vadd.f32 %v405, %v536
    %v538 = vpop.f32.mrb[0].mxu0
    %539 = vmatprep.mubr.f32.mxu0 0.0
    %540 = vmatmul.mubr.f32.gmra.mrb[0].mxu0 %v420
    %v541 = vpop.f32.mrb[0].mxu0
    %v542 = vadd.f32 %v405, %v541
    %v543 = vpop.f32.mrb[0].mxu0
    %544 = vmatprep.mubr.f32.mxu0 0.0
    %545 = vmatmul.mubr.f32.gmra.mrb[0].mxu0 %v423
    %v546 = vpop.f32.mrb[0].mxu0
    %v547 = vadd.f32 %v405, %v546
    %v548 = vpop.f32.mrb[0].mxu0
    %549 = vmatprep.mubr.f32.mxu0 0.0
    %550 = vmatmul.mubr.f32.gmra.mrb[0].mxu0 %v426
    %v551 = vpop.f32.mrb[0].mxu0
    %v552 = vadd.f32 %v405, %v551
    %v553 = vpop.f32.mrb[0].mxu0
    %554 = vmatprep.mubr.f32.mxu0 0.0
    %555 = vmatmul.mubr.f32.gmra.mrb[0].mxu0 %v429
    %v556 = vpop.f32.mrb[0].mxu0
    %v557 = vadd.f32 %v405, %v556
    %v558 = vpop.f32.mrb[0].mxu0
    %559 = vmatprep.mubr.f32.mxu0 0.0
    %560 = vmatmul.mubr.f32.gmra.mrb[0].mxu0 %v432
    %v561 = vpop.f32.mrb[0].mxu0
    %v562 = vadd.f32 %v405, %v561
    %v563 = vpop.f32.mrb[0].mxu0
    %564 = vmatprep.mubr.f32.mxu0 0.0
    %565 = vmatmul.mubr.f32.gmra.mrb[0].mxu0 %v435
    %v566 = vpop.f32.mrb[0].mxu0
    %v567 = vadd.f32 %v405, %v566
    %v568 = vpop.f32.mrb[0].mxu0
    %569 = vmatprep.mubr.f32.mxu0 0.0
    %570 = vmatmul.mubr.f32.gmra.mrb[0].mxu0 %v438
    %v571 = vpop.f32.mrb[0].mxu0
    %v572 = vadd.f32 %v405, %v571
    %v573 = vpop.f32.mrb[0].mxu0
    %574 = vmatprep.mubr.f32.mxu0 0.0
    %575 = vmatmul.mubr.f32.gmra.mrb[0].mxu0 %v441
    %v576 = vpop.f32.mrb[0].mxu0
    %v577 = vadd.f32 %v405, %v576
    %v578 = vpop.f32.mrb[0].mxu0
    %579 = vmatprep.mubr.f32.mxu0 0.0
    %580 = vmatmul.mubr.f32.gmra.mrb[0].mxu0 %v444
    %v581 = vpop.f32.mrb[0].mxu0
    %v582 = vadd.f32 %v405, %v581
    %v583 = vpop.f32.mrb[0].mxu0
    %584 = vmatprep.mubr.f32.mxu0 0.0
    %585 = vmatmul.mubr.f32.gmra.mrb[0].mxu0 %v447
    %v586 = vpop.f32.mrb[0].mxu0
    %v587 = vadd.f32 %v405, %v586
    %v588 = vpop.f32.mrb[0].mxu0
    %589 = vmatprep.mubr.f32.mxu0 0.0
    %590 = vmatmul.mubr.f32.gmra.mrb[0].mxu0 %v450
    %v591 = vpop.f32.mrb[0].mxu0
    %v592 = vadd.f32 %v405, %v591
    %v593 = vpop.f32.mrb[0].mxu0
    %594 = vmatprep.mubr.f32.mxu0 0.0
    %595 = vmatmul.mubr.f32.gmra.mrb[0].mxu0 %v453
    %v596 = vpop.f32.mrb[0].mxu0
    %v597 = vadd.f32 %v405, %v596
    %v598 = vpop.f32.mrb[0].mxu0
    %599 = vdwg.mxu0
    %v600 = vld [vmem:[#allocation10] sm:$0xff]
    %v601 = vld [vmem:[#allocation10 + $0x8] sm:$0xff]
    %v602 = vld [vmem:[#allocation10 + $0x10] sm:$0xff]
    %v603 = vld [vmem:[#allocation10 + $0x18] sm:$0xff]
    %v604 = vld [vmem:[%s8] sm:$0x1]
    %v606 = vlaneseq
    %v607 = vshrl.u32 %v606, 7
    %v608 = vsub.s32 0, %v607
    %v609 = vrot.slane %v604, %v608
    %v612 = vsel %vm186, %v159, 0
    %v615 = vsel %vm186, %v160, 0
    %v618 = vsel %vm186, %v161, 0
    %v621 = vsel %vm186, %v162, 0
    %v624 = vsel %vm186, %v163, 0
    %v627 = vsel %vm186, %v164, 0
    %v630 = vsel %vm186, %v165, 0
    %v633 = vsel %vm186, %v166, 0
    %v636 = vsel %vm186, %v167, 0
    %v639 = vsel %vm186, %v168, 0
    %v642 = vsel %vm186, %v169, 0
    %v645 = vsel %vm186, %v170, 0
    %v648 = vsel %vm186, %v171, 0
    %v651 = vsel %vm186, %v172, 0
    %v654 = vsel %vm186, %v173, 0
    %v657 = vsel %vm186, %v174, 0
    %659 = vmatprep.subr.mxu0 0.0
    %660 = vmatpush1.msra.mxu0 %v600
    %661 = vmatprep.subr.mxu0 0.0
    %662 = vmatpush1.msra.mxu0 %v601
    %663 = vmatprep.subr.mxu0 0.0
    %664 = vmatpush1.msra.mxu0 %v602
    %665 = vmatprep.subr.mxu0 0.0
    %666 = vmatpush1.msra.mxu0 %v603
    %667 = vmatprep.subr.mxu0 0.0
    %668 = vmatpush1.msra.mxu0 0.0
    %669 = vmatprep.subr.mxu0 0.0
    %670 = vmatpush1.msra.mxu0 0.0
    %671 = vmatprep.subr.mxu0 0.0
    %672 = vmatpush1.msra.mxu0 0.0
    %673 = vmatprep.subr.mxu0 0.0
    %674 = vmatpush1.msra.mxu0 0.0
    %675 = vmatprep.subr.mxu0 0.0
    %676 = vmatpush1.msra.mxu0 0.0
    %677 = vmatprep.subr.mxu0 0.0
    %678 = vmatpush1.msra.mxu0 0.0
    %679 = vmatprep.subr.mxu0 0.0
    %680 = vmatpush1.msra.mxu0 0.0
    %681 = vmatprep.subr.mxu0 0.0
    %682 = vmatpush1.msra.mxu0 0.0
    %683 = vmatprep.subr.mxu0 0.0
    %684 = vmatpush1.msra.mxu0 0.0
    %685 = vmatprep.subr.mxu0 0.0
    %686 = vmatpush1.msra.mxu0 0.0
    %687 = vmatprep.subr.mxu0 0.0
    %688 = vmatpush1.msra.mxu0 0.0
    %689 = vmatprep.subr.mxu0 0.0
    %690 = vmatpush1.msra.mxu0 0.0
    %691 = vmatprep.subr.mxu0 0.0
    %692 = vmatpush1.msra.mxu0 0.0
    %693 = vmatprep.subr.mxu0 0.0
    %694 = vmatpush1.msra.mxu0 0.0
    %695 = vmatprep.subr.mxu0 0.0
    %696 = vmatpush1.msra.mxu0 0.0
    %697 = vmatprep.subr.mxu0 0.0
    %698 = vmatpush1.msra.mxu0 0.0
    %699 = vmatprep.subr.mxu0 0.0
    %700 = vmatpush1.msra.mxu0 0.0
    %701 = vmatprep.subr.mxu0 0.0
    %702 = vmatpush1.msra.mxu0 0.0
    %703 = vmatprep.subr.mxu0 0.0
    %704 = vmatpush1.msra.mxu0 0.0
    %705 = vmatprep.subr.mxu0 0.0
    %706 = vmatpush1.msra.mxu0 0.0
    %707 = vmatprep.subr.mxu0 0.0
    %708 = vmatpush1.msra.mxu0 0.0
    %709 = vmatprep.subr.mxu0 0.0
    %710 = vmatpush1.msra.mxu0 0.0
    %711 = vmatprep.subr.mxu0 0.0
    %712 = vmatpush1.msra.mxu0 0.0
    %713 = vmatprep.subr.mxu0 0.0
    %714 = vmatpush1.msra.mxu0 0.0
    %715 = vmatprep.subr.mxu0 0.0
    %716 = vmatpush1.msra.mxu0 0.0
    %717 = vmatprep.subr.mxu0 0.0
    %718 = vmatpush1.msra.mxu0 0.0
    %719 = vmatprep.subr.mxu0 0.0
    %720 = vmatpush1.msra.mxu0 0.0
    %721 = vmatprep.subr.mxu0 0.0
    %722 = vmatpush1.msra.mxu0 0.0
    %723 = vmatprep.mubr.f32.mxu0 0.0
    %724 = vmatmul.mubr.f32.gmra.mrb[0].mxu0 %v612
    %v725 = vpop.f32.mrb[0].mxu0
    %v726 = vadd.f32 %v609, %v725
    %v727 = vpop.f32.mrb[0].mxu0
    %728 = vmatprep.mubr.f32.mxu0 0.0
    %729 = vmatmul.mubr.f32.gmra.mrb[0].mxu0 %v615
    %v730 = vpop.f32.mrb[0].mxu0
    %v731 = vadd.f32 %v609, %v730
    %v732 = vpop.f32.mrb[0].mxu0
    %733 = vmatprep.mubr.f32.mxu0 0.0
    %734 = vmatmul.mubr.f32.gmra.mrb[0].mxu0 %v618
    %v735 = vpop.f32.mrb[0].mxu0
    %v736 = vadd.f32 %v609, %v735
    %v737 = vpop.f32.mrb[0].mxu0
    %738 = vmatprep.mubr.f32.mxu0 0.0
    %739 = vmatmul.mubr.f32.gmra.mrb[0].mxu0 %v621
    %v740 = vpop.f32.mrb[0].mxu0
    %v741 = vadd.f32 %v609, %v740
    %v742 = vpop.f32.mrb[0].mxu0
    %743 = vmatprep.mubr.f32.mxu0 0.0
    %744 = vmatmul.mubr.f32.gmra.mrb[0].mxu0 %v624
    %v745 = vpop.f32.mrb[0].mxu0
    %v746 = vadd.f32 %v609, %v745
    %v747 = vpop.f32.mrb[0].mxu0
    %748 = vmatprep.mubr.f32.mxu0 0.0
    %749 = vmatmul.mubr.f32.gmra.mrb[0].mxu0 %v627
    %v750 = vpop.f32.mrb[0].mxu0
    %v751 = vadd.f32 %v609, %v750
    %v752 = vpop.f32.mrb[0].mxu0
    %753 = vmatprep.mubr.f32.mxu0 0.0
    %754 = vmatmul.mubr.f32.gmra.mrb[0].mxu0 %v630
    %v755 = vpop.f32.mrb[0].mxu0
    %v756 = vadd.f32 %v609, %v755
    %v757 = vpop.f32.mrb[0].mxu0
    %758 = vmatprep.mubr.f32.mxu0 0.0
    %759 = vmatmul.mubr.f32.gmra.mrb[0].mxu0 %v633
    %v760 = vpop.f32.mrb[0].mxu0
    %v761 = vadd.f32 %v609, %v760
    %v762 = vpop.f32.mrb[0].mxu0
    %763 = vmatprep.mubr.f32.mxu0 0.0
    %764 = vmatmul.mubr.f32.gmra.mrb[0].mxu0 %v636
    %v765 = vpop.f32.mrb[0].mxu0
    %v766 = vadd.f32 %v609, %v765
    %v767 = vpop.f32.mrb[0].mxu0
    %768 = vmatprep.mubr.f32.mxu0 0.0
    %769 = vmatmul.mubr.f32.gmra.mrb[0].mxu0 %v639
    %v770 = vpop.f32.mrb[0].mxu0
    %v771 = vadd.f32 %v609, %v770
    %v772 = vpop.f32.mrb[0].mxu0
    %773 = vmatprep.mubr.f32.mxu0 0.0
    %774 = vmatmul.mubr.f32.gmra.mrb[0].mxu0 %v642
    %v775 = vpop.f32.mrb[0].mxu0
    %v776 = vadd.f32 %v609, %v775
    %v777 = vpop.f32.mrb[0].mxu0
    %778 = vmatprep.mubr.f32.mxu0 0.0
    %779 = vmatmul.mubr.f32.gmra.mrb[0].mxu0 %v645
    %v780 = vpop.f32.mrb[0].mxu0
    %v781 = vadd.f32 %v609, %v780
    %v782 = vpop.f32.mrb[0].mxu0
    %783 = vmatprep.mubr.f32.mxu0 0.0
    %784 = vmatmul.mubr.f32.gmra.mrb[0].mxu0 %v648
    %v785 = vpop.f32.mrb[0].mxu0
    %v786 = vadd.f32 %v609, %v785
    %v787 = vpop.f32.mrb[0].mxu0
    %788 = vmatprep.mubr.f32.mxu0 0.0
    %789 = vmatmul.mubr.f32.gmra.mrb[0].mxu0 %v651
    %v790 = vpop.f32.mrb[0].mxu0
    %v791 = vadd.f32 %v609, %v790
    %v792 = vpop.f32.mrb[0].mxu0
    %793 = vmatprep.mubr.f32.mxu0 0.0
    %794 = vmatmul.mubr.f32.gmra.mrb[0].mxu0 %v654
    %v795 = vpop.f32.mrb[0].mxu0
    %v796 = vadd.f32 %v609, %v795
    %v797 = vpop.f32.mrb[0].mxu0
    %798 = vmatprep.mubr.f32.mxu0 0.0
    %799 = vmatmul.mubr.f32.gmra.mrb[0].mxu0 %v657
    %v800 = vpop.f32.mrb[0].mxu0
    %v801 = vadd.f32 %v609, %v800
    %v802 = vpop.f32.mrb[0].mxu0
    %803 = vdwg.mxu0
    %vm804 = vcmask 64512
    %v806 = vsel %vm804, %v380, 0
    %v809 = vsel %vm804, %v381, 0
    %v812 = vsel %vm804, %v382, 0
    %v815 = vsel %vm804, %v383, 0
    %v818 = vsel %vm804, %v384, 0
    %v821 = vsel %vm804, %v385, 0
    %v824 = vsel %vm804, %v386, 0
    %v827 = vsel %vm804, %v387, 0
    %v830 = vsel %vm804, %v522, 0
    %v833 = vsel %vm804, %v527, 0
    %v836 = vsel %vm804, %v532, 0
    %v839 = vsel %vm804, %v537, 0
    %v842 = vsel %vm804, %v542, 0
    %v845 = vsel %vm804, %v547, 0
    %v848 = vsel %vm804, %v552, 0
    %v851 = vsel %vm804, %v557, 0
    %853 = vmatprep.subr.mxu0 0.0
    %854 = vmatpush1.xpose.msra.mxu0 %v830
    %855 = vmatprep.subr.mxu0 0.0
    %856 = vmatpush1.xpose.msra.mxu0 %v833
    %857 = vmatprep.subr.mxu0 0.0
    %858 = vmatpush1.xpose.msra.mxu0 %v836
    %859 = vmatprep.subr.mxu0 0.0
    %860 = vmatpush1.xpose.msra.mxu0 %v839
    %861 = vmatprep.subr.mxu0 0.0
    %862 = vmatpush1.xpose.msra.mxu0 %v842
    %863 = vmatprep.subr.mxu0 0.0
    %864 = vmatpush1.xpose.msra.mxu0 %v845
    %865 = vmatprep.subr.mxu0 0.0
    %866 = vmatpush1.xpose.msra.mxu0 %v848
    %867 = vmatprep.subr.mxu0 0.0
    %868 = vmatpush1.xpose.msra.mxu0 %v851
    %869 = vmatprep.subr.mxu0 0.0
    %870 = vmatpush1.xpose.msra.mxu0 0.0
    %871 = vmatprep.subr.mxu0 0.0
    %872 = vmatpush1.xpose.msra.mxu0 0.0
    %873 = vmatprep.subr.mxu0 0.0
    %874 = vmatpush1.xpose.msra.mxu0 0.0
    %875 = vmatprep.subr.mxu0 0.0
    %876 = vmatpush1.xpose.msra.mxu0 0.0
    %877 = vmatprep.subr.mxu0 0.0
    %878 = vmatpush1.xpose.msra.mxu0 0.0
    %879 = vmatprep.subr.mxu0 0.0
    %880 = vmatpush1.xpose.msra.mxu0 0.0
    %881 = vmatprep.subr.mxu0 0.0
    %882 = vmatpush1.xpose.msra.mxu0 0.0
    %883 = vmatprep.subr.mxu0 0.0
    %884 = vmatpush1.xpose.msra.mxu0 0.0
    %885 = vmatprep.subr.mxu0 0.0
    %886 = vmatpush1.xpose.msra.mxu0 0.0
    %887 = vmatprep.subr.mxu0 0.0
    %888 = vmatpush1.xpose.msra.mxu0 0.0
    %889 = vmatprep.subr.mxu0 0.0
    %890 = vmatpush1.xpose.msra.mxu0 0.0
    %891 = vmatprep.subr.mxu0 0.0
    %892 = vmatpush1.xpose.msra.mxu0 0.0
    %893 = vmatprep.subr.mxu0 0.0
    %894 = vmatpush1.xpose.msra.mxu0 0.0
    %895 = vmatprep.subr.mxu0 0.0
    %896 = vmatpush1.xpose.msra.mxu0 0.0
    %897 = vmatprep.subr.mxu0 0.0
    %898 = vmatpush1.xpose.msra.mxu0 0.0
    %899 = vmatprep.subr.mxu0 0.0
    %900 = vmatpush1.xpose.msra.mxu0 0.0
    %901 = vmatprep.subr.mxu0 0.0
    %902 = vmatpush1.xpose.msra.mxu0 0.0
    %903 = vmatprep.subr.mxu0 0.0
    %904 = vmatpush1.xpose.msra.mxu0 0.0
    %905 = vmatprep.subr.mxu0 0.0
    %906 = vmatpush1.xpose.msra.mxu0 0.0
    %907 = vmatprep.subr.mxu0 0.0
    %908 = vmatpush1.xpose.msra.mxu0 0.0
    %909 = vmatprep.subr.mxu0 0.0
    %910 = vmatpush1.xpose.msra.mxu0 0.0
    %911 = vmatprep.subr.mxu0 0.0
    %912 = vmatpush1.xpose.msra.mxu0 0.0
    %913 = vmatprep.subr.mxu0 0.0
    %914 = vmatpush1.xpose.msra.mxu0 0.0
    %915 = vmatprep.subr.mxu0 0.0
    %916 = vmatpush1.xpose.msra.mxu0 0.0
    %917 = vmatprep.mubr.f32.mxu0 0.0
    %918 = vmatmul.mubr.f32.gmra.mrb[0].mxu0 %v806
    %v919 = vpop.f32.mrb[0].mxu0
    %v920 = vadd.f32 0.0, %v919
    %v921 = vpop.f32.mrb[0].mxu0
    %922 = vmatprep.mubr.f32.mxu0 0.0
    %923 = vmatmul.mubr.f32.gmra.mrb[0].mxu0 %v809
    %v924 = vpop.f32.mrb[0].mxu0
    %v925 = vadd.f32 0.0, %v924
    %v926 = vpop.f32.mrb[0].mxu0
    %927 = vmatprep.mubr.f32.mxu0 0.0
    %928 = vmatmul.mubr.f32.gmra.mrb[0].mxu0 %v812
    %v929 = vpop.f32.mrb[0].mxu0
    %v930 = vadd.f32 0.0, %v929
    %v931 = vpop.f32.mrb[0].mxu0
    %932 = vmatprep.mubr.f32.mxu0 0.0
    %933 = vmatmul.mubr.f32.gmra.mrb[0].mxu0 %v815
    %v934 = vpop.f32.mrb[0].mxu0
    %v935 = vadd.f32 0.0, %v934
    %v936 = vpop.f32.mrb[0].mxu0
    %937 = vmatprep.mubr.f32.mxu0 0.0
    %938 = vmatmul.mubr.f32.gmra.mrb[0].mxu0 %v818
    %v939 = vpop.f32.mrb[0].mxu0
    %v940 = vadd.f32 0.0, %v939
    %v941 = vpop.f32.mrb[0].mxu0
    %942 = vmatprep.mubr.f32.mxu0 0.0
    %943 = vmatmul.mubr.f32.gmra.mrb[0].mxu0 %v821
    %v944 = vpop.f32.mrb[0].mxu0
    %v945 = vadd.f32 0.0, %v944
    %v946 = vpop.f32.mrb[0].mxu0
    %947 = vmatprep.mubr.f32.mxu0 0.0
    %948 = vmatmul.mubr.f32.gmra.mrb[0].mxu0 %v824
    %v949 = vpop.f32.mrb[0].mxu0
    %v950 = vadd.f32 0.0, %v949
    %v951 = vpop.f32.mrb[0].mxu0
    %952 = vmatprep.mubr.f32.mxu0 0.0
    %953 = vmatmul.mubr.f32.gmra.mrb[0].mxu0 %v827
    %v954 = vpop.f32.mrb[0].mxu0
    %v955 = vadd.f32 0.0, %v954
    %v956 = vpop.f32.mrb[0].mxu0
    %957 = vdwg.mxu0
    %v959 = vsel %vm804, %v388, 0
    %v962 = vsel %vm804, %v389, 0
    %v965 = vsel %vm804, %v390, 0
    %v968 = vsel %vm804, %v391, 0
    %v971 = vsel %vm804, %v392, 0
    %v974 = vsel %vm804, %v393, 0
    %v977 = vsel %vm804, %v394, 0
    %v980 = vsel %vm804, %v395, 0
    %v983 = vsel %vm804, %v562, 0
    %v986 = vsel %vm804, %v567, 0
    %v989 = vsel %vm804, %v572, 0
    %v992 = vsel %vm804, %v577, 0
    %v995 = vsel %vm804, %v582, 0
    %v998 = vsel %vm804, %v587, 0
    %v1001 = vsel %vm804, %v592, 0
    %v1004 = vsel %vm804, %v597, 0
    %1006 = vmatprep.subr.mxu0 0.0
    %1007 = vmatpush1.xpose.msra.mxu0 %v983
    %1008 = vmatprep.subr.mxu0 0.0
    %1009 = vmatpush1.xpose.msra.mxu0 %v986
    %1010 = vmatprep.subr.mxu0 0.0
    %1011 = vmatpush1.xpose.msra.mxu0 %v989
    %1012 = vmatprep.subr.mxu0 0.0
    %1013 = vmatpush1.xpose.msra.mxu0 %v992
    %1014 = vmatprep.subr.mxu0 0.0
    %1015 = vmatpush1.xpose.msra.mxu0 %v995
    %1016 = vmatprep.subr.mxu0 0.0
    %1017 = vmatpush1.xpose.msra.mxu0 %v998
    %1018 = vmatprep.subr.mxu0 0.0
    %1019 = vmatpush1.xpose.msra.mxu0 %v1001
    %1020 = vmatprep.subr.mxu0 0.0
    %1021 = vmatpush1.xpose.msra.mxu0 %v1004
    %1022 = vmatprep.subr.mxu0 0.0
    %1023 = vmatpush1.xpose.msra.mxu0 0.0
    %1024 = vmatprep.subr.mxu0 0.0
    %1025 = vmatpush1.xpose.msra.mxu0 0.0
    %1026 = vmatprep.subr.mxu0 0.0
    %1027 = vmatpush1.xpose.msra.mxu0 0.0
    %1028 = vmatprep.subr.mxu0 0.0
    %1029 = vmatpush1.xpose.msra.mxu0 0.0
    %1030 = vmatprep.subr.mxu0 0.0
    %1031 = vmatpush1.xpose.msra.mxu0 0.0
    %1032 = vmatprep.subr.mxu0 0.0
    %1033 = vmatpush1.xpose.msra.mxu0 0.0
    %1034 = vmatprep.subr.mxu0 0.0
    %1035 = vmatpush1.xpose.msra.mxu0 0.0
    %1036 = vmatprep.subr.mxu0 0.0
    %1037 = vmatpush1.xpose.msra.mxu0 0.0
    %1038 = vmatprep.subr.mxu0 0.0
    %1039 = vmatpush1.xpose.msra.mxu0 0.0
    %1040 = vmatprep.subr.mxu0 0.0
    %1041 = vmatpush1.xpose.msra.mxu0 0.0
    %1042 = vmatprep.subr.mxu0 0.0
    %1043 = vmatpush1.xpose.msra.mxu0 0.0
    %1044 = vmatprep.subr.mxu0 0.0
    %1045 = vmatpush1.xpose.msra.mxu0 0.0
    %1046 = vmatprep.subr.mxu0 0.0
    %1047 = vmatpush1.xpose.msra.mxu0 0.0
    %1048 = vmatprep.subr.mxu0 0.0
    %1049 = vmatpush1.xpose.msra.mxu0 0.0
    %1050 = vmatprep.subr.mxu0 0.0
    %1051 = vmatpush1.xpose.msra.mxu0 0.0
    %1052 = vmatprep.subr.mxu0 0.0
    %1053 = vmatpush1.xpose.msra.mxu0 0.0
    %1054 = vmatprep.subr.mxu0 0.0
    %1055 = vmatpush1.xpose.msra.mxu0 0.0
    %1056 = vmatprep.subr.mxu0 0.0
    %1057 = vmatpush1.xpose.msra.mxu0 0.0
    %1058 = vmatprep.subr.mxu0 0.0
    %1059 = vmatpush1.xpose.msra.mxu0 0.0
    %1060 = vmatprep.subr.mxu0 0.0
    %1061 = vmatpush1.xpose.msra.mxu0 0.0
    %1062 = vmatprep.subr.mxu0 0.0
    %1063 = vmatpush1.xpose.msra.mxu0 0.0
    %1064 = vmatprep.subr.mxu0 0.0
    %1065 = vmatpush1.xpose.msra.mxu0 0.0
    %1066 = vmatprep.subr.mxu0 0.0
    %1067 = vmatpush1.xpose.msra.mxu0 0.0
    %1068 = vmatprep.subr.mxu0 0.0
    %1069 = vmatpush1.xpose.msra.mxu0 0.0
    %1070 = vmatprep.mubr.f32.mxu0 0.0
    %1071 = vmatmul.mubr.f32.gmra.mrb[0].mxu0 %v959
    %v1072 = vpop.f32.mrb[0].mxu0
    %v1073 = vadd.f32 0.0, %v1072
    %v1074 = vpop.f32.mrb[0].mxu0
    %1075 = vmatprep.mubr.f32.mxu0 0.0
    %1076 = vmatmul.mubr.f32.gmra.mrb[0].mxu0 %v962
    %v1077 = vpop.f32.mrb[0].mxu0
    %v1078 = vadd.f32 0.0, %v1077
    %v1079 = vpop.f32.mrb[0].mxu0
    %1080 = vmatprep.mubr.f32.mxu0 0.0
    %1081 = vmatmul.mubr.f32.gmra.mrb[0].mxu0 %v965
    %v1082 = vpop.f32.mrb[0].mxu0
    %v1083 = vadd.f32 0.0, %v1082
    %v1084 = vpop.f32.mrb[0].mxu0
    %1085 = vmatprep.mubr.f32.mxu0 0.0
    %1086 = vmatmul.mubr.f32.gmra.mrb[0].mxu0 %v968
    %v1087 = vpop.f32.mrb[0].mxu0
    %v1088 = vadd.f32 0.0, %v1087
    %v1089 = vpop.f32.mrb[0].mxu0
    %1090 = vmatprep.mubr.f32.mxu0 0.0
    %1091 = vmatmul.mubr.f32.gmra.mrb[0].mxu0 %v971
    %v1092 = vpop.f32.mrb[0].mxu0
    %v1093 = vadd.f32 0.0, %v1092
    %v1094 = vpop.f32.mrb[0].mxu0
    %1095 = vmatprep.mubr.f32.mxu0 0.0
    %1096 = vmatmul.mubr.f32.gmra.mrb[0].mxu0 %v974
    %v1097 = vpop.f32.mrb[0].mxu0
    %v1098 = vadd.f32 0.0, %v1097
    %v1099 = vpop.f32.mrb[0].mxu0
    %1100 = vmatprep.mubr.f32.mxu0 0.0
    %1101 = vmatmul.mubr.f32.gmra.mrb[0].mxu0 %v977
    %v1102 = vpop.f32.mrb[0].mxu0
    %v1103 = vadd.f32 0.0, %v1102
    %v1104 = vpop.f32.mrb[0].mxu0
    %1105 = vmatprep.mubr.f32.mxu0 0.0
    %1106 = vmatmul.mubr.f32.gmra.mrb[0].mxu0 %v980
    %v1107 = vpop.f32.mrb[0].mxu0
    %v1108 = vadd.f32 0.0, %v1107
    %v1109 = vpop.f32.mrb[0].mxu0
    %1110 = vdwg.mxu0
    %vm1111 = vcmask 523264
    %v1112 = vsel %vm1111, %v920, -inf
    %1113 = vmax.xlane.f32.xlu0 %v1112
    %v1114 = vpop.xlane.xlu0 %1113
    %v1115 = vsel %vm1111, %v925, -inf
    %1116 = vmax.xlane.f32.xlu0 %v1115
    %v1117 = vpop.xlane.xlu0 %1116
    %v1118 = vsel %vm1111, %v930, -inf
    %1119 = vmax.xlane.f32.xlu0 %v1118
    %v1120 = vpop.xlane.xlu0 %1119
    %v1121 = vsel %vm1111, %v935, -inf
    %1122 = vmax.xlane.f32.xlu0 %v1121
    %v1123 = vpop.xlane.xlu0 %1122
    %v1124 = vsel %vm1111, %v940, -inf
    %1125 = vmax.xlane.f32.xlu0 %v1124
    %v1126 = vpop.xlane.xlu0 %1125
    %v1127 = vsel %vm1111, %v945, -inf
    %1128 = vmax.xlane.f32.xlu0 %v1127
    %v1129 = vpop.xlane.xlu0 %1128
    %v1130 = vsel %vm1111, %v950, -inf
    %1131 = vmax.xlane.f32.xlu0 %v1130
    %v1132 = vpop.xlane.xlu0 %1131
    %v1133 = vsel %vm1111, %v955, -inf
    %1134 = vmax.xlane.f32.xlu0 %v1133
    %v1135 = vpop.xlane.xlu0 %1134
    %v1136 = vsel %vm1111, %v1073, -inf
    %1137 = vmax.xlane.f32.xlu0 %v1136
    %v1138 = vpop.xlane.xlu0 %1137
    %v1139 = vsel %vm1111, %v1078, -inf
    %1140 = vmax.xlane.f32.xlu0 %v1139
    %v1141 = vpop.xlane.xlu0 %1140
    %v1142 = vsel %vm1111, %v1083, -inf
    %1143 = vmax.xlane.f32.xlu0 %v1142
    %v1144 = vpop.xlane.xlu0 %1143
    %v1145 = vsel %vm1111, %v1088, -inf
    %1146 = vmax.xlane.f32.xlu0 %v1145
    %v1147 = vpop.xlane.xlu0 %1146
    %v1148 = vsel %vm1111, %v1093, -inf
    %1149 = vmax.xlane.f32.xlu0 %v1148
    %v1150 = vpop.xlane.xlu0 %1149
    %v1151 = vsel %vm1111, %v1098, -inf
    %1152 = vmax.xlane.f32.xlu0 %v1151
    %v1153 = vpop.xlane.xlu0 %1152
    %v1154 = vsel %vm1111, %v1103, -inf
    %1155 = vmax.xlane.f32.xlu0 %v1154
    %v1156 = vpop.xlane.xlu0 %1155
    %v1157 = vsel %vm1111, %v1108, -inf
    %1158 = vmax.xlane.f32.xlu0 %v1157
    %v1159 = vpop.xlane.xlu0 %1158
    %v1160 = vsub.f32 %v920, %v1114
    %v1161 = vsub.f32 %v925, %v1117
    %v1162 = vsub.f32 %v930, %v1120
    %v1163 = vsub.f32 %v935, %v1123
    %v1164 = vsub.f32 %v940, %v1126
    %v1165 = vsub.f32 %v945, %v1129
    %v1166 = vsub.f32 %v950, %v1132
    %v1167 = vsub.f32 %v955, %v1135
    %v1168 = vsub.f32 %v1073, %v1138
    %v1169 = vsub.f32 %v1078, %v1141
    %v1170 = vsub.f32 %v1083, %v1144
    %v1171 = vsub.f32 %v1088, %v1147
    %v1172 = vsub.f32 %v1093, %v1150
    %v1173 = vsub.f32 %v1098, %v1153
    %v1174 = vsub.f32 %v1103, %v1156
    %v1175 = vsub.f32 %v1108, %v1159
    %v1176 = vmul.f32 %v1160, 1.442695
    %v1177 = vpow.pop %v1176
    %v1178 = vmul.f32 %v1161, 1.442695
    %v1179 = vpow.pop %v1178
    %v1180 = vmul.f32 %v1162, 1.442695
    %v1181 = vpow.pop %v1180
    %v1182 = vmul.f32 %v1163, 1.442695
    %v1183 = vpow.pop %v1182
    %v1184 = vmul.f32 %v1164, 1.442695
    %v1185 = vpow.pop %v1184
    %v1186 = vmul.f32 %v1165, 1.442695
    %v1187 = vpow.pop %v1186
    %v1188 = vmul.f32 %v1166, 1.442695
    %v1189 = vpow.pop %v1188
    %v1190 = vmul.f32 %v1167, 1.442695
    %v1191 = vpow.pop %v1190
    %v1192 = vmul.f32 %v1168, 1.442695
    %v1193 = vpow.pop %v1192
    %v1194 = vmul.f32 %v1169, 1.442695
    %v1195 = vpow.pop %v1194
    %v1196 = vmul.f32 %v1170, 1.442695
    %v1197 = vpow.pop %v1196
    %v1198 = vmul.f32 %v1171, 1.442695
    %v1199 = vpow.pop %v1198
    %v1200 = vmul.f32 %v1172, 1.442695
    %v1201 = vpow.pop %v1200
    %v1202 = vmul.f32 %v1173, 1.442695
    %v1203 = vpow.pop %v1202
    %v1204 = vmul.f32 %v1174, 1.442695
    %v1205 = vpow.pop %v1204
    %v1206 = vmul.f32 %v1175, 1.442695
    %v1207 = vpow.pop %v1206
    %v1208 = vsel %vm1111, %v1177, 0.0
    %1209 = vadd.xlane.f32.xlu0 %v1208
    %v1210 = vpop.xlane.xlu0 %1209
    %v1211 = vsel %vm1111, %v1179, 0.0
    %1212 = vadd.xlane.f32.xlu0 %v1211
    %v1213 = vpop.xlane.xlu0 %1212
    %v1214 = vsel %vm1111, %v1181, 0.0
    %1215 = vadd.xlane.f32.xlu0 %v1214
    %v1216 = vpop.xlane.xlu0 %1215
    %v1217 = vsel %vm1111, %v1183, 0.0
    %1218 = vadd.xlane.f32.xlu0 %v1217
    %v1219 = vpop.xlane.xlu0 %1218
    %v1220 = vsel %vm1111, %v1185, 0.0
    %1221 = vadd.xlane.f32.xlu0 %v1220
    %v1222 = vpop.xlane.xlu0 %1221
    %v1223 = vsel %vm1111, %v1187, 0.0
    %1224 = vadd.xlane.f32.xlu0 %v1223
    %v1225 = vpop.xlane.xlu0 %1224
    %v1226 = vsel %vm1111, %v1189, 0.0
    %1227 = vadd.xlane.f32.xlu0 %v1226
    %v1228 = vpop.xlane.xlu0 %1227
    %v1229 = vsel %vm1111, %v1191, 0.0
    %1230 = vadd.xlane.f32.xlu0 %v1229
    %v1231 = vpop.xlane.xlu0 %1230
    %v1232 = vsel %vm1111, %v1193, 0.0
    %1233 = vadd.xlane.f32.xlu0 %v1232
    %v1234 = vpop.xlane.xlu0 %1233
    %v1235 = vsel %vm1111, %v1195, 0.0
    %1236 = vadd.xlane.f32.xlu0 %v1235
    %v1237 = vpop.xlane.xlu0 %1236
    %v1238 = vsel %vm1111, %v1197, 0.0
    %1239 = vadd.xlane.f32.xlu0 %v1238
    %v1240 = vpop.xlane.xlu0 %1239
    %v1241 = vsel %vm1111, %v1199, 0.0
    %1242 = vadd.xlane.f32.xlu0 %v1241
    %v1243 = vpop.xlane.xlu0 %1242
    %v1244 = vsel %vm1111, %v1201, 0.0
    %1245 = vadd.xlane.f32.xlu0 %v1244
    %v1246 = vpop.xlane.xlu0 %1245
    %v1247 = vsel %vm1111, %v1203, 0.0
    %1248 = vadd.xlane.f32.xlu0 %v1247
    %v1249 = vpop.xlane.xlu0 %1248
    %v1250 = vsel %vm1111, %v1205, 0.0
    %1251 = vadd.xlane.f32.xlu0 %v1250
    %v1252 = vpop.xlane.xlu0 %1251
    %v1253 = vsel %vm1111, %v1207, 0.0
    %1254 = vadd.xlane.f32.xlu0 %v1253
    %v1255 = vpop.xlane.xlu0 %1254
    %v1256 = vrcp.pop %v1210
    %v1257 = vrcp.pop %v1213
    %v1258 = vrcp.pop %v1216
    %v1259 = vrcp.pop %v1219
    %v1260 = vrcp.pop %v1222
    %v1261 = vrcp.pop %v1225
    %v1262 = vrcp.pop %v1228
    %v1263 = vrcp.pop %v1231
    %v1264 = vrcp.pop %v1234
    %v1265 = vrcp.pop %v1237
    %v1266 = vrcp.pop %v1240
    %v1267 = vrcp.pop %v1243
    %v1268 = vrcp.pop %v1246
    %v1269 = vrcp.pop %v1249
    %v1270 = vrcp.pop %v1252
    %v1271 = vrcp.pop %v1255
    %v1272 = vmul.f32 %v1177, %v1256
    %v1273 = vmul.f32 %v1179, %v1257
    %v1274 = vmul.f32 %v1181, %v1258
    %v1275 = vmul.f32 %v1183, %v1259
    %v1276 = vmul.f32 %v1185, %v1260
    %v1277 = vmul.f32 %v1187, %v1261
    %v1278 = vmul.f32 %v1189, %v1262
    %v1279 = vmul.f32 %v1191, %v1263
    %v1280 = vmul.f32 %v1193, %v1264
    %v1281 = vmul.f32 %v1195, %v1265
    %v1282 = vmul.f32 %v1197, %v1266
    %v1283 = vmul.f32 %v1199, %v1267
    %v1284 = vmul.f32 %v1201, %v1268
    %v1285 = vmul.f32 %v1203, %v1269
    %v1286 = vmul.f32 %v1205, %v1270
    %v1287 = vmul.f32 %v1207, %v1271
    %v1289 = vsel %vm1111, %v1272, 0
    %v1292 = vsel %vm1111, %v1273, 0
    %v1295 = vsel %vm1111, %v1274, 0
    %v1298 = vsel %vm1111, %v1275, 0
    %v1301 = vsel %vm1111, %v1276, 0
    %v1304 = vsel %vm1111, %v1277, 0
    %v1307 = vsel %vm1111, %v1278, 0
    %v1310 = vsel %vm1111, %v1279, 0
    %1312 = vmatprep.subr.mxu0 0.0
    %1313 = vmatpush1.msra.mxu0 %v726
    %1314 = vmatprep.subr.mxu0 0.0
    %1315 = vmatpush1.msra.mxu0 %v731
    %1316 = vmatprep.subr.mxu0 0.0
    %1317 = vmatpush1.msra.mxu0 %v736
    %1318 = vmatprep.subr.mxu0 0.0
    %1319 = vmatpush1.msra.mxu0 %v741
    %1320 = vmatprep.subr.mxu0 0.0
    %1321 = vmatpush1.msra.mxu0 %v746
    %1322 = vmatprep.subr.mxu0 0.0
    %1323 = vmatpush1.msra.mxu0 %v751
    %1324 = vmatprep.subr.mxu0 0.0
    %1325 = vmatpush1.msra.mxu0 %v756
    %1326 = vmatprep.subr.mxu0 0.0
    %1327 = vmatpush1.msra.mxu0 %v761
    %1328 = vmatprep.subr.mxu0 0.0
    %1329 = vmatpush1.msra.mxu0 0.0
    %1330 = vmatprep.subr.mxu0 0.0
    %1331 = vmatpush1.msra.mxu0 0.0
    %1332 = vmatprep.subr.mxu0 0.0
    %1333 = vmatpush1.msra.mxu0 0.0
    %1334 = vmatprep.subr.mxu0 0.0
    %1335 = vmatpush1.msra.mxu0 0.0
    %1336 = vmatprep.subr.mxu0 0.0
    %1337 = vmatpush1.msra.mxu0 0.0
    %1338 = vmatprep.subr.mxu0 0.0
    %1339 = vmatpush1.msra.mxu0 0.0
    %1340 = vmatprep.subr.mxu0 0.0
    %1341 = vmatpush1.msra.mxu0 0.0
    %1342 = vmatprep.subr.mxu0 0.0
    %1343 = vmatpush1.msra.mxu0 0.0
    %1344 = vmatprep.subr.mxu0 0.0
    %1345 = vmatpush1.msra.mxu0 0.0
    %1346 = vmatprep.subr.mxu0 0.0
    %1347 = vmatpush1.msra.mxu0 0.0
    %1348 = vmatprep.subr.mxu0 0.0
    %1349 = vmatpush1.msra.mxu0 0.0
    %1350 = vmatprep.subr.mxu0 0.0
    %1351 = vmatpush1.msra.mxu0 0.0
    %1352 = vmatprep.subr.mxu0 0.0
    %1353 = vmatpush1.msra.mxu0 0.0
    %1354 = vmatprep.subr.mxu0 0.0
    %1355 = vmatpush1.msra.mxu0 0.0
    %1356 = vmatprep.subr.mxu0 0.0
    %1357 = vmatpush1.msra.mxu0 0.0
    %1358 = vmatprep.subr.mxu0 0.0
    %1359 = vmatpush1.msra.mxu0 0.0
    %1360 = vmatprep.subr.mxu0 0.0
    %1361 = vmatpush1.msra.mxu0 0.0
    %1362 = vmatprep.subr.mxu0 0.0
    %1363 = vmatpush1.msra.mxu0 0.0
    %1364 = vmatprep.subr.mxu0 0.0
    %1365 = vmatpush1.msra.mxu0 0.0
    %1366 = vmatprep.subr.mxu0 0.0
    %1367 = vmatpush1.msra.mxu0 0.0
    %1368 = vmatprep.subr.mxu0 0.0
    %1369 = vmatpush1.msra.mxu0 0.0
    %1370 = vmatprep.subr.mxu0 0.0
    %1371 = vmatpush1.msra.mxu0 0.0
    %1372 = vmatprep.subr.mxu0 0.0
    %1373 = vmatpush1.msra.mxu0 0.0
    %1374 = vmatprep.subr.mxu0 0.0
    %1375 = vmatpush1.msra.mxu0 0.0
    %1376 = vmatprep.mubr.f32.mxu0 0.0
    %1377 = vmatmul.mubr.f32.gmra.mrb[0].mxu0 %v1289
    %v1378 = vpop.f32.mrb[0].mxu0
    %v1379 = vadd.f32 0.0, %v1378
    %v1380 = vpop.f32.mrb[0].mxu0
    %1381 = vmatprep.mubr.f32.mxu0 0.0
    %1382 = vmatmul.mubr.f32.gmra.mrb[0].mxu0 %v1292
    %v1383 = vpop.f32.mrb[0].mxu0
    %v1384 = vadd.f32 0.0, %v1383
    %v1385 = vpop.f32.mrb[0].mxu0
    %1386 = vmatprep.mubr.f32.mxu0 0.0
    %1387 = vmatmul.mubr.f32.gmra.mrb[0].mxu0 %v1295
    %v1388 = vpop.f32.mrb[0].mxu0
    %v1389 = vadd.f32 0.0, %v1388
    %v1390 = vpop.f32.mrb[0].mxu0
    %1391 = vmatprep.mubr.f32.mxu0 0.0
    %1392 = vmatmul.mubr.f32.gmra.mrb[0].mxu0 %v1298
    %v1393 = vpop.f32.mrb[0].mxu0
    %v1394 = vadd.f32 0.0, %v1393
    %v1395 = vpop.f32.mrb[0].mxu0
    %1396 = vmatprep.mubr.f32.mxu0 0.0
    %1397 = vmatmul.mubr.f32.gmra.mrb[0].mxu0 %v1301
    %v1398 = vpop.f32.mrb[0].mxu0
    %v1399 = vadd.f32 0.0, %v1398
    %v1400 = vpop.f32.mrb[0].mxu0
    %1401 = vmatprep.mubr.f32.mxu0 0.0
    %1402 = vmatmul.mubr.f32.gmra.mrb[0].mxu0 %v1304
    %v1403 = vpop.f32.mrb[0].mxu0
    %v1404 = vadd.f32 0.0, %v1403
    %v1405 = vpop.f32.mrb[0].mxu0
    %1406 = vmatprep.mubr.f32.mxu0 0.0
    %1407 = vmatmul.mubr.f32.gmra.mrb[0].mxu0 %v1307
    %v1408 = vpop.f32.mrb[0].mxu0
    %v1409 = vadd.f32 0.0, %v1408
    %v1410 = vpop.f32.mrb[0].mxu0
    %1411 = vmatprep.mubr.f32.mxu0 0.0
    %1412 = vmatmul.mubr.f32.gmra.mrb[0].mxu0 %v1310
    %v1413 = vpop.f32.mrb[0].mxu0
    %v1414 = vadd.f32 0.0, %v1413
    %v1415 = vpop.f32.mrb[0].mxu0
    %1416 = vdwg.mxu0
    %v1418 = vsel %vm1111, %v1280, 0
    %v1421 = vsel %vm1111, %v1281, 0
    %v1424 = vsel %vm1111, %v1282, 0
    %v1427 = vsel %vm1111, %v1283, 0
    %v1430 = vsel %vm1111, %v1284, 0
    %v1433 = vsel %vm1111, %v1285, 0
    %v1436 = vsel %vm1111, %v1286, 0
    %v1439 = vsel %vm1111, %v1287, 0
    %1441 = vmatprep.subr.mxu0 0.0
    %1442 = vmatpush1.msra.mxu0 %v766
    %1443 = vmatprep.subr.mxu0 0.0
    %1444 = vmatpush1.msra.mxu0 %v771
    %1445 = vmatprep.subr.mxu0 0.0
    %1446 = vmatpush1.msra.mxu0 %v776
    %1447 = vmatprep.subr.mxu0 0.0
    %1448 = vmatpush1.msra.mxu0 %v781
    %1449 = vmatprep.subr.mxu0 0.0
    %1450 = vmatpush1.msra.mxu0 %v786
    %1451 = vmatprep.subr.mxu0 0.0
    %1452 = vmatpush1.msra.mxu0 %v791
    %1453 = vmatprep.subr.mxu0 0.0
    %1454 = vmatpush1.msra.mxu0 %v796
    %1455 = vmatprep.subr.mxu0 0.0
    %1456 = vmatpush1.msra.mxu0 %v801
    %1457 = vmatprep.subr.mxu0 0.0
    %1458 = vmatpush1.msra.mxu0 0.0
    %1459 = vmatprep.subr.mxu0 0.0
    %1460 = vmatpush1.msra.mxu0 0.0
    %1461 = vmatprep.subr.mxu0 0.0
    %1462 = vmatpush1.msra.mxu0 0.0
    %1463 = vmatprep.subr.mxu0 0.0
    %1464 = vmatpush1.msra.mxu0 0.0
    %1465 = vmatprep.subr.mxu0 0.0
    %1466 = vmatpush1.msra.mxu0 0.0
    %1467 = vmatprep.subr.mxu0 0.0
    %1468 = vmatpush1.msra.mxu0 0.0
    %1469 = vmatprep.subr.mxu0 0.0
    %1470 = vmatpush1.msra.mxu0 0.0
    %1471 = vmatprep.subr.mxu0 0.0
    %1472 = vmatpush1.msra.mxu0 0.0
    %1473 = vmatprep.subr.mxu0 0.0
    %1474 = vmatpush1.msra.mxu0 0.0
    %1475 = vmatprep.subr.mxu0 0.0
    %1476 = vmatpush1.msra.mxu0 0.0
    %1477 = vmatprep.subr.mxu0 0.0
    %1478 = vmatpush1.msra.mxu0 0.0
    %1479 = vmatprep.subr.mxu0 0.0
    %1480 = vmatpush1.msra.mxu0 0.0
    %1481 = vmatprep.subr.mxu0 0.0
    %1482 = vmatpush1.msra.mxu0 0.0
    %1483 = vmatprep.subr.mxu0 0.0
    %1484 = vmatpush1.msra.mxu0 0.0
    %1485 = vmatprep.subr.mxu0 0.0
    %1486 = vmatpush1.msra.mxu0 0.0
    %1487 = vmatprep.subr.mxu0 0.0
    %1488 = vmatpush1.msra.mxu0 0.0
    %1489 = vmatprep.subr.mxu0 0.0
    %1490 = vmatpush1.msra.mxu0 0.0
    %1491 = vmatprep.subr.mxu0 0.0
    %1492 = vmatpush1.msra.mxu0 0.0
    %1493 = vmatprep.subr.mxu0 0.0
    %1494 = vmatpush1.msra.mxu0 0.0
    %1495 = vmatprep.subr.mxu0 0.0
    %1496 = vmatpush1.msra.mxu0 0.0
    %1497 = vmatprep.subr.mxu0 0.0
    %1498 = vmatpush1.msra.mxu0 0.0
    %1499 = vmatprep.subr.mxu0 0.0
    %1500 = vmatpush1.msra.mxu0 0.0
    %1501 = vmatprep.subr.mxu0 0.0
    %1502 = vmatpush1.msra.mxu0 0.0
    %1503 = vmatprep.subr.mxu0 0.0
    %1504 = vmatpush1.msra.mxu0 0.0
    %1505 = vmatprep.mubr.f32.mxu0 0.0
    %1506 = vmatmul.mubr.f32.gmra.mrb[0].mxu0 %v1418
    %v1507 = vpop.f32.mrb[0].mxu0
    %v1508 = vadd.f32 0.0, %v1507
    %v1509 = vpop.f32.mrb[0].mxu0
    %1510 = vmatprep.mubr.f32.mxu0 0.0
    %1511 = vmatmul.mubr.f32.gmra.mrb[0].mxu0 %v1421
    %v1512 = vpop.f32.mrb[0].mxu0
    %v1513 = vadd.f32 0.0, %v1512
    %v1514 = vpop.f32.mrb[0].mxu0
    %1515 = vmatprep.mubr.f32.mxu0 0.0
    %1516 = vmatmul.mubr.f32.gmra.mrb[0].mxu0 %v1424
    %v1517 = vpop.f32.mrb[0].mxu0
    %v1518 = vadd.f32 0.0, %v1517
    %v1519 = vpop.f32.mrb[0].mxu0
    %1520 = vmatprep.mubr.f32.mxu0 0.0
    %1521 = vmatmul.mubr.f32.gmra.mrb[0].mxu0 %v1427
    %v1522 = vpop.f32.mrb[0].mxu0
    %v1523 = vadd.f32 0.0, %v1522
    %v1524 = vpop.f32.mrb[0].mxu0
    %1525 = vmatprep.mubr.f32.mxu0 0.0
    %1526 = vmatmul.mubr.f32.gmra.mrb[0].mxu0 %v1430
    %v1527 = vpop.f32.mrb[0].mxu0
    %v1528 = vadd.f32 0.0, %v1527
    %v1529 = vpop.f32.mrb[0].mxu0
    %1530 = vmatprep.mubr.f32.mxu0 0.0
    %1531 = vmatmul.mubr.f32.gmra.mrb[0].mxu0 %v1433
    %v1532 = vpop.f32.mrb[0].mxu0
    %v1533 = vadd.f32 0.0, %v1532
    %v1534 = vpop.f32.mrb[0].mxu0
    %1535 = vmatprep.mubr.f32.mxu0 0.0
    %1536 = vmatmul.mubr.f32.gmra.mrb[0].mxu0 %v1436
    %v1537 = vpop.f32.mrb[0].mxu0
    %v1538 = vadd.f32 0.0, %v1537
    %v1539 = vpop.f32.mrb[0].mxu0
    %1540 = vmatprep.mubr.f32.mxu0 0.0
    %1541 = vmatmul.mubr.f32.gmra.mrb[0].mxu0 %v1439
    %v1542 = vpop.f32.mrb[0].mxu0
    %v1543 = vadd.f32 0.0, %v1542
    %v1544 = vpop.f32.mrb[0].mxu0
    %1545 = vdwg.mxu0
    %v1546 = vld [vmem:[#allocation11] sm:$0xff]
    %1547 = vrot.lane.b32.xlu0 %v380, 120
    %v1548 = vpop.permute.xlu0 %1547
    %1549 = vrot.lane.b32.xlu0 %v381, 120
    %v1550 = vpop.permute.xlu0 %1549
    %1551 = vrot.lane.b32.xlu0 %v382, 120
    %v1552 = vpop.permute.xlu0 %1551
    %1553 = vrot.lane.b32.xlu0 %v383, 120
    %v1554 = vpop.permute.xlu0 %1553
    %1555 = vrot.lane.b32.xlu0 %v384, 120
    %v1556 = vpop.permute.xlu0 %1555
    %1557 = vrot.lane.b32.xlu0 %v385, 120
    %v1558 = vpop.permute.xlu0 %1557
    %1559 = vrot.lane.b32.xlu0 %v386, 120
    %v1560 = vpop.permute.xlu0 %1559
    %1561 = vrot.lane.b32.xlu0 %v387, 120
    %v1562 = vpop.permute.xlu0 %1561
    %1563 = vrot.lane.b32.xlu0 %v522, 120
    %v1564 = vpop.permute.xlu0 %1563
    %1565 = vrot.lane.b32.xlu0 %v527, 120
    %v1566 = vpop.permute.xlu0 %1565
    %1567 = vrot.lane.b32.xlu0 %v532, 120
    %v1568 = vpop.permute.xlu0 %1567
    %1569 = vrot.lane.b32.xlu0 %v537, 120
    %v1570 = vpop.permute.xlu0 %1569
    %1571 = vrot.lane.b32.xlu0 %v542, 120
    %v1572 = vpop.permute.xlu0 %1571
    %1573 = vrot.lane.b32.xlu0 %v547, 120
    %v1574 = vpop.permute.xlu0 %1573
    %1575 = vrot.lane.b32.xlu0 %v552, 120
    %v1576 = vpop.permute.xlu0 %1575
    %1577 = vrot.lane.b32.xlu0 %v557, 120
    %v1578 = vpop.permute.xlu0 %1577
    %v1579 = vsel %vm804, %v1548, 0
    %v1581 = vsel %vm804, %v1550, 0
    %v1583 = vsel %vm804, %v1552, 0
    %v1585 = vsel %vm804, %v1554, 0
    %v1587 = vsel %vm804, %v1556, 0
    %v1589 = vsel %vm804, %v1558, 0
    %v1591 = vsel %vm804, %v1560, 0
    %v1593 = vsel %vm804, %v1562, 0
    %v1595 = vsel %vm804, %v1564, 0
    %v1597 = vsel %vm804, %v1566, 0
    %v1599 = vsel %vm804, %v1568, 0
    %v1601 = vsel %vm804, %v1570, 0
    %v1603 = vsel %vm804, %v1572, 0
    %v1605 = vsel %vm804, %v1574, 0
    %v1607 = vsel %vm804, %v1576, 0
    %v1609 = vsel %vm804, %v1578, 0
    %1611 = vmatprep.subr.mxu0 0.0
    %1612 = vmatpush1.xpose.msra.mxu0 %v1595
    %1613 = vmatprep.subr.mxu0 0.0
    %1614 = vmatpush1.xpose.msra.mxu0 %v1597
    %1615 = vmatprep.subr.mxu0 0.0
    %1616 = vmatpush1.xpose.msra.mxu0 %v1599
    %1617 = vmatprep.subr.mxu0 0.0
    %1618 = vmatpush1.xpose.msra.mxu0 %v1601
    %1619 = vmatprep.subr.mxu0 0.0
    %1620 = vmatpush1.xpose.msra.mxu0 %v1603
    %1621 = vmatprep.subr.mxu0 0.0
    %1622 = vmatpush1.xpose.msra.mxu0 %v1605
    %1623 = vmatprep.subr.mxu0 0.0
    %1624 = vmatpush1.xpose.msra.mxu0 %v1607
    %1625 = vmatprep.subr.mxu0 0.0
    %1626 = vmatpush1.xpose.msra.mxu0 %v1609
    %1627 = vmatprep.subr.mxu0 0.0
    %1628 = vmatpush1.xpose.msra.mxu0 0.0
    %1629 = vmatprep.subr.mxu0 0.0
    %1630 = vmatpush1.xpose.msra.mxu0 0.0
    %1631 = vmatprep.subr.mxu0 0.0
    %1632 = vmatpush1.xpose.msra.mxu0 0.0
    %1633 = vmatprep.subr.mxu0 0.0
    %1634 = vmatpush1.xpose.msra.mxu0 0.0
    %1635 = vmatprep.subr.mxu0 0.0
    %1636 = vmatpush1.xpose.msra.mxu0 0.0
    %1637 = vmatprep.subr.mxu0 0.0
    %1638 = vmatpush1.xpose.msra.mxu0 0.0
    %1639 = vmatprep.subr.mxu0 0.0
    %1640 = vmatpush1.xpose.msra.mxu0 0.0
    %1641 = vmatprep.subr.mxu0 0.0
    %1642 = vmatpush1.xpose.msra.mxu0 0.0
    %1643 = vmatprep.subr.mxu0 0.0
    %1644 = vmatpush1.xpose.msra.mxu0 0.0
    %1645 = vmatprep.subr.mxu0 0.0
    %1646 = vmatpush1.xpose.msra.mxu0 0.0
    %1647 = vmatprep.subr.mxu0 0.0
    %1648 = vmatpush1.xpose.msra.mxu0 0.0
    %1649 = vmatprep.subr.mxu0 0.0
    %1650 = vmatpush1.xpose.msra.mxu0 0.0
    %1651 = vmatprep.subr.mxu0 0.0
    %1652 = vmatpush1.xpose.msra.mxu0 0.0
    %1653 = vmatprep.subr.mxu0 0.0
    %1654 = vmatpush1.xpose.msra.mxu0 0.0
    %1655 = vmatprep.subr.mxu0 0.0
    %1656 = vmatpush1.xpose.msra.mxu0 0.0
    %1657 = vmatprep.subr.mxu0 0.0
    %1658 = vmatpush1.xpose.msra.mxu0 0.0
    %1659 = vmatprep.subr.mxu0 0.0
    %1660 = vmatpush1.xpose.msra.mxu0 0.0
    %1661 = vmatprep.subr.mxu0 0.0
    %1662 = vmatpush1.xpose.msra.mxu0 0.0
    %1663 = vmatprep.subr.mxu0 0.0
    %1664 = vmatpush1.xpose.msra.mxu0 0.0
    %1665 = vmatprep.subr.mxu0 0.0
    %1666 = vmatpush1.xpose.msra.mxu0 0.0
    %1667 = vmatprep.subr.mxu0 0.0
    %1668 = vmatpush1.xpose.msra.mxu0 0.0
    %1669 = vmatprep.subr.mxu0 0.0
    %1670 = vmatpush1.xpose.msra.mxu0 0.0
    %1671 = vmatprep.subr.mxu0 0.0
    %1672 = vmatpush1.xpose.msra.mxu0 0.0
    %1673 = vmatprep.subr.mxu0 0.0
    %1674 = vmatpush1.xpose.msra.mxu0 0.0
    %1675 = vmatprep.mubr.f32.mxu0 0.0
    %1676 = vmatmul.mubr.f32.gmra.mrb[0].mxu0 %v1579
    %v1677 = vpop.f32.mrb[0].mxu0
    %v1678 = vadd.f32 0.0, %v1677
    %v1679 = vpop.f32.mrb[0].mxu0
    %1680 = vmatprep.mubr.f32.mxu0 0.0
    %1681 = vmatmul.mubr.f32.gmra.mrb[0].mxu0 %v1581
    %v1682 = vpop.f32.mrb[0].mxu0
    %v1683 = vadd.f32 0.0, %v1682
    %v1684 = vpop.f32.mrb[0].mxu0
    %1685 = vmatprep.mubr.f32.mxu0 0.0
    %1686 = vmatmul.mubr.f32.gmra.mrb[0].mxu0 %v1583
    %v1687 = vpop.f32.mrb[0].mxu0
    %v1688 = vadd.f32 0.0, %v1687
    %v1689 = vpop.f32.mrb[0].mxu0
    %1690 = vmatprep.mubr.f32.mxu0 0.0
    %1691 = vmatmul.mubr.f32.gmra.mrb[0].mxu0 %v1585
    %v1692 = vpop.f32.mrb[0].mxu0
    %v1693 = vadd.f32 0.0, %v1692
    %v1694 = vpop.f32.mrb[0].mxu0
    %1695 = vmatprep.mubr.f32.mxu0 0.0
    %1696 = vmatmul.mubr.f32.gmra.mrb[0].mxu0 %v1587
    %v1697 = vpop.f32.mrb[0].mxu0
    %v1698 = vadd.f32 0.0, %v1697
    %v1699 = vpop.f32.mrb[0].mxu0
    %1700 = vmatprep.mubr.f32.mxu0 0.0
    %1701 = vmatmul.mubr.f32.gmra.mrb[0].mxu0 %v1589
    %v1702 = vpop.f32.mrb[0].mxu0
    %v1703 = vadd.f32 0.0, %v1702
    %v1704 = vpop.f32.mrb[0].mxu0
    %1705 = vmatprep.mubr.f32.mxu0 0.0
    %1706 = vmatmul.mubr.f32.gmra.mrb[0].mxu0 %v1591
    %v1707 = vpop.f32.mrb[0].mxu0
    %v1708 = vadd.f32 0.0, %v1707
    %v1709 = vpop.f32.mrb[0].mxu0
    %1710 = vmatprep.mubr.f32.mxu0 0.0
    %1711 = vmatmul.mubr.f32.gmra.mrb[0].mxu0 %v1593
    %v1712 = vpop.f32.mrb[0].mxu0
    %v1713 = vadd.f32 0.0, %v1712
    %v1714 = vpop.f32.mrb[0].mxu0
    %1715 = vdwg.mxu0
    %1716 = vrot.lane.b32.xlu0 %v388, 120
    %v1717 = vpop.permute.xlu0 %1716
    %1718 = vrot.lane.b32.xlu0 %v389, 120
    %v1719 = vpop.permute.xlu0 %1718
    %1720 = vrot.lane.b32.xlu0 %v390, 120
    %v1721 = vpop.permute.xlu0 %1720
    %1722 = vrot.lane.b32.xlu0 %v391, 120
    %v1723 = vpop.permute.xlu0 %1722
    %1724 = vrot.lane.b32.xlu0 %v392, 120
    %v1725 = vpop.permute.xlu0 %1724
    %1726 = vrot.lane.b32.xlu0 %v393, 120
    %v1727 = vpop.permute.xlu0 %1726
    %1728 = vrot.lane.b32.xlu0 %v394, 120
    %v1729 = vpop.permute.xlu0 %1728
    %1730 = vrot.lane.b32.xlu0 %v395, 120
    %v1731 = vpop.permute.xlu0 %1730
    %1732 = vrot.lane.b32.xlu0 %v562, 120
    %v1733 = vpop.permute.xlu0 %1732
    %1734 = vrot.lane.b32.xlu0 %v567, 120
    %v1735 = vpop.permute.xlu0 %1734
    %1736 = vrot.lane.b32.xlu0 %v572, 120
    %v1737 = vpop.permute.xlu0 %1736
    %1738 = vrot.lane.b32.xlu0 %v577, 120
    %v1739 = vpop.permute.xlu0 %1738
    %1740 = vrot.lane.b32.xlu0 %v582, 120
    %v1741 = vpop.permute.xlu0 %1740
    %1742 = vrot.lane.b32.xlu0 %v587, 120
    %v1743 = vpop.permute.xlu0 %1742
    %1744 = vrot.lane.b32.xlu0 %v592, 120
    %v1745 = vpop.permute.xlu0 %1744
    %1746 = vrot.lane.b32.xlu0 %v597, 120
    %v1747 = vpop.permute.xlu0 %1746
    %v1748 = vsel %vm804, %v1717, 0
    %v1750 = vsel %vm804, %v1719, 0
    %v1752 = vsel %vm804, %v1721, 0
    %v1754 = vsel %vm804, %v1723, 0
    %v1756 = vsel %vm804, %v1725, 0
    %v1758 = vsel %vm804, %v1727, 0
    %v1760 = vsel %vm804, %v1729, 0
    %v1762 = vsel %vm804, %v1731, 0
    %v1764 = vsel %vm804, %v1733, 0
    %v1766 = vsel %vm804, %v1735, 0
    %v1768 = vsel %vm804, %v1737, 0
    %v1770 = vsel %vm804, %v1739, 0
    %v1772 = vsel %vm804, %v1741, 0
    %v1774 = vsel %vm804, %v1743, 0
    %v1776 = vsel %vm804, %v1745, 0
    %v1778 = vsel %vm804, %v1747, 0
    %1780 = vmatprep.subr.mxu0 0.0
    %1781 = vmatpush1.xpose.msra.mxu0 %v1764
    %1782 = vmatprep.subr.mxu0 0.0
    %1783 = vmatpush1.xpose.msra.mxu0 %v1766
    %1784 = vmatprep.subr.mxu0 0.0
    %1785 = vmatpush1.xpose.msra.mxu0 %v1768
    %1786 = vmatprep.subr.mxu0 0.0
    %1787 = vmatpush1.xpose.msra.mxu0 %v1770
    %1788 = vmatprep.subr.mxu0 0.0
    %1789 = vmatpush1.xpose.msra.mxu0 %v1772
    %1790 = vmatprep.subr.mxu0 0.0
    %1791 = vmatpush1.xpose.msra.mxu0 %v1774
    %1792 = vmatprep.subr.mxu0 0.0
    %1793 = vmatpush1.xpose.msra.mxu0 %v1776
    %1794 = vmatprep.subr.mxu0 0.0
    %1795 = vmatpush1.xpose.msra.mxu0 %v1778
    %1796 = vmatprep.subr.mxu0 0.0
    %1797 = vmatpush1.xpose.msra.mxu0 0.0
    %1798 = vmatprep.subr.mxu0 0.0
    %1799 = vmatpush1.xpose.msra.mxu0 0.0
    %1800 = vmatprep.subr.mxu0 0.0
    %1801 = vmatpush1.xpose.msra.mxu0 0.0
    %1802 = vmatprep.subr.mxu0 0.0
    %1803 = vmatpush1.xpose.msra.mxu0 0.0
    %1804 = vmatprep.subr.mxu0 0.0
    %1805 = vmatpush1.xpose.msra.mxu0 0.0
    %1806 = vmatprep.subr.mxu0 0.0
    %1807 = vmatpush1.xpose.msra.mxu0 0.0
    %1808 = vmatprep.subr.mxu0 0.0
    %1809 = vmatpush1.xpose.msra.mxu0 0.0
    %1810 = vmatprep.subr.mxu0 0.0
    %1811 = vmatpush1.xpose.msra.mxu0 0.0
    %1812 = vmatprep.subr.mxu0 0.0
    %1813 = vmatpush1.xpose.msra.mxu0 0.0
    %1814 = vmatprep.subr.mxu0 0.0
    %1815 = vmatpush1.xpose.msra.mxu0 0.0
    %1816 = vmatprep.subr.mxu0 0.0
    %1817 = vmatpush1.xpose.msra.mxu0 0.0
    %1818 = vmatprep.subr.mxu0 0.0
    %1819 = vmatpush1.xpose.msra.mxu0 0.0
    %1820 = vmatprep.subr.mxu0 0.0
    %1821 = vmatpush1.xpose.msra.mxu0 0.0
    %1822 = vmatprep.subr.mxu0 0.0
    %1823 = vmatpush1.xpose.msra.mxu0 0.0
    %1824 = vmatprep.subr.mxu0 0.0
    %1825 = vmatpush1.xpose.msra.mxu0 0.0
    %1826 = vmatprep.subr.mxu0 0.0
    %1827 = vmatpush1.xpose.msra.mxu0 0.0
    %1828 = vmatprep.subr.mxu0 0.0
    %1829 = vmatpush1.xpose.msra.mxu0 0.0
    %1830 = vmatprep.subr.mxu0 0.0
    %1831 = vmatpush1.xpose.msra.mxu0 0.0
    %1832 = vmatprep.subr.mxu0 0.0
    %1833 = vmatpush1.xpose.msra.mxu0 0.0
    %1834 = vmatprep.subr.mxu0 0.0
    %1835 = vmatpush1.xpose.msra.mxu0 0.0
    %1836 = vmatprep.subr.mxu0 0.0
    %1837 = vmatpush1.xpose.msra.mxu0 0.0
    %1838 = vmatprep.subr.mxu0 0.0
    %1839 = vmatpush1.xpose.msra.mxu0 0.0
    %1840 = vmatprep.subr.mxu0 0.0
    %1841 = vmatpush1.xpose.msra.mxu0 0.0
    %1842 = vmatprep.subr.mxu0 0.0
    %1843 = vmatpush1.xpose.msra.mxu0 0.0
    %1844 = vmatprep.mubr.f32.mxu0 0.0
    %1845 = vmatmul.mubr.f32.gmra.mrb[0].mxu0 %v1748
    %v1846 = vpop.f32.mrb[0].mxu0
    %v1847 = vadd.f32 0.0, %v1846
    %v1848 = vpop.f32.mrb[0].mxu0
    %1849 = vmatprep.mubr.f32.mxu0 0.0
    %1850 = vmatmul.mubr.f32.gmra.mrb[0].mxu0 %v1750
    %v1851 = vpop.f32.mrb[0].mxu0
    %v1852 = vadd.f32 0.0, %v1851
    %v1853 = vpop.f32.mrb[0].mxu0
    %1854 = vmatprep.mubr.f32.mxu0 0.0
    %1855 = vmatmul.mubr.f32.gmra.mrb[0].mxu0 %v1752
    %v1856 = vpop.f32.mrb[0].mxu0
    %v1857 = vadd.f32 0.0, %v1856
    %v1858 = vpop.f32.mrb[0].mxu0
    %1859 = vmatprep.mubr.f32.mxu0 0.0
    %1860 = vmatmul.mubr.f32.gmra.mrb[0].mxu0 %v1754
    %v1861 = vpop.f32.mrb[0].mxu0
    %v1862 = vadd.f32 0.0, %v1861
    %v1863 = vpop.f32.mrb[0].mxu0
    %1864 = vmatprep.mubr.f32.mxu0 0.0
    %1865 = vmatmul.mubr.f32.gmra.mrb[0].mxu0 %v1756
    %v1866 = vpop.f32.mrb[0].mxu0
    %v1867 = vadd.f32 0.0, %v1866
    %v1868 = vpop.f32.mrb[0].mxu0
    %1869 = vmatprep.mubr.f32.mxu0 0.0
    %1870 = vmatmul.mubr.f32.gmra.mrb[0].mxu0 %v1758
    %v1871 = vpop.f32.mrb[0].mxu0
    %v1872 = vadd.f32 0.0, %v1871
    %v1873 = vpop.f32.mrb[0].mxu0
    %1874 = vmatprep.mubr.f32.mxu0 0.0
    %1875 = vmatmul.mubr.f32.gmra.mrb[0].mxu0 %v1760
    %v1876 = vpop.f32.mrb[0].mxu0
    %v1877 = vadd.f32 0.0, %v1876
    %v1878 = vpop.f32.mrb[0].mxu0
    %1879 = vmatprep.mubr.f32.mxu0 0.0
    %1880 = vmatmul.mubr.f32.gmra.mrb[0].mxu0 %v1762
    %v1881 = vpop.f32.mrb[0].mxu0
    %v1882 = vadd.f32 0.0, %v1881
    %v1883 = vpop.f32.mrb[0].mxu0
    %1884 = vdwg.mxu0
    %v1885 = vsel %vm1111, %v1678, -inf
    %1886 = vmax.xlane.f32.xlu0 %v1885
    %v1887 = vpop.xlane.xlu0 %1886
    %v1888 = vsel %vm1111, %v1683, -inf
    %1889 = vmax.xlane.f32.xlu0 %v1888
    %v1890 = vpop.xlane.xlu0 %1889
    %v1891 = vsel %vm1111, %v1688, -inf
    %1892 = vmax.xlane.f32.xlu0 %v1891
    %v1893 = vpop.xlane.xlu0 %1892
    %v1894 = vsel %vm1111, %v1693, -inf
    %1895 = vmax.xlane.f32.xlu0 %v1894
    %v1896 = vpop.xlane.xlu0 %1895
    %v1897 = vsel %vm1111, %v1698, -inf
    %1898 = vmax.xlane.f32.xlu0 %v1897
    %v1899 = vpop.xlane.xlu0 %1898
    %v1900 = vsel %vm1111, %v1703, -inf
    %1901 = vmax.xlane.f32.xlu0 %v1900
    %v1902 = vpop.xlane.xlu0 %1901
    %v1903 = vsel %vm1111, %v1708, -inf
    %1904 = vmax.xlane.f32.xlu0 %v1903
    %v1905 = vpop.xlane.xlu0 %1904
    %v1906 = vsel %vm1111, %v1713, -inf
    %1907 = vmax.xlane.f32.xlu0 %v1906
    %v1908 = vpop.xlane.xlu0 %1907
    %v1909 = vsel %vm1111, %v1847, -inf
    %1910 = vmax.xlane.f32.xlu0 %v1909
    %v1911 = vpop.xlane.xlu0 %1910
    %v1912 = vsel %vm1111, %v1852, -inf
    %1913 = vmax.xlane.f32.xlu0 %v1912
    %v1914 = vpop.xlane.xlu0 %1913
    %v1915 = vsel %vm1111, %v1857, -inf
    %1916 = vmax.xlane.f32.xlu0 %v1915
    %v1917 = vpop.xlane.xlu0 %1916
    %v1918 = vsel %vm1111, %v1862, -inf
    %1919 = vmax.xlane.f32.xlu0 %v1918
    %v1920 = vpop.xlane.xlu0 %1919
    %v1921 = vsel %vm1111, %v1867, -inf
    %1922 = vmax.xlane.f32.xlu0 %v1921
    %v1923 = vpop.xlane.xlu0 %1922
    %v1924 = vsel %vm1111, %v1872, -inf
    %1925 = vmax.xlane.f32.xlu0 %v1924
    %v1926 = vpop.xlane.xlu0 %1925
    %v1927 = vsel %vm1111, %v1877, -inf
    %1928 = vmax.xlane.f32.xlu0 %v1927
    %v1929 = vpop.xlane.xlu0 %1928
    %v1930 = vsel %vm1111, %v1882, -inf
    %1931 = vmax.xlane.f32.xlu0 %v1930
    %v1932 = vpop.xlane.xlu0 %1931
    %v1933 = vsub.f32 %v1678, %v1887
    %v1934 = vsub.f32 %v1683, %v1890
    %v1935 = vsub.f32 %v1688, %v1893
    %v1936 = vsub.f32 %v1693, %v1896
    %v1937 = vsub.f32 %v1698, %v1899
    %v1938 = vsub.f32 %v1703, %v1902
    %v1939 = vsub.f32 %v1708, %v1905
    %v1940 = vsub.f32 %v1713, %v1908
    %v1941 = vsub.f32 %v1847, %v1911
    %v1942 = vsub.f32 %v1852, %v1914
    %v1943 = vsub.f32 %v1857, %v1917
    %v1944 = vsub.f32 %v1862, %v1920
    %v1945 = vsub.f32 %v1867, %v1923
    %v1946 = vsub.f32 %v1872, %v1926
    %v1947 = vsub.f32 %v1877, %v1929
    %v1948 = vsub.f32 %v1882, %v1932
    %v1949 = vmul.f32 %v1933, 1.442695
    %v1950 = vpow.pop %v1949
    %v1951 = vmul.f32 %v1934, 1.442695
    %v1952 = vpow.pop %v1951
    %v1953 = vmul.f32 %v1935, 1.442695
    %v1954 = vpow.pop %v1953
    %v1955 = vmul.f32 %v1936, 1.442695
    %v1956 = vpow.pop %v1955
    %v1957 = vmul.f32 %v1937, 1.442695
    %v1958 = vpow.pop %v1957
    %v1959 = vmul.f32 %v1938, 1.442695
    %v1960 = vpow.pop %v1959
    %v1961 = vmul.f32 %v1939, 1.442695
    %v1962 = vpow.pop %v1961
    %v1963 = vmul.f32 %v1940, 1.442695
    %v1964 = vpow.pop %v1963
    %v1965 = vmul.f32 %v1941, 1.442695
    %v1966 = vpow.pop %v1965
    %v1967 = vmul.f32 %v1942, 1.442695
    %v1968 = vpow.pop %v1967
    %v1969 = vmul.f32 %v1943, 1.442695
    %v1970 = vpow.pop %v1969
    %v1971 = vmul.f32 %v1944, 1.442695
    %v1972 = vpow.pop %v1971
    %v1973 = vmul.f32 %v1945, 1.442695
    %v1974 = vpow.pop %v1973
    %v1975 = vmul.f32 %v1946, 1.442695
    %v1976 = vpow.pop %v1975
    %v1977 = vmul.f32 %v1947, 1.442695
    %v1978 = vpow.pop %v1977
    %v1979 = vmul.f32 %v1948, 1.442695
    %v1980 = vpow.pop %v1979
    %v1981 = vsel %vm1111, %v1950, 0.0
    %1982 = vadd.xlane.f32.xlu0 %v1981
    %v1983 = vpop.xlane.xlu0 %1982
    %v1984 = vsel %vm1111, %v1952, 0.0
    %1985 = vadd.xlane.f32.xlu0 %v1984
    %v1986 = vpop.xlane.xlu0 %1985
    %v1987 = vsel %vm1111, %v1954, 0.0
    %1988 = vadd.xlane.f32.xlu0 %v1987
    %v1989 = vpop.xlane.xlu0 %1988
    %v1990 = vsel %vm1111, %v1956, 0.0
    %1991 = vadd.xlane.f32.xlu0 %v1990
    %v1992 = vpop.xlane.xlu0 %1991
    %v1993 = vsel %vm1111, %v1958, 0.0
    %1994 = vadd.xlane.f32.xlu0 %v1993
    %v1995 = vpop.xlane.xlu0 %1994
    %v1996 = vsel %vm1111, %v1960, 0.0
    %1997 = vadd.xlane.f32.xlu0 %v1996
    %v1998 = vpop.xlane.xlu0 %1997
    %v1999 = vsel %vm1111, %v1962, 0.0
    %2000 = vadd.xlane.f32.xlu0 %v1999
    %v2001 = vpop.xlane.xlu0 %2000
    %v2002 = vsel %vm1111, %v1964, 0.0
    %2003 = vadd.xlane.f32.xlu0 %v2002
    %v2004 = vpop.xlane.xlu0 %2003
    %v2005 = vsel %vm1111, %v1966, 0.0
    %2006 = vadd.xlane.f32.xlu0 %v2005
    %v2007 = vpop.xlane.xlu0 %2006
    %v2008 = vsel %vm1111, %v1968, 0.0
    %2009 = vadd.xlane.f32.xlu0 %v2008
    %v2010 = vpop.xlane.xlu0 %2009
    %v2011 = vsel %vm1111, %v1970, 0.0
    %2012 = vadd.xlane.f32.xlu0 %v2011
    %v2013 = vpop.xlane.xlu0 %2012
    %v2014 = vsel %vm1111, %v1972, 0.0
    %2015 = vadd.xlane.f32.xlu0 %v2014
    %v2016 = vpop.xlane.xlu0 %2015
    %v2017 = vsel %vm1111, %v1974, 0.0
    %2018 = vadd.xlane.f32.xlu0 %v2017
    %v2019 = vpop.xlane.xlu0 %2018
    %v2020 = vsel %vm1111, %v1976, 0.0
    %2021 = vadd.xlane.f32.xlu0 %v2020
    %v2022 = vpop.xlane.xlu0 %2021
    %v2023 = vsel %vm1111, %v1978, 0.0
    %2024 = vadd.xlane.f32.xlu0 %v2023
    %v2025 = vpop.xlane.xlu0 %2024
    %v2026 = vsel %vm1111, %v1980, 0.0
    %2027 = vadd.xlane.f32.xlu0 %v2026
    %v2028 = vpop.xlane.xlu0 %2027
    %v2029 = vrcp.pop %v1983
    %v2030 = vrcp.pop %v1986
    %v2031 = vrcp.pop %v1989
    %v2032 = vrcp.pop %v1992
    %v2033 = vrcp.pop %v1995
    %v2034 = vrcp.pop %v1998
    %v2035 = vrcp.pop %v2001
    %v2036 = vrcp.pop %v2004
    %v2037 = vrcp.pop %v2007
    %v2038 = vrcp.pop %v2010
    %v2039 = vrcp.pop %v2013
    %v2040 = vrcp.pop %v2016
    %v2041 = vrcp.pop %v2019
    %v2042 = vrcp.pop %v2022
    %v2043 = vrcp.pop %v2025
    %v2044 = vrcp.pop %v2028
    %v2045 = vmul.f32 %v1950, %v2029
    %v2046 = vmul.f32 %v1952, %v2030
    %v2047 = vmul.f32 %v1954, %v2031
    %v2048 = vmul.f32 %v1956, %v2032
    %v2049 = vmul.f32 %v1958, %v2033
    %v2050 = vmul.f32 %v1960, %v2034
    %v2051 = vmul.f32 %v1962, %v2035
    %v2052 = vmul.f32 %v1964, %v2036
    %v2053 = vmul.f32 %v1966, %v2037
    %v2054 = vmul.f32 %v1968, %v2038
    %v2055 = vmul.f32 %v1970, %v2039
    %v2056 = vmul.f32 %v1972, %v2040
    %v2057 = vmul.f32 %v1974, %v2041
    %v2058 = vmul.f32 %v1976, %v2042
    %v2059 = vmul.f32 %v1978, %v2043
    %v2060 = vmul.f32 %v1980, %v2044
    %2069 = vrot.lane.b32.xlu0 %v726, 120
    %v2070 = vpop.permute.xlu0 %2069
    %2071 = vrot.lane.b32.xlu0 %v731, 120
    %v2072 = vpop.permute.xlu0 %2071
    %2073 = vrot.lane.b32.xlu0 %v736, 120
    %v2074 = vpop.permute.xlu0 %2073
    %2075 = vrot.lane.b32.xlu0 %v741, 120
    %v2076 = vpop.permute.xlu0 %2075
    %2077 = vrot.lane.b32.xlu0 %v746, 120
    %v2078 = vpop.permute.xlu0 %2077
    %2079 = vrot.lane.b32.xlu0 %v751, 120
    %v2080 = vpop.permute.xlu0 %2079
    %2081 = vrot.lane.b32.xlu0 %v756, 120
    %v2082 = vpop.permute.xlu0 %2081
    %2083 = vrot.lane.b32.xlu0 %v761, 120
    %v2084 = vpop.permute.xlu0 %2083
    %v2094 = vsel %vm1111, %v2045, 0
    %v2097 = vsel %vm1111, %v2046, 0
    %v2100 = vsel %vm1111, %v2047, 0
    %v2103 = vsel %vm1111, %v2048, 0
    %v2106 = vsel %vm1111, %v2049, 0
    %v2109 = vsel %vm1111, %v2050, 0
    %v2112 = vsel %vm1111, %v2051, 0
    %v2115 = vsel %vm1111, %v2052, 0
    %2117 = vmatprep.subr.mxu0 0.0
    %2118 = vmatpush1.msra.mxu0 %v2070
    %2119 = vmatprep.subr.mxu0 0.0
    %2120 = vmatpush1.msra.mxu0 %v2072
    %2121 = vmatprep.subr.mxu0 0.0
    %2122 = vmatpush1.msra.mxu0 %v2074
    %2123 = vmatprep.subr.mxu0 0.0
    %2124 = vmatpush1.msra.mxu0 %v2076
    %2125 = vmatprep.subr.mxu0 0.0
    %2126 = vmatpush1.msra.mxu0 %v2078
    %2127 = vmatprep.subr.mxu0 0.0
    %2128 = vmatpush1.msra.mxu0 %v2080
    %2129 = vmatprep.subr.mxu0 0.0
    %2130 = vmatpush1.msra.mxu0 %v2082
    %2131 = vmatprep.subr.mxu0 0.0
    %2132 = vmatpush1.msra.mxu0 %v2084
    %2133 = vmatprep.subr.mxu0 0.0
    %2134 = vmatpush1.msra.mxu0 0.0
    %2135 = vmatprep.subr.mxu0 0.0
    %2136 = vmatpush1.msra.mxu0 0.0
    %2137 = vmatprep.subr.mxu0 0.0
    %2138 = vmatpush1.msra.mxu0 0.0
    %2139 = vmatprep.subr.mxu0 0.0
    %2140 = vmatpush1.msra.mxu0 0.0
    %2141 = vmatprep.subr.mxu0 0.0
    %2142 = vmatpush1.msra.mxu0 0.0
    %2143 = vmatprep.subr.mxu0 0.0
    %2144 = vmatpush1.msra.mxu0 0.0
    %2145 = vmatprep.subr.mxu0 0.0
    %2146 = vmatpush1.msra.mxu0 0.0
    %2147 = vmatprep.subr.mxu0 0.0
    %2148 = vmatpush1.msra.mxu0 0.0
    %2149 = vmatprep.subr.mxu0 0.0
    %2150 = vmatpush1.msra.mxu0 0.0
    %2151 = vmatprep.subr.mxu0 0.0
    %2152 = vmatpush1.msra.mxu0 0.0
    %2153 = vmatprep.subr.mxu0 0.0
    %2154 = vmatpush1.msra.mxu0 0.0
    %2155 = vmatprep.subr.mxu0 0.0
    %2156 = vmatpush1.msra.mxu0 0.0
    %2157 = vmatprep.subr.mxu0 0.0
    %2158 = vmatpush1.msra.mxu0 0.0
    %2159 = vmatprep.subr.mxu0 0.0
    %2160 = vmatpush1.msra.mxu0 0.0
    %2161 = vmatprep.subr.mxu0 0.0
    %2162 = vmatpush1.msra.mxu0 0.0
    %2163 = vmatprep.subr.mxu0 0.0
    %2164 = vmatpush1.msra.mxu0 0.0
    %2165 = vmatprep.subr.mxu0 0.0
    %2166 = vmatpush1.msra.mxu0 0.0
    %2167 = vmatprep.subr.mxu0 0.0
    %2168 = vmatpush1.msra.mxu0 0.0
    %2169 = vmatprep.subr.mxu0 0.0
    %2170 = vmatpush1.msra.mxu0 0.0
    %2171 = vmatprep.subr.mxu0 0.0
    %2172 = vmatpush1.msra.mxu0 0.0
    %2173 = vmatprep.subr.mxu0 0.0
    %2174 = vmatpush1.msra.mxu0 0.0
    %2175 = vmatprep.subr.mxu0 0.0
    %2176 = vmatpush1.msra.mxu0 0.0
    %2177 = vmatprep.subr.mxu0 0.0
    %2178 = vmatpush1.msra.mxu0 0.0
    %2179 = vmatprep.subr.mxu0 0.0
    %2180 = vmatpush1.msra.mxu0 0.0
    %2181 = vmatprep.mubr.f32.mxu0 0.0
    %2182 = vmatmul.mubr.f32.gmra.mrb[0].mxu0 %v2094
    %v2183 = vpop.f32.mrb[0].mxu0
    %v2184 = vadd.f32 0.0, %v2183
    %v2185 = vpop.f32.mrb[0].mxu0
    %2186 = vmatprep.mubr.f32.mxu0 0.0
    %2187 = vmatmul.mubr.f32.gmra.mrb[0].mxu0 %v2097
    %v2188 = vpop.f32.mrb[0].mxu0
    %v2189 = vadd.f32 0.0, %v2188
    %v2190 = vpop.f32.mrb[0].mxu0
    %2191 = vmatprep.mubr.f32.mxu0 0.0
    %2192 = vmatmul.mubr.f32.gmra.mrb[0].mxu0 %v2100
    %v2193 = vpop.f32.mrb[0].mxu0
    %v2194 = vadd.f32 0.0, %v2193
    %v2195 = vpop.f32.mrb[0].mxu0
    %2196 = vmatprep.mubr.f32.mxu0 0.0
    %2197 = vmatmul.mubr.f32.gmra.mrb[0].mxu0 %v2103
    %v2198 = vpop.f32.mrb[0].mxu0
    %v2199 = vadd.f32 0.0, %v2198
    %v2200 = vpop.f32.mrb[0].mxu0
    %2201 = vmatprep.mubr.f32.mxu0 0.0
    %2202 = vmatmul.mubr.f32.gmra.mrb[0].mxu0 %v2106
    %v2203 = vpop.f32.mrb[0].mxu0
    %v2204 = vadd.f32 0.0, %v2203
    %v2205 = vpop.f32.mrb[0].mxu0
    %2206 = vmatprep.mubr.f32.mxu0 0.0
    %2207 = vmatmul.mubr.f32.gmra.mrb[0].mxu0 %v2109
    %v2208 = vpop.f32.mrb[0].mxu0
    %v2209 = vadd.f32 0.0, %v2208
    %v2210 = vpop.f32.mrb[0].mxu0
    %2211 = vmatprep.mubr.f32.mxu0 0.0
    %2212 = vmatmul.mubr.f32.gmra.mrb[0].mxu0 %v2112
    %v2213 = vpop.f32.mrb[0].mxu0
    %v2214 = vadd.f32 0.0, %v2213
    %v2215 = vpop.f32.mrb[0].mxu0
    %2216 = vmatprep.mubr.f32.mxu0 0.0
    %2217 = vmatmul.mubr.f32.gmra.mrb[0].mxu0 %v2115
    %v2218 = vpop.f32.mrb[0].mxu0
    %v2219 = vadd.f32 0.0, %v2218
    %v2220 = vpop.f32.mrb[0].mxu0
    %2221 = vdwg.mxu0
    %2230 = vrot.lane.b32.xlu0 %v766, 120
    %v2231 = vpop.permute.xlu0 %2230
    %2232 = vrot.lane.b32.xlu0 %v771, 120
    %v2233 = vpop.permute.xlu0 %2232
    %2234 = vrot.lane.b32.xlu0 %v776, 120
    %v2235 = vpop.permute.xlu0 %2234
    %2236 = vrot.lane.b32.xlu0 %v781, 120
    %v2237 = vpop.permute.xlu0 %2236
    %2238 = vrot.lane.b32.xlu0 %v786, 120
    %v2239 = vpop.permute.xlu0 %2238
    %2240 = vrot.lane.b32.xlu0 %v791, 120
    %v2241 = vpop.permute.xlu0 %2240
    %2242 = vrot.lane.b32.xlu0 %v796, 120
    %v2243 = vpop.permute.xlu0 %2242
    %2244 = vrot.lane.b32.xlu0 %v801, 120
    %v2245 = vpop.permute.xlu0 %2244
    %v2255 = vsel %vm1111, %v2053, 0
    %v2258 = vsel %vm1111, %v2054, 0
    %v2261 = vsel %vm1111, %v2055, 0
    %v2264 = vsel %vm1111, %v2056, 0
    %v2267 = vsel %vm1111, %v2057, 0
    %v2270 = vsel %vm1111, %v2058, 0
    %v2273 = vsel %vm1111, %v2059, 0
    %v2276 = vsel %vm1111, %v2060, 0
    %2278 = vmatprep.subr.mxu0 0.0
    %2279 = vmatpush1.msra.mxu0 %v2231
    %2280 = vmatprep.subr.mxu0 0.0
    %2281 = vmatpush1.msra.mxu0 %v2233
    %2282 = vmatprep.subr.mxu0 0.0
    %2283 = vmatpush1.msra.mxu0 %v2235
    %2284 = vmatprep.subr.mxu0 0.0
    %2285 = vmatpush1.msra.mxu0 %v2237
    %2286 = vmatprep.subr.mxu0 0.0
    %2287 = vmatpush1.msra.mxu0 %v2239
    %2288 = vmatprep.subr.mxu0 0.0
    %2289 = vmatpush1.msra.mxu0 %v2241
    %2290 = vmatprep.subr.mxu0 0.0
    %2291 = vmatpush1.msra.mxu0 %v2243
    %2292 = vmatprep.subr.mxu0 0.0
    %2293 = vmatpush1.msra.mxu0 %v2245
    %2294 = vmatprep.subr.mxu0 0.0
    %2295 = vmatpush1.msra.mxu0 0.0
    %2296 = vmatprep.subr.mxu0 0.0
    %2297 = vmatpush1.msra.mxu0 0.0
    %2298 = vmatprep.subr.mxu0 0.0
    %2299 = vmatpush1.msra.mxu0 0.0
    %2300 = vmatprep.subr.mxu0 0.0
    %2301 = vmatpush1.msra.mxu0 0.0
    %2302 = vmatprep.subr.mxu0 0.0
    %2303 = vmatpush1.msra.mxu0 0.0
    %2304 = vmatprep.subr.mxu0 0.0
    %2305 = vmatpush1.msra.mxu0 0.0
    %2306 = vmatprep.subr.mxu0 0.0
    %2307 = vmatpush1.msra.mxu0 0.0
    %2308 = vmatprep.subr.mxu0 0.0
    %2309 = vmatpush1.msra.mxu0 0.0
    %2310 = vmatprep.subr.mxu0 0.0
    %2311 = vmatpush1.msra.mxu0 0.0
    %2312 = vmatprep.subr.mxu0 0.0
    %2313 = vmatpush1.msra.mxu0 0.0
    %2314 = vmatprep.subr.mxu0 0.0
    %2315 = vmatpush1.msra.mxu0 0.0
    %2316 = vmatprep.subr.mxu0 0.0
    %2317 = vmatpush1.msra.mxu0 0.0
    %2318 = vmatprep.subr.mxu0 0.0
    %2319 = vmatpush1.msra.mxu0 0.0
    %2320 = vmatprep.subr.mxu0 0.0
    %2321 = vmatpush1.msra.mxu0 0.0
    %2322 = vmatprep.subr.mxu0 0.0
    %2323 = vmatpush1.msra.mxu0 0.0
    %2324 = vmatprep.subr.mxu0 0.0
    %2325 = vmatpush1.msra.mxu0 0.0
    %2326 = vmatprep.subr.mxu0 0.0
    %2327 = vmatpush1.msra.mxu0 0.0
    %2328 = vmatprep.subr.mxu0 0.0
    %2329 = vmatpush1.msra.mxu0 0.0
    %2330 = vmatprep.subr.mxu0 0.0
    %2331 = vmatpush1.msra.mxu0 0.0
    %2332 = vmatprep.subr.mxu0 0.0
    %2333 = vmatpush1.msra.mxu0 0.0
    %2334 = vmatprep.subr.mxu0 0.0
    %2335 = vmatpush1.msra.mxu0 0.0
    %2336 = vmatprep.subr.mxu0 0.0
    %2337 = vmatpush1.msra.mxu0 0.0
    %2338 = vmatprep.subr.mxu0 0.0
    %2339 = vmatpush1.msra.mxu0 0.0
    %2340 = vmatprep.subr.mxu0 0.0
    %2341 = vmatpush1.msra.mxu0 0.0
    %2342 = vmatprep.mubr.f32.mxu0 0.0
    %2343 = vmatmul.mubr.f32.gmra.mrb[0].mxu0 %v2255
    %v2344 = vpop.f32.mrb[0].mxu0
    %v2345 = vadd.f32 0.0, %v2344
    %v2346 = vpop.f32.mrb[0].mxu0
    %2347 = vmatprep.mubr.f32.mxu0 0.0
    %2348 = vmatmul.mubr.f32.gmra.mrb[0].mxu0 %v2258
    %v2349 = vpop.f32.mrb[0].mxu0
    %v2350 = vadd.f32 0.0, %v2349
    %v2351 = vpop.f32.mrb[0].mxu0
    %2352 = vmatprep.mubr.f32.mxu0 0.0
    %2353 = vmatmul.mubr.f32.gmra.mrb[0].mxu0 %v2261
    %v2354 = vpop.f32.mrb[0].mxu0
    %v2355 = vadd.f32 0.0, %v2354
    %v2356 = vpop.f32.mrb[0].mxu0
    %2357 = vmatprep.mubr.f32.mxu0 0.0
    %2358 = vmatmul.mubr.f32.gmra.mrb[0].mxu0 %v2264
    %v2359 = vpop.f32.mrb[0].mxu0
    %v2360 = vadd.f32 0.0, %v2359
    %v2361 = vpop.f32.mrb[0].mxu0
    %2362 = vmatprep.mubr.f32.mxu0 0.0
    %2363 = vmatmul.mubr.f32.gmra.mrb[0].mxu0 %v2267
    %v2364 = vpop.f32.mrb[0].mxu0
    %v2365 = vadd.f32 0.0, %v2364
    %v2366 = vpop.f32.mrb[0].mxu0
    %2367 = vmatprep.mubr.f32.mxu0 0.0
    %2368 = vmatmul.mubr.f32.gmra.mrb[0].mxu0 %v2270
    %v2369 = vpop.f32.mrb[0].mxu0
    %v2370 = vadd.f32 0.0, %v2369
    %v2371 = vpop.f32.mrb[0].mxu0
    %2372 = vmatprep.mubr.f32.mxu0 0.0
    %2373 = vmatmul.mubr.f32.gmra.mrb[0].mxu0 %v2273
    %v2374 = vpop.f32.mrb[0].mxu0
    %v2375 = vadd.f32 0.0, %v2374
    %v2376 = vpop.f32.mrb[0].mxu0
    %2377 = vmatprep.mubr.f32.mxu0 0.0
    %2378 = vmatmul.mubr.f32.gmra.mrb[0].mxu0 %v2276
    %v2379 = vpop.f32.mrb[0].mxu0
    %v2380 = vadd.f32 0.0, %v2379
    %v2381 = vpop.f32.mrb[0].mxu0
    %2382 = vdwg.mxu0
    %v2383 = vld [vmem:[#allocation11 + $0x8] sm:$0xff]
    %v2385 = vsel %vm804, %v2184, 0
    %v2388 = vsel %vm804, %v2189, 0
    %v2391 = vsel %vm804, %v2194, 0
    %v2394 = vsel %vm804, %v2199, 0
    %v2397 = vsel %vm804, %v2204, 0
    %v2400 = vsel %vm804, %v2209, 0
    %v2403 = vsel %vm804, %v2214, 0
    %v2406 = vsel %vm804, %v2219, 0
    %v2409 = vsel %vm804, %v2345, 0
    %v2412 = vsel %vm804, %v2350, 0
    %v2415 = vsel %vm804, %v2355, 0
    %v2418 = vsel %vm804, %v2360, 0
    %v2421 = vsel %vm804, %v2365, 0
    %v2424 = vsel %vm804, %v2370, 0
    %v2427 = vsel %vm804, %v2375, 0
    %v2430 = vsel %vm804, %v2380, 0
    %2432 = vmatprep.subr.mxu0 0.0
    %2433 = vmatpush1.msra.mxu0 %v2383
    %2434 = vmatprep.subr.mxu0 0.0
    %2435 = vmatpush1.msra.mxu0 0.0
    %2436 = vmatprep.subr.mxu0 0.0
    %2437 = vmatpush1.msra.mxu0 0.0
    %2438 = vmatprep.subr.mxu0 0.0
    %2439 = vmatpush1.msra.mxu0 0.0
    %2440 = vmatprep.subr.mxu0 0.0
    %2441 = vmatpush1.msra.mxu0 0.0
    %2442 = vmatprep.subr.mxu0 0.0
    %2443 = vmatpush1.msra.mxu0 0.0
    %2444 = vmatprep.subr.mxu0 0.0
    %2445 = vmatpush1.msra.mxu0 0.0
    %2446 = vmatprep.subr.mxu0 0.0
    %2447 = vmatpush1.msra.mxu0 0.0
    %2448 = vmatprep.subr.mxu0 0.0
    %2449 = vmatpush1.msra.mxu0 0.0
    %2450 = vmatprep.subr.mxu0 0.0
    %2451 = vmatpush1.msra.mxu0 0.0
    %2452 = vmatprep.subr.mxu0 0.0
    %2453 = vmatpush1.msra.mxu0 0.0
    %2454 = vmatprep.subr.mxu0 0.0
    %2455 = vmatpush1.msra.mxu0 0.0
    %2456 = vmatprep.subr.mxu0 0.0
    %2457 = vmatpush1.msra.mxu0 0.0
    %2458 = vmatprep.subr.mxu0 0.0
    %2459 = vmatpush1.msra.mxu0 0.0
    %2460 = vmatprep.subr.mxu0 0.0
    %2461 = vmatpush1.msra.mxu0 0.0
    %2462 = vmatprep.subr.mxu0 0.0
    %2463 = vmatpush1.msra.mxu0 0.0
    %2464 = vmatprep.subr.mxu0 0.0
    %2465 = vmatpush1.msra.mxu0 0.0
    %2466 = vmatprep.subr.mxu0 0.0
    %2467 = vmatpush1.msra.mxu0 0.0
    %2468 = vmatprep.subr.mxu0 0.0
    %2469 = vmatpush1.msra.mxu0 0.0
    %2470 = vmatprep.subr.mxu0 0.0
    %2471 = vmatpush1.msra.mxu0 0.0
    %2472 = vmatprep.subr.mxu0 0.0
    %2473 = vmatpush1.msra.mxu0 0.0
    %2474 = vmatprep.subr.mxu0 0.0
    %2475 = vmatpush1.msra.mxu0 0.0
    %2476 = vmatprep.subr.mxu0 0.0
    %2477 = vmatpush1.msra.mxu0 0.0
    %2478 = vmatprep.subr.mxu0 0.0
    %2479 = vmatpush1.msra.mxu0 0.0
    %2480 = vmatprep.subr.mxu0 0.0
    %2481 = vmatpush1.msra.mxu0 0.0
    %2482 = vmatprep.subr.mxu0 0.0
    %2483 = vmatpush1.msra.mxu0 0.0
    %2484 = vmatprep.subr.mxu0 0.0
    %2485 = vmatpush1.msra.mxu0 0.0
    %2486 = vmatprep.subr.mxu0 0.0
    %2487 = vmatpush1.msra.mxu0 0.0
    %2488 = vmatprep.subr.mxu0 0.0
    %2489 = vmatpush1.msra.mxu0 0.0
    %2490 = vmatprep.subr.mxu0 0.0
    %2491 = vmatpush1.msra.mxu0 0.0
    %2492 = vmatprep.subr.mxu0 0.0
    %2493 = vmatpush1.msra.mxu0 0.0
    %2494 = vmatprep.subr.mxu0 0.0
    %2495 = vmatpush1.msra.mxu0 0.0
    %2496 = vmatprep.mubr.f32.mxu0 0.0
    %2497 = vmatmul.mubr.f32.gmra.mrb[0].mxu0 %v2385
    %v2498 = vpop.f32.mrb[0].mxu0
    %v2499 = vadd.f32 0.0, %v2498
    %v2500 = vpop.f32.mrb[0].mxu0
    %2501 = vmatprep.mubr.f32.mxu0 0.0
    %2502 = vmatmul.mubr.f32.gmra.mrb[0].mxu0 %v2388
    %v2503 = vpop.f32.mrb[0].mxu0
    %v2504 = vadd.f32 0.0, %v2503
    %v2505 = vpop.f32.mrb[0].mxu0
    %2506 = vmatprep.mubr.f32.mxu0 0.0
    %2507 = vmatmul.mubr.f32.gmra.mrb[0].mxu0 %v2391
    %v2508 = vpop.f32.mrb[0].mxu0
    %v2509 = vadd.f32 0.0, %v2508
    %v2510 = vpop.f32.mrb[0].mxu0
    %2511 = vmatprep.mubr.f32.mxu0 0.0
    %2512 = vmatmul.mubr.f32.gmra.mrb[0].mxu0 %v2394
    %v2513 = vpop.f32.mrb[0].mxu0
    %v2514 = vadd.f32 0.0, %v2513
    %v2515 = vpop.f32.mrb[0].mxu0
    %2516 = vmatprep.mubr.f32.mxu0 0.0
    %2517 = vmatmul.mubr.f32.gmra.mrb[0].mxu0 %v2397
    %v2518 = vpop.f32.mrb[0].mxu0
    %v2519 = vadd.f32 0.0, %v2518
    %v2520 = vpop.f32.mrb[0].mxu0
    %2521 = vmatprep.mubr.f32.mxu0 0.0
    %2522 = vmatmul.mubr.f32.gmra.mrb[0].mxu0 %v2400
    %v2523 = vpop.f32.mrb[0].mxu0
    %v2524 = vadd.f32 0.0, %v2523
    %v2525 = vpop.f32.mrb[0].mxu0
    %2526 = vmatprep.mubr.f32.mxu0 0.0
    %2527 = vmatmul.mubr.f32.gmra.mrb[0].mxu0 %v2403
    %v2528 = vpop.f32.mrb[0].mxu0
    %v2529 = vadd.f32 0.0, %v2528
    %v2530 = vpop.f32.mrb[0].mxu0
    %2531 = vmatprep.mubr.f32.mxu0 0.0
    %2532 = vmatmul.mubr.f32.gmra.mrb[0].mxu0 %v2406
    %v2533 = vpop.f32.mrb[0].mxu0
    %v2534 = vadd.f32 0.0, %v2533
    %v2535 = vpop.f32.mrb[0].mxu0
    %2536 = vmatprep.mubr.f32.mxu0 0.0
    %2537 = vmatmul.mubr.f32.gmra.mrb[0].mxu0 %v2409
    %v2538 = vpop.f32.mrb[0].mxu0
    %v2539 = vadd.f32 0.0, %v2538
    %v2540 = vpop.f32.mrb[0].mxu0
    %2541 = vmatprep.mubr.f32.mxu0 0.0
    %2542 = vmatmul.mubr.f32.gmra.mrb[0].mxu0 %v2412
    %v2543 = vpop.f32.mrb[0].mxu0
    %v2544 = vadd.f32 0.0, %v2543
    %v2545 = vpop.f32.mrb[0].mxu0
    %2546 = vmatprep.mubr.f32.mxu0 0.0
    %2547 = vmatmul.mubr.f32.gmra.mrb[0].mxu0 %v2415
    %v2548 = vpop.f32.mrb[0].mxu0
    %v2549 = vadd.f32 0.0, %v2548
    %v2550 = vpop.f32.mrb[0].mxu0
    %2551 = vmatprep.mubr.f32.mxu0 0.0
    %2552 = vmatmul.mubr.f32.gmra.mrb[0].mxu0 %v2418
    %v2553 = vpop.f32.mrb[0].mxu0
    %v2554 = vadd.f32 0.0, %v2553
    %v2555 = vpop.f32.mrb[0].mxu0
    %2556 = vmatprep.mubr.f32.mxu0 0.0
    %2557 = vmatmul.mubr.f32.gmra.mrb[0].mxu0 %v2421
    %v2558 = vpop.f32.mrb[0].mxu0
    %v2559 = vadd.f32 0.0, %v2558
    %v2560 = vpop.f32.mrb[0].mxu0
    %2561 = vmatprep.mubr.f32.mxu0 0.0
    %2562 = vmatmul.mubr.f32.gmra.mrb[0].mxu0 %v2424
    %v2563 = vpop.f32.mrb[0].mxu0
    %v2564 = vadd.f32 0.0, %v2563
    %v2565 = vpop.f32.mrb[0].mxu0
    %2566 = vmatprep.mubr.f32.mxu0 0.0
    %2567 = vmatmul.mubr.f32.gmra.mrb[0].mxu0 %v2427
    %v2568 = vpop.f32.mrb[0].mxu0
    %v2569 = vadd.f32 0.0, %v2568
    %v2570 = vpop.f32.mrb[0].mxu0
    %2571 = vmatprep.mubr.f32.mxu0 0.0
    %2572 = vmatmul.mubr.f32.gmra.mrb[0].mxu0 %v2430
    %v2573 = vpop.f32.mrb[0].mxu0
    %v2574 = vadd.f32 0.0, %v2573
    %v2575 = vpop.f32.mrb[0].mxu0
    %2576 = vdwg.mxu0
    %v2578 = vsel %vm804, %v1379, 0
    %v2581 = vsel %vm804, %v1384, 0
    %v2584 = vsel %vm804, %v1389, 0
    %v2587 = vsel %vm804, %v1394, 0
    %v2590 = vsel %vm804, %v1399, 0
    %v2593 = vsel %vm804, %v1404, 0
    %v2596 = vsel %vm804, %v1409, 0
    %v2599 = vsel %vm804, %v1414, 0
    %v2602 = vsel %vm804, %v1508, 0
    %v2605 = vsel %vm804, %v1513, 0
    %v2608 = vsel %vm804, %v1518, 0
    %v2611 = vsel %vm804, %v1523, 0
    %v2614 = vsel %vm804, %v1528, 0
    %v2617 = vsel %vm804, %v1533, 0
    %v2620 = vsel %vm804, %v1538, 0
    %v2623 = vsel %vm804, %v1543, 0
    %2625 = vmatprep.subr.mxu0 0.0
    %2626 = vmatpush1.msra.mxu0 %v1546
    %2627 = vmatprep.subr.mxu0 0.0
    %2628 = vmatpush1.msra.mxu0 0.0
    %2629 = vmatprep.subr.mxu0 0.0
    %2630 = vmatpush1.msra.mxu0 0.0
    %2631 = vmatprep.subr.mxu0 0.0
    %2632 = vmatpush1.msra.mxu0 0.0
    %2633 = vmatprep.subr.mxu0 0.0
    %2634 = vmatpush1.msra.mxu0 0.0
    %2635 = vmatprep.subr.mxu0 0.0
    %2636 = vmatpush1.msra.mxu0 0.0
    %2637 = vmatprep.subr.mxu0 0.0
    %2638 = vmatpush1.msra.mxu0 0.0
    %2639 = vmatprep.subr.mxu0 0.0
    %2640 = vmatpush1.msra.mxu0 0.0
    %2641 = vmatprep.subr.mxu0 0.0
    %2642 = vmatpush1.msra.mxu0 0.0
    %2643 = vmatprep.subr.mxu0 0.0
    %2644 = vmatpush1.msra.mxu0 0.0
    %2645 = vmatprep.subr.mxu0 0.0
    %2646 = vmatpush1.msra.mxu0 0.0
    %2647 = vmatprep.subr.mxu0 0.0
    %2648 = vmatpush1.msra.mxu0 0.0
    %2649 = vmatprep.subr.mxu0 0.0
    %2650 = vmatpush1.msra.mxu0 0.0
    %2651 = vmatprep.subr.mxu0 0.0
    %2652 = vmatpush1.msra.mxu0 0.0
    %2653 = vmatprep.subr.mxu0 0.0
    %2654 = vmatpush1.msra.mxu0 0.0
    %2655 = vmatprep.subr.mxu0 0.0
    %2656 = vmatpush1.msra.mxu0 0.0
    %2657 = vmatprep.subr.mxu0 0.0
    %2658 = vmatpush1.msra.mxu0 0.0
    %2659 = vmatprep.subr.mxu0 0.0
    %2660 = vmatpush1.msra.mxu0 0.0
    %2661 = vmatprep.subr.mxu0 0.0
    %2662 = vmatpush1.msra.mxu0 0.0
    %2663 = vmatprep.subr.mxu0 0.0
    %2664 = vmatpush1.msra.mxu0 0.0
    %2665 = vmatprep.subr.mxu0 0.0
    %2666 = vmatpush1.msra.mxu0 0.0
    %2667 = vmatprep.subr.mxu0 0.0
    %2668 = vmatpush1.msra.mxu0 0.0
    %2669 = vmatprep.subr.mxu0 0.0
    %2670 = vmatpush1.msra.mxu0 0.0
    %2671 = vmatprep.subr.mxu0 0.0
    %2672 = vmatpush1.msra.mxu0 0.0
    %2673 = vmatprep.subr.mxu0 0.0
    %2674 = vmatpush1.msra.mxu0 0.0
    %2675 = vmatprep.subr.mxu0 0.0
    %2676 = vmatpush1.msra.mxu0 0.0
    %2677 = vmatprep.subr.mxu0 0.0
    %2678 = vmatpush1.msra.mxu0 0.0
    %2679 = vmatprep.subr.mxu0 0.0
    %2680 = vmatpush1.msra.mxu0 0.0
    %2681 = vmatprep.subr.mxu0 0.0
    %2682 = vmatpush1.msra.mxu0 0.0
    %2683 = vmatprep.subr.mxu0 0.0
    %2684 = vmatpush1.msra.mxu0 0.0
    %2685 = vmatprep.subr.mxu0 0.0
    %2686 = vmatpush1.msra.mxu0 0.0
    %2687 = vmatprep.subr.mxu0 0.0
    %2688 = vmatpush1.msra.mxu0 0.0
    %2689 = vmatprep.mubr.f32.mxu0 0.0
    %2690 = vmatmul.mubr.f32.gmra.mrb[0].mxu0 %v2578
    %v2691 = vpop.f32.mrb[0].mxu0
    %v2692 = vadd.f32 %v2499, %v2691
    %v2693 = vpop.f32.mrb[0].mxu0
    %2694 = vmatprep.mubr.f32.mxu0 0.0
    %2695 = vmatmul.mubr.f32.gmra.mrb[0].mxu0 %v2581
    %v2696 = vpop.f32.mrb[0].mxu0
    %v2697 = vadd.f32 %v2504, %v2696
    %v2698 = vpop.f32.mrb[0].mxu0
    %2699 = vmatprep.mubr.f32.mxu0 0.0
    %2700 = vmatmul.mubr.f32.gmra.mrb[0].mxu0 %v2584
    %v2701 = vpop.f32.mrb[0].mxu0
    %v2702 = vadd.f32 %v2509, %v2701
    %v2703 = vpop.f32.mrb[0].mxu0
    %2704 = vmatprep.mubr.f32.mxu0 0.0
    %2705 = vmatmul.mubr.f32.gmra.mrb[0].mxu0 %v2587
    %v2706 = vpop.f32.mrb[0].mxu0
    %v2707 = vadd.f32 %v2514, %v2706
    %v2708 = vpop.f32.mrb[0].mxu0
    %2709 = vmatprep.mubr.f32.mxu0 0.0
    %2710 = vmatmul.mubr.f32.gmra.mrb[0].mxu0 %v2590
    %v2711 = vpop.f32.mrb[0].mxu0
    %v2712 = vadd.f32 %v2519, %v2711
    %v2713 = vpop.f32.mrb[0].mxu0
    %2714 = vmatprep.mubr.f32.mxu0 0.0
    %2715 = vmatmul.mubr.f32.gmra.mrb[0].mxu0 %v2593
    %v2716 = vpop.f32.mrb[0].mxu0
    %v2717 = vadd.f32 %v2524, %v2716
    %v2718 = vpop.f32.mrb[0].mxu0
    %2719 = vmatprep.mubr.f32.mxu0 0.0
    %2720 = vmatmul.mubr.f32.gmra.mrb[0].mxu0 %v2596
    %v2721 = vpop.f32.mrb[0].mxu0
    %v2722 = vadd.f32 %v2529, %v2721
    %v2723 = vpop.f32.mrb[0].mxu0
    %2724 = vmatprep.mubr.f32.mxu0 0.0
    %2725 = vmatmul.mubr.f32.gmra.mrb[0].mxu0 %v2599
    %v2726 = vpop.f32.mrb[0].mxu0
    %v2727 = vadd.f32 %v2534, %v2726
    %v2728 = vpop.f32.mrb[0].mxu0
    %2729 = vmatprep.mubr.f32.mxu0 0.0
    %2730 = vmatmul.mubr.f32.gmra.mrb[0].mxu0 %v2602
    %v2731 = vpop.f32.mrb[0].mxu0
    %v2732 = vadd.f32 %v2539, %v2731
    %v2733 = vpop.f32.mrb[0].mxu0
    %2734 = vmatprep.mubr.f32.mxu0 0.0
    %2735 = vmatmul.mubr.f32.gmra.mrb[0].mxu0 %v2605
    %v2736 = vpop.f32.mrb[0].mxu0
    %v2737 = vadd.f32 %v2544, %v2736
    %v2738 = vpop.f32.mrb[0].mxu0
    %2739 = vmatprep.mubr.f32.mxu0 0.0
    %2740 = vmatmul.mubr.f32.gmra.mrb[0].mxu0 %v2608
    %v2741 = vpop.f32.mrb[0].mxu0
    %v2742 = vadd.f32 %v2549, %v2741
    %v2743 = vpop.f32.mrb[0].mxu0
    %2744 = vmatprep.mubr.f32.mxu0 0.0
    %2745 = vmatmul.mubr.f32.gmra.mrb[0].mxu0 %v2611
    %v2746 = vpop.f32.mrb[0].mxu0
    %v2747 = vadd.f32 %v2554, %v2746
    %v2748 = vpop.f32.mrb[0].mxu0
    %2749 = vmatprep.mubr.f32.mxu0 0.0
    %2750 = vmatmul.mubr.f32.gmra.mrb[0].mxu0 %v2614
    %v2751 = vpop.f32.mrb[0].mxu0
    %v2752 = vadd.f32 %v2559, %v2751
    %v2753 = vpop.f32.mrb[0].mxu0
    %2754 = vmatprep.mubr.f32.mxu0 0.0
    %2755 = vmatmul.mubr.f32.gmra.mrb[0].mxu0 %v2617
    %v2756 = vpop.f32.mrb[0].mxu0
    %v2757 = vadd.f32 %v2564, %v2756
    %v2758 = vpop.f32.mrb[0].mxu0
    %2759 = vmatprep.mubr.f32.mxu0 0.0
    %2760 = vmatmul.mubr.f32.gmra.mrb[0].mxu0 %v2620
    %v2761 = vpop.f32.mrb[0].mxu0
    %v2762 = vadd.f32 %v2569, %v2761
    %v2763 = vpop.f32.mrb[0].mxu0
    %2764 = vmatprep.mubr.f32.mxu0 0.0
    %2765 = vmatmul.mubr.f32.gmra.mrb[0].mxu0 %v2623
    %v2766 = vpop.f32.mrb[0].mxu0
    %v2767 = vadd.f32 %v2574, %v2766
    %v2768 = vpop.f32.mrb[0].mxu0
    %2769 = vdwg.mxu0
    %2770 = vrot.lane.b32.xlu0 %v380, 112
    %v2771 = vpop.permute.xlu0 %2770
    %2772 = vrot.lane.b32.xlu0 %v381, 112
    %v2773 = vpop.permute.xlu0 %2772
    %2774 = vrot.lane.b32.xlu0 %v382, 112
    %v2775 = vpop.permute.xlu0 %2774
    %2776 = vrot.lane.b32.xlu0 %v383, 112
    %v2777 = vpop.permute.xlu0 %2776
    %2778 = vrot.lane.b32.xlu0 %v384, 112
    %v2779 = vpop.permute.xlu0 %2778
    %2780 = vrot.lane.b32.xlu0 %v385, 112
    %v2781 = vpop.permute.xlu0 %2780
    %2782 = vrot.lane.b32.xlu0 %v386, 112
    %v2783 = vpop.permute.xlu0 %2782
    %2784 = vrot.lane.b32.xlu0 %v387, 112
    %v2785 = vpop.permute.xlu0 %2784
    %2786 = vrot.lane.b32.xlu0 %v522, 112
    %v2787 = vpop.permute.xlu0 %2786
    %2788 = vrot.lane.b32.xlu0 %v527, 112
    %v2789 = vpop.permute.xlu0 %2788
    %2790 = vrot.lane.b32.xlu0 %v532, 112
    %v2791 = vpop.permute.xlu0 %2790
    %2792 = vrot.lane.b32.xlu0 %v537, 112
    %v2793 = vpop.permute.xlu0 %2792
    %2794 = vrot.lane.b32.xlu0 %v542, 112
    %v2795 = vpop.permute.xlu0 %2794
    %2796 = vrot.lane.b32.xlu0 %v547, 112
    %v2797 = vpop.permute.xlu0 %2796
    %2798 = vrot.lane.b32.xlu0 %v552, 112
    %v2799 = vpop.permute.xlu0 %2798
    %2800 = vrot.lane.b32.xlu0 %v557, 112
    %v2801 = vpop.permute.xlu0 %2800
    %v2802 = vsel %vm804, %v2771, 0
    %v2804 = vsel %vm804, %v2773, 0
    %v2806 = vsel %vm804, %v2775, 0
    %v2808 = vsel %vm804, %v2777, 0
    %v2810 = vsel %vm804, %v2779, 0
    %v2812 = vsel %vm804, %v2781, 0
    %v2814 = vsel %vm804, %v2783, 0
    %v2816 = vsel %vm804, %v2785, 0
    %v2818 = vsel %vm804, %v2787, 0
    %v2820 = vsel %vm804, %v2789, 0
    %v2822 = vsel %vm804, %v2791, 0
    %v2824 = vsel %vm804, %v2793, 0
    %v2826 = vsel %vm804, %v2795, 0
    %v2828 = vsel %vm804, %v2797, 0
    %v2830 = vsel %vm804, %v2799, 0
    %v2832 = vsel %vm804, %v2801, 0
    %2834 = vmatprep.subr.mxu0 0.0
    %2835 = vmatpush1.xpose.msra.mxu0 %v2818
    %2836 = vmatprep.subr.mxu0 0.0
    %2837 = vmatpush1.xpose.msra.mxu0 %v2820
    %2838 = vmatprep.subr.mxu0 0.0
    %2839 = vmatpush1.xpose.msra.mxu0 %v2822
    %2840 = vmatprep.subr.mxu0 0.0
    %2841 = vmatpush1.xpose.msra.mxu0 %v2824
    %2842 = vmatprep.subr.mxu0 0.0
    %2843 = vmatpush1.xpose.msra.mxu0 %v2826
    %2844 = vmatprep.subr.mxu0 0.0
    %2845 = vmatpush1.xpose.msra.mxu0 %v2828
    %2846 = vmatprep.subr.mxu0 0.0
    %2847 = vmatpush1.xpose.msra.mxu0 %v2830
    %2848 = vmatprep.subr.mxu0 0.0
    %2849 = vmatpush1.xpose.msra.mxu0 %v2832
    %2850 = vmatprep.subr.mxu0 0.0
    %2851 = vmatpush1.xpose.msra.mxu0 0.0
    %2852 = vmatprep.subr.mxu0 0.0
    %2853 = vmatpush1.xpose.msra.mxu0 0.0
    %2854 = vmatprep.subr.mxu0 0.0
    %2855 = vmatpush1.xpose.msra.mxu0 0.0
    %2856 = vmatprep.subr.mxu0 0.0
    %2857 = vmatpush1.xpose.msra.mxu0 0.0
    %2858 = vmatprep.subr.mxu0 0.0
    %2859 = vmatpush1.xpose.msra.mxu0 0.0
    %2860 = vmatprep.subr.mxu0 0.0
    %2861 = vmatpush1.xpose.msra.mxu0 0.0
    %2862 = vmatprep.subr.mxu0 0.0
    %2863 = vmatpush1.xpose.msra.mxu0 0.0
    %2864 = vmatprep.subr.mxu0 0.0
    %2865 = vmatpush1.xpose.msra.mxu0 0.0
    %2866 = vmatprep.subr.mxu0 0.0
    %2867 = vmatpush1.xpose.msra.mxu0 0.0
    %2868 = vmatprep.subr.mxu0 0.0
    %2869 = vmatpush1.xpose.msra.mxu0 0.0
    %2870 = vmatprep.subr.mxu0 0.0
    %2871 = vmatpush1.xpose.msra.mxu0 0.0
    %2872 = vmatprep.subr.mxu0 0.0
    %2873 = vmatpush1.xpose.msra.mxu0 0.0
    %2874 = vmatprep.subr.mxu0 0.0
    %2875 = vmatpush1.xpose.msra.mxu0 0.0
    %2876 = vmatprep.subr.mxu0 0.0
    %2877 = vmatpush1.xpose.msra.mxu0 0.0
    %2878 = vmatprep.subr.mxu0 0.0
    %2879 = vmatpush1.xpose.msra.mxu0 0.0
    %2880 = vmatprep.subr.mxu0 0.0
    %2881 = vmatpush1.xpose.msra.mxu0 0.0
    %2882 = vmatprep.subr.mxu0 0.0
    %2883 = vmatpush1.xpose.msra.mxu0 0.0
    %2884 = vmatprep.subr.mxu0 0.0
    %2885 = vmatpush1.xpose.msra.mxu0 0.0
    %2886 = vmatprep.subr.mxu0 0.0
    %2887 = vmatpush1.xpose.msra.mxu0 0.0
    %2888 = vmatprep.subr.mxu0 0.0
    %2889 = vmatpush1.xpose.msra.mxu0 0.0
    %2890 = vmatprep.subr.mxu0 0.0
    %2891 = vmatpush1.xpose.msra.mxu0 0.0
    %2892 = vmatprep.subr.mxu0 0.0
    %2893 = vmatpush1.xpose.msra.mxu0 0.0
    %2894 = vmatprep.subr.mxu0 0.0
    %2895 = vmatpush1.xpose.msra.mxu0 0.0
    %2896 = vmatprep.subr.mxu0 0.0
    %2897 = vmatpush1.xpose.msra.mxu0 0.0
    %2898 = vmatprep.mubr.f32.mxu0 0.0
    %2899 = vmatmul.mubr.f32.gmra.mrb[0].mxu0 %v2802
    %v2900 = vpop.f32.mrb[0].mxu0
    %v2901 = vadd.f32 0.0, %v2900
    %v2902 = vpop.f32.mrb[0].mxu0
    %2903 = vmatprep.mubr.f32.mxu0 0.0
    %2904 = vmatmul.mubr.f32.gmra.mrb[0].mxu0 %v2804
    %v2905 = vpop.f32.mrb[0].mxu0
    %v2906 = vadd.f32 0.0, %v2905
    %v2907 = vpop.f32.mrb[0].mxu0
    %2908 = vmatprep.mubr.f32.mxu0 0.0
    %2909 = vmatmul.mubr.f32.gmra.mrb[0].mxu0 %v2806
    %v2910 = vpop.f32.mrb[0].mxu0
    %v2911 = vadd.f32 0.0, %v2910
    %v2912 = vpop.f32.mrb[0].mxu0
    %2913 = vmatprep.mubr.f32.mxu0 0.0
    %2914 = vmatmul.mubr.f32.gmra.mrb[0].mxu0 %v2808
    %v2915 = vpop.f32.mrb[0].mxu0
    %v2916 = vadd.f32 0.0, %v2915
    %v2917 = vpop.f32.mrb[0].mxu0
    %2918 = vmatprep.mubr.f32.mxu0 0.0
    %2919 = vmatmul.mubr.f32.gmra.mrb[0].mxu0 %v2810
    %v2920 = vpop.f32.mrb[0].mxu0
    %v2921 = vadd.f32 0.0, %v2920
    %v2922 = vpop.f32.mrb[0].mxu0
    %2923 = vmatprep.mubr.f32.mxu0 0.0
    %2924 = vmatmul.mubr.f32.gmra.mrb[0].mxu0 %v2812
    %v2925 = vpop.f32.mrb[0].mxu0
    %v2926 = vadd.f32 0.0, %v2925
    %v2927 = vpop.f32.mrb[0].mxu0
    %2928 = vmatprep.mubr.f32.mxu0 0.0
    %2929 = vmatmul.mubr.f32.gmra.mrb[0].mxu0 %v2814
    %v2930 = vpop.f32.mrb[0].mxu0
    %v2931 = vadd.f32 0.0, %v2930
    %v2932 = vpop.f32.mrb[0].mxu0
    %2933 = vmatprep.mubr.f32.mxu0 0.0
    %2934 = vmatmul.mubr.f32.gmra.mrb[0].mxu0 %v2816
    %v2935 = vpop.f32.mrb[0].mxu0
    %v2936 = vadd.f32 0.0, %v2935
    %v2937 = vpop.f32.mrb[0].mxu0
    %2938 = vdwg.mxu0
    %2939 = vrot.lane.b32.xlu0 %v388, 112
    %v2940 = vpop.permute.xlu0 %2939
    %2941 = vrot.lane.b32.xlu0 %v389, 112
    %v2942 = vpop.permute.xlu0 %2941
    %2943 = vrot.lane.b32.xlu0 %v390, 112
    %v2944 = vpop.permute.xlu0 %2943
    %2945 = vrot.lane.b32.xlu0 %v391, 112
    %v2946 = vpop.permute.xlu0 %2945
    %2947 = vrot.lane.b32.xlu0 %v392, 112
    %v2948 = vpop.permute.xlu0 %2947
    %2949 = vrot.lane.b32.xlu0 %v393, 112
    %v2950 = vpop.permute.xlu0 %2949
    %2951 = vrot.lane.b32.xlu0 %v394, 112
    %v2952 = vpop.permute.xlu0 %2951
    %2953 = vrot.lane.b32.xlu0 %v395, 112
    %v2954 = vpop.permute.xlu0 %2953
    %2955 = vrot.lane.b32.xlu0 %v562, 112
    %v2956 = vpop.permute.xlu0 %2955
    %2957 = vrot.lane.b32.xlu0 %v567, 112
    %v2958 = vpop.permute.xlu0 %2957
    %2959 = vrot.lane.b32.xlu0 %v572, 112
    %v2960 = vpop.permute.xlu0 %2959
    %2961 = vrot.lane.b32.xlu0 %v577, 112
    %v2962 = vpop.permute.xlu0 %2961
    %2963 = vrot.lane.b32.xlu0 %v582, 112
    %v2964 = vpop.permute.xlu0 %2963
    %2965 = vrot.lane.b32.xlu0 %v587, 112
    %v2966 = vpop.permute.xlu0 %2965
    %2967 = vrot.lane.b32.xlu0 %v592, 112
    %v2968 = vpop.permute.xlu0 %2967
    %2969 = vrot.lane.b32.xlu0 %v597, 112
    %v2970 = vpop.permute.xlu0 %2969
    %v2971 = vsel %vm804, %v2940, 0
    %v2973 = vsel %vm804, %v2942, 0
    %v2975 = vsel %vm804, %v2944, 0
    %v2977 = vsel %vm804, %v2946, 0
    %v2979 = vsel %vm804, %v2948, 0
    %v2981 = vsel %vm804, %v2950, 0
    %v2983 = vsel %vm804, %v2952, 0
    %v2985 = vsel %vm804, %v2954, 0
    %v2987 = vsel %vm804, %v2956, 0
    %v2989 = vsel %vm804, %v2958, 0
    %v2991 = vsel %vm804, %v2960, 0
    %v2993 = vsel %vm804, %v2962, 0
    %v2995 = vsel %vm804, %v2964, 0
    %v2997 = vsel %vm804, %v2966, 0
    %v2999 = vsel %vm804, %v2968, 0
    %v3001 = vsel %vm804, %v2970, 0
    %3003 = vmatprep.subr.mxu0 0.0
    %3004 = vmatpush1.xpose.msra.mxu0 %v2987
    %3005 = vmatprep.subr.mxu0 0.0
    %3006 = vmatpush1.xpose.msra.mxu0 %v2989
    %3007 = vmatprep.subr.mxu0 0.0
    %3008 = vmatpush1.xpose.msra.mxu0 %v2991
    %3009 = vmatprep.subr.mxu0 0.0
    %3010 = vmatpush1.xpose.msra.mxu0 %v2993
    %3011 = vmatprep.subr.mxu0 0.0
    %3012 = vmatpush1.xpose.msra.mxu0 %v2995
    %3013 = vmatprep.subr.mxu0 0.0
    %3014 = vmatpush1.xpose.msra.mxu0 %v2997
    %3015 = vmatprep.subr.mxu0 0.0
    %3016 = vmatpush1.xpose.msra.mxu0 %v2999
    %3017 = vmatprep.subr.mxu0 0.0
    %3018 = vmatpush1.xpose.msra.mxu0 %v3001
    %3019 = vmatprep.subr.mxu0 0.0
    %3020 = vmatpush1.xpose.msra.mxu0 0.0
    %3021 = vmatprep.subr.mxu0 0.0
    %3022 = vmatpush1.xpose.msra.mxu0 0.0
    %3023 = vmatprep.subr.mxu0 0.0
    %3024 = vmatpush1.xpose.msra.mxu0 0.0
    %3025 = vmatprep.subr.mxu0 0.0
    %3026 = vmatpush1.xpose.msra.mxu0 0.0
    %3027 = vmatprep.subr.mxu0 0.0
    %3028 = vmatpush1.xpose.msra.mxu0 0.0
    %3029 = vmatprep.subr.mxu0 0.0
    %3030 = vmatpush1.xpose.msra.mxu0 0.0
    %3031 = vmatprep.subr.mxu0 0.0
    %3032 = vmatpush1.xpose.msra.mxu0 0.0
    %3033 = vmatprep.subr.mxu0 0.0
    %3034 = vmatpush1.xpose.msra.mxu0 0.0
    %3035 = vmatprep.subr.mxu0 0.0
    %3036 = vmatpush1.xpose.msra.mxu0 0.0
    %3037 = vmatprep.subr.mxu0 0.0
    %3038 = vmatpush1.xpose.msra.mxu0 0.0
    %3039 = vmatprep.subr.mxu0 0.0
    %3040 = vmatpush1.xpose.msra.mxu0 0.0
    %3041 = vmatprep.subr.mxu0 0.0
    %3042 = vmatpush1.xpose.msra.mxu0 0.0
    %3043 = vmatprep.subr.mxu0 0.0
    %3044 = vmatpush1.xpose.msra.mxu0 0.0
    %3045 = vmatprep.subr.mxu0 0.0
    %3046 = vmatpush1.xpose.msra.mxu0 0.0
    %3047 = vmatprep.subr.mxu0 0.0
    %3048 = vmatpush1.xpose.msra.mxu0 0.0
    %3049 = vmatprep.subr.mxu0 0.0
    %3050 = vmatpush1.xpose.msra.mxu0 0.0
    %3051 = vmatprep.subr.mxu0 0.0
    %3052 = vmatpush1.xpose.msra.mxu0 0.0
    %3053 = vmatprep.subr.mxu0 0.0
    %3054 = vmatpush1.xpose.msra.mxu0 0.0
    %3055 = vmatprep.subr.mxu0 0.0
    %3056 = vmatpush1.xpose.msra.mxu0 0.0
    %3057 = vmatprep.subr.mxu0 0.0
    %3058 = vmatpush1.xpose.msra.mxu0 0.0
    %3059 = vmatprep.subr.mxu0 0.0
    %3060 = vmatpush1.xpose.msra.mxu0 0.0
    %3061 = vmatprep.subr.mxu0 0.0
    %3062 = vmatpush1.xpose.msra.mxu0 0.0
    %3063 = vmatprep.subr.mxu0 0.0
    %3064 = vmatpush1.xpose.msra.mxu0 0.0
    %3065 = vmatprep.subr.mxu0 0.0
    %3066 = vmatpush1.xpose.msra.mxu0 0.0
    %3067 = vmatprep.mubr.f32.mxu0 0.0
    %3068 = vmatmul.mubr.f32.gmra.mrb[0].mxu0 %v2971
    %v3069 = vpop.f32.mrb[0].mxu0
    %v3070 = vadd.f32 0.0, %v3069
    %v3071 = vpop.f32.mrb[0].mxu0
    %3072 = vmatprep.mubr.f32.mxu0 0.0
    %3073 = vmatmul.mubr.f32.gmra.mrb[0].mxu0 %v2973
    %v3074 = vpop.f32.mrb[0].mxu0
    %v3075 = vadd.f32 0.0, %v3074
    %v3076 = vpop.f32.mrb[0].mxu0
    %3077 = vmatprep.mubr.f32.mxu0 0.0
    %3078 = vmatmul.mubr.f32.gmra.mrb[0].mxu0 %v2975
    %v3079 = vpop.f32.mrb[0].mxu0
    %v3080 = vadd.f32 0.0, %v3079
    %v3081 = vpop.f32.mrb[0].mxu0
    %3082 = vmatprep.mubr.f32.mxu0 0.0
    %3083 = vmatmul.mubr.f32.gmra.mrb[0].mxu0 %v2977
    %v3084 = vpop.f32.mrb[0].mxu0
    %v3085 = vadd.f32 0.0, %v3084
    %v3086 = vpop.f32.mrb[0].mxu0
    %3087 = vmatprep.mubr.f32.mxu0 0.0
    %3088 = vmatmul.mubr.f32.gmra.mrb[0].mxu0 %v2979
    %v3089 = vpop.f32.mrb[0].mxu0
    %v3090 = vadd.f32 0.0, %v3089
    %v3091 = vpop.f32.mrb[0].mxu0
    %3092 = vmatprep.mubr.f32.mxu0 0.0
    %3093 = vmatmul.mubr.f32.gmra.mrb[0].mxu0 %v2981
    %v3094 = vpop.f32.mrb[0].mxu0
    %v3095 = vadd.f32 0.0, %v3094
    %v3096 = vpop.f32.mrb[0].mxu0
    %3097 = vmatprep.mubr.f32.mxu0 0.0
    %3098 = vmatmul.mubr.f32.gmra.mrb[0].mxu0 %v2983
    %v3099 = vpop.f32.mrb[0].mxu0
    %v3100 = vadd.f32 0.0, %v3099
    %v3101 = vpop.f32.mrb[0].mxu0
    %3102 = vmatprep.mubr.f32.mxu0 0.0
    %3103 = vmatmul.mubr.f32.gmra.mrb[0].mxu0 %v2985
    %v3104 = vpop.f32.mrb[0].mxu0
    %v3105 = vadd.f32 0.0, %v3104
    %v3106 = vpop.f32.mrb[0].mxu0
    %3107 = vdwg.mxu0
    %v3108 = vsel %vm1111, %v2901, -inf
    %3109 = vmax.xlane.f32.xlu0 %v3108
    %v3110 = vpop.xlane.xlu0 %3109
    %v3111 = vsel %vm1111, %v2906, -inf
    %3112 = vmax.xlane.f32.xlu0 %v3111
    %v3113 = vpop.xlane.xlu0 %3112
    %v3114 = vsel %vm1111, %v2911, -inf
    %3115 = vmax.xlane.f32.xlu0 %v3114
    %v3116 = vpop.xlane.xlu0 %3115
    %v3117 = vsel %vm1111, %v2916, -inf
    %3118 = vmax.xlane.f32.xlu0 %v3117
    %v3119 = vpop.xlane.xlu0 %3118
    %v3120 = vsel %vm1111, %v2921, -inf
    %3121 = vmax.xlane.f32.xlu0 %v3120
    %v3122 = vpop.xlane.xlu0 %3121
    %v3123 = vsel %vm1111, %v2926, -inf
    %3124 = vmax.xlane.f32.xlu0 %v3123
    %v3125 = vpop.xlane.xlu0 %3124
    %v3126 = vsel %vm1111, %v2931, -inf
    %3127 = vmax.xlane.f32.xlu0 %v3126
    %v3128 = vpop.xlane.xlu0 %3127
    %v3129 = vsel %vm1111, %v2936, -inf
    %3130 = vmax.xlane.f32.xlu0 %v3129
    %v3131 = vpop.xlane.xlu0 %3130
    %v3132 = vsel %vm1111, %v3070, -inf
    %3133 = vmax.xlane.f32.xlu0 %v3132
    %v3134 = vpop.xlane.xlu0 %3133
    %v3135 = vsel %vm1111, %v3075, -inf
    %3136 = vmax.xlane.f32.xlu0 %v3135
    %v3137 = vpop.xlane.xlu0 %3136
    %v3138 = vsel %vm1111, %v3080, -inf
    %3139 = vmax.xlane.f32.xlu0 %v3138
    %v3140 = vpop.xlane.xlu0 %3139
    %v3141 = vsel %vm1111, %v3085, -inf
    %3142 = vmax.xlane.f32.xlu0 %v3141
    %v3143 = vpop.xlane.xlu0 %3142
    %v3144 = vsel %vm1111, %v3090, -inf
    %3145 = vmax.xlane.f32.xlu0 %v3144
    %v3146 = vpop.xlane.xlu0 %3145
    %v3147 = vsel %vm1111, %v3095, -inf
    %3148 = vmax.xlane.f32.xlu0 %v3147
    %v3149 = vpop.xlane.xlu0 %3148
    %v3150 = vsel %vm1111, %v3100, -inf
    %3151 = vmax.xlane.f32.xlu0 %v3150
    %v3152 = vpop.xlane.xlu0 %3151
    %v3153 = vsel %vm1111, %v3105, -inf
    %3154 = vmax.xlane.f32.xlu0 %v3153
    %v3155 = vpop.xlane.xlu0 %3154
    %v3156 = vsub.f32 %v2901, %v3110
    %v3157 = vsub.f32 %v2906, %v3113
    %v3158 = vsub.f32 %v2911, %v3116
    %v3159 = vsub.f32 %v2916, %v3119
    %v3160 = vsub.f32 %v2921, %v3122
    %v3161 = vsub.f32 %v2926, %v3125
    %v3162 = vsub.f32 %v2931, %v3128
    %v3163 = vsub.f32 %v2936, %v3131
    %v3164 = vsub.f32 %v3070, %v3134
    %v3165 = vsub.f32 %v3075, %v3137
    %v3166 = vsub.f32 %v3080, %v3140
    %v3167 = vsub.f32 %v3085, %v3143
    %v3168 = vsub.f32 %v3090, %v3146
    %v3169 = vsub.f32 %v3095, %v3149
    %v3170 = vsub.f32 %v3100, %v3152
    %v3171 = vsub.f32 %v3105, %v3155
    %v3172 = vmul.f32 %v3156, 1.442695
    %v3173 = vpow.pop %v3172
    %v3174 = vmul.f32 %v3157, 1.442695
    %v3175 = vpow.pop %v3174
    %v3176 = vmul.f32 %v3158, 1.442695
    %v3177 = vpow.pop %v3176
    %v3178 = vmul.f32 %v3159, 1.442695
    %v3179 = vpow.pop %v3178
    %v3180 = vmul.f32 %v3160, 1.442695
    %v3181 = vpow.pop %v3180
    %v3182 = vmul.f32 %v3161, 1.442695
    %v3183 = vpow.pop %v3182
    %v3184 = vmul.f32 %v3162, 1.442695
    %v3185 = vpow.pop %v3184
    %v3186 = vmul.f32 %v3163, 1.442695
    %v3187 = vpow.pop %v3186
    %v3188 = vmul.f32 %v3164, 1.442695
    %v3189 = vpow.pop %v3188
    %v3190 = vmul.f32 %v3165, 1.442695
    %v3191 = vpow.pop %v3190
    %v3192 = vmul.f32 %v3166, 1.442695
    %v3193 = vpow.pop %v3192
    %v3194 = vmul.f32 %v3167, 1.442695
    %v3195 = vpow.pop %v3194
    %v3196 = vmul.f32 %v3168, 1.442695
    %v3197 = vpow.pop %v3196
    %v3198 = vmul.f32 %v3169, 1.442695
    %v3199 = vpow.pop %v3198
    %v3200 = vmul.f32 %v3170, 1.442695
    %v3201 = vpow.pop %v3200
    %v3202 = vmul.f32 %v3171, 1.442695
    %v3203 = vpow.pop %v3202
    %v3204 = vsel %vm1111, %v3173, 0.0
    %3205 = vadd.xlane.f32.xlu0 %v3204
    %v3206 = vpop.xlane.xlu0 %3205
    %v3207 = vsel %vm1111, %v3175, 0.0
    %3208 = vadd.xlane.f32.xlu0 %v3207
    %v3209 = vpop.xlane.xlu0 %3208
    %v3210 = vsel %vm1111, %v3177, 0.0
    %3211 = vadd.xlane.f32.xlu0 %v3210
    %v3212 = vpop.xlane.xlu0 %3211
    %v3213 = vsel %vm1111, %v3179, 0.0
    %3214 = vadd.xlane.f32.xlu0 %v3213
    %v3215 = vpop.xlane.xlu0 %3214
    %v3216 = vsel %vm1111, %v3181, 0.0
    %3217 = vadd.xlane.f32.xlu0 %v3216
    %v3218 = vpop.xlane.xlu0 %3217
    %v3219 = vsel %vm1111, %v3183, 0.0
    %3220 = vadd.xlane.f32.xlu0 %v3219
    %v3221 = vpop.xlane.xlu0 %3220
    %v3222 = vsel %vm1111, %v3185, 0.0
    %3223 = vadd.xlane.f32.xlu0 %v3222
    %v3224 = vpop.xlane.xlu0 %3223
    %v3225 = vsel %vm1111, %v3187, 0.0
    %3226 = vadd.xlane.f32.xlu0 %v3225
    %v3227 = vpop.xlane.xlu0 %3226
    %v3228 = vsel %vm1111, %v3189, 0.0
    %3229 = vadd.xlane.f32.xlu0 %v3228
    %v3230 = vpop.xlane.xlu0 %3229
    %v3231 = vsel %vm1111, %v3191, 0.0
    %3232 = vadd.xlane.f32.xlu0 %v3231
    %v3233 = vpop.xlane.xlu0 %3232
    %v3234 = vsel %vm1111, %v3193, 0.0
    %3235 = vadd.xlane.f32.xlu0 %v3234
    %v3236 = vpop.xlane.xlu0 %3235
    %v3237 = vsel %vm1111, %v3195, 0.0
    %3238 = vadd.xlane.f32.xlu0 %v3237
    %v3239 = vpop.xlane.xlu0 %3238
    %v3240 = vsel %vm1111, %v3197, 0.0
    %3241 = vadd.xlane.f32.xlu0 %v3240
    %v3242 = vpop.xlane.xlu0 %3241
    %v3243 = vsel %vm1111, %v3199, 0.0
    %3244 = vadd.xlane.f32.xlu0 %v3243
    %v3245 = vpop.xlane.xlu0 %3244
    %v3246 = vsel %vm1111, %v3201, 0.0
    %3247 = vadd.xlane.f32.xlu0 %v3246
    %v3248 = vpop.xlane.xlu0 %3247
    %v3249 = vsel %vm1111, %v3203, 0.0
    %3250 = vadd.xlane.f32.xlu0 %v3249
    %v3251 = vpop.xlane.xlu0 %3250
    %v3252 = vrcp.pop %v3206
    %v3253 = vrcp.pop %v3209
    %v3254 = vrcp.pop %v3212
    %v3255 = vrcp.pop %v3215
    %v3256 = vrcp.pop %v3218
    %v3257 = vrcp.pop %v3221
    %v3258 = vrcp.pop %v3224
    %v3259 = vrcp.pop %v3227
    %v3260 = vrcp.pop %v3230
    %v3261 = vrcp.pop %v3233
    %v3262 = vrcp.pop %v3236
    %v3263 = vrcp.pop %v3239
    %v3264 = vrcp.pop %v3242
    %v3265 = vrcp.pop %v3245
    %v3266 = vrcp.pop %v3248
    %v3267 = vrcp.pop %v3251
    %v3268 = vmul.f32 %v3173, %v3252
    %v3269 = vmul.f32 %v3175, %v3253
    %v3270 = vmul.f32 %v3177, %v3254
    %v3271 = vmul.f32 %v3179, %v3255
    %v3272 = vmul.f32 %v3181, %v3256
    %v3273 = vmul.f32 %v3183, %v3257
    %v3274 = vmul.f32 %v3185, %v3258
    %v3275 = vmul.f32 %v3187, %v3259
    %v3276 = vmul.f32 %v3189, %v3260
    %v3277 = vmul.f32 %v3191, %v3261
    %v3278 = vmul.f32 %v3193, %v3262
    %v3279 = vmul.f32 %v3195, %v3263
    %v3280 = vmul.f32 %v3197, %v3264
    %v3281 = vmul.f32 %v3199, %v3265
    %v3282 = vmul.f32 %v3201, %v3266
    %v3283 = vmul.f32 %v3203, %v3267
    %3284 = vrot.lane.b32.xlu0 %v726, 112
    %v3285 = vpop.permute.xlu0 %3284
    %3286 = vrot.lane.b32.xlu0 %v731, 112
    %v3287 = vpop.permute.xlu0 %3286
    %3288 = vrot.lane.b32.xlu0 %v736, 112
    %v3289 = vpop.permute.xlu0 %3288
    %3290 = vrot.lane.b32.xlu0 %v741, 112
    %v3291 = vpop.permute.xlu0 %3290
    %3292 = vrot.lane.b32.xlu0 %v746, 112
    %v3293 = vpop.permute.xlu0 %3292
    %3294 = vrot.lane.b32.xlu0 %v751, 112
    %v3295 = vpop.permute.xlu0 %3294
    %3296 = vrot.lane.b32.xlu0 %v756, 112
    %v3297 = vpop.permute.xlu0 %3296
    %3298 = vrot.lane.b32.xlu0 %v761, 112
    %v3299 = vpop.permute.xlu0 %3298
    %v3309 = vsel %vm1111, %v3268, 0
    %v3312 = vsel %vm1111, %v3269, 0
    %v3315 = vsel %vm1111, %v3270, 0
    %v3318 = vsel %vm1111, %v3271, 0
    %v3321 = vsel %vm1111, %v3272, 0
    %v3324 = vsel %vm1111, %v3273, 0
    %v3327 = vsel %vm1111, %v3274, 0
    %v3330 = vsel %vm1111, %v3275, 0
    %3332 = vmatprep.subr.mxu0 0.0
    %3333 = vmatpush1.msra.mxu0 %v3285
    %3334 = vmatprep.subr.mxu0 0.0
    %3335 = vmatpush1.msra.mxu0 %v3287
    %3336 = vmatprep.subr.mxu0 0.0
    %3337 = vmatpush1.msra.mxu0 %v3289
    %3338 = vmatprep.subr.mxu0 0.0
    %3339 = vmatpush1.msra.mxu0 %v3291
    %3340 = vmatprep.subr.mxu0 0.0
    %3341 = vmatpush1.msra.mxu0 %v3293
    %3342 = vmatprep.subr.mxu0 0.0
    %3343 = vmatpush1.msra.mxu0 %v3295
    %3344 = vmatprep.subr.mxu0 0.0
    %3345 = vmatpush1.msra.mxu0 %v3297
    %3346 = vmatprep.subr.mxu0 0.0
    %3347 = vmatpush1.msra.mxu0 %v3299
    %3348 = vmatprep.subr.mxu0 0.0
    %3349 = vmatpush1.msra.mxu0 0.0
    %3350 = vmatprep.subr.mxu0 0.0
    %3351 = vmatpush1.msra.mxu0 0.0
    %3352 = vmatprep.subr.mxu0 0.0
    %3353 = vmatpush1.msra.mxu0 0.0
    %3354 = vmatprep.subr.mxu0 0.0
    %3355 = vmatpush1.msra.mxu0 0.0
    %3356 = vmatprep.subr.mxu0 0.0
    %3357 = vmatpush1.msra.mxu0 0.0
    %3358 = vmatprep.subr.mxu0 0.0
    %3359 = vmatpush1.msra.mxu0 0.0
    %3360 = vmatprep.subr.mxu0 0.0
    %3361 = vmatpush1.msra.mxu0 0.0
    %3362 = vmatprep.subr.mxu0 0.0
    %3363 = vmatpush1.msra.mxu0 0.0
    %3364 = vmatprep.subr.mxu0 0.0
    %3365 = vmatpush1.msra.mxu0 0.0
    %3366 = vmatprep.subr.mxu0 0.0
    %3367 = vmatpush1.msra.mxu0 0.0
    %3368 = vmatprep.subr.mxu0 0.0
    %3369 = vmatpush1.msra.mxu0 0.0
    %3370 = vmatprep.subr.mxu0 0.0
    %3371 = vmatpush1.msra.mxu0 0.0
    %3372 = vmatprep.subr.mxu0 0.0
    %3373 = vmatpush1.msra.mxu0 0.0
    %3374 = vmatprep.subr.mxu0 0.0
    %3375 = vmatpush1.msra.mxu0 0.0
    %3376 = vmatprep.subr.mxu0 0.0
    %3377 = vmatpush1.msra.mxu0 0.0
    %3378 = vmatprep.subr.mxu0 0.0
    %3379 = vmatpush1.msra.mxu0 0.0
    %3380 = vmatprep.subr.mxu0 0.0
    %3381 = vmatpush1.msra.mxu0 0.0
    %3382 = vmatprep.subr.mxu0 0.0
    %3383 = vmatpush1.msra.mxu0 0.0
    %3384 = vmatprep.subr.mxu0 0.0
    %3385 = vmatpush1.msra.mxu0 0.0
    %3386 = vmatprep.subr.mxu0 0.0
    %3387 = vmatpush1.msra.mxu0 0.0
    %3388 = vmatprep.subr.mxu0 0.0
    %3389 = vmatpush1.msra.mxu0 0.0
    %3390 = vmatprep.subr.mxu0 0.0
    %3391 = vmatpush1.msra.mxu0 0.0
    %3392 = vmatprep.subr.mxu0 0.0
    %3393 = vmatpush1.msra.mxu0 0.0
    %3394 = vmatprep.subr.mxu0 0.0
    %3395 = vmatpush1.msra.mxu0 0.0
    %3396 = vmatprep.mubr.f32.mxu0 0.0
    %3397 = vmatmul.mubr.f32.gmra.mrb[0].mxu0 %v3309
    %v3398 = vpop.f32.mrb[0].mxu0
    %v3399 = vadd.f32 0.0, %v3398
    %v3400 = vpop.f32.mrb[0].mxu0
    %3401 = vmatprep.mubr.f32.mxu0 0.0
    %3402 = vmatmul.mubr.f32.gmra.mrb[0].mxu0 %v3312
    %v3403 = vpop.f32.mrb[0].mxu0
    %v3404 = vadd.f32 0.0, %v3403
    %v3405 = vpop.f32.mrb[0].mxu0
    %3406 = vmatprep.mubr.f32.mxu0 0.0
    %3407 = vmatmul.mubr.f32.gmra.mrb[0].mxu0 %v3315
    %v3408 = vpop.f32.mrb[0].mxu0
    %v3409 = vadd.f32 0.0, %v3408
    %v3410 = vpop.f32.mrb[0].mxu0
    %3411 = vmatprep.mubr.f32.mxu0 0.0
    %3412 = vmatmul.mubr.f32.gmra.mrb[0].mxu0 %v3318
    %v3413 = vpop.f32.mrb[0].mxu0
    %v3414 = vadd.f32 0.0, %v3413
    %v3415 = vpop.f32.mrb[0].mxu0
    %3416 = vmatprep.mubr.f32.mxu0 0.0
    %3417 = vmatmul.mubr.f32.gmra.mrb[0].mxu0 %v3321
    %v3418 = vpop.f32.mrb[0].mxu0
    %v3419 = vadd.f32 0.0, %v3418
    %v3420 = vpop.f32.mrb[0].mxu0
    %3421 = vmatprep.mubr.f32.mxu0 0.0
    %3422 = vmatmul.mubr.f32.gmra.mrb[0].mxu0 %v3324
    %v3423 = vpop.f32.mrb[0].mxu0
    %v3424 = vadd.f32 0.0, %v3423
    %v3425 = vpop.f32.mrb[0].mxu0
    %3426 = vmatprep.mubr.f32.mxu0 0.0
    %3427 = vmatmul.mubr.f32.gmra.mrb[0].mxu0 %v3327
    %v3428 = vpop.f32.mrb[0].mxu0
    %v3429 = vadd.f32 0.0, %v3428
    %v3430 = vpop.f32.mrb[0].mxu0
    %3431 = vmatprep.mubr.f32.mxu0 0.0
    %3432 = vmatmul.mubr.f32.gmra.mrb[0].mxu0 %v3330
    %v3433 = vpop.f32.mrb[0].mxu0
    %v3434 = vadd.f32 0.0, %v3433
    %v3435 = vpop.f32.mrb[0].mxu0
    %3436 = vdwg.mxu0
    %3437 = vrot.lane.b32.xlu0 %v766, 112
    %v3438 = vpop.permute.xlu0 %3437
    %3439 = vrot.lane.b32.xlu0 %v771, 112
    %v3440 = vpop.permute.xlu0 %3439
    %3441 = vrot.lane.b32.xlu0 %v776, 112
    %v3442 = vpop.permute.xlu0 %3441
    %3443 = vrot.lane.b32.xlu0 %v781, 112
    %v3444 = vpop.permute.xlu0 %3443
    %3445 = vrot.lane.b32.xlu0 %v786, 112
    %v3446 = vpop.permute.xlu0 %3445
    %3447 = vrot.lane.b32.xlu0 %v791, 112
    %v3448 = vpop.permute.xlu0 %3447
    %3449 = vrot.lane.b32.xlu0 %v796, 112
    %v3450 = vpop.permute.xlu0 %3449
    %3451 = vrot.lane.b32.xlu0 %v801, 112
    %v3452 = vpop.permute.xlu0 %3451
    %v3462 = vsel %vm1111, %v3276, 0
    %v3465 = vsel %vm1111, %v3277, 0
    %v3468 = vsel %vm1111, %v3278, 0
    %v3471 = vsel %vm1111, %v3279, 0
    %v3474 = vsel %vm1111, %v3280, 0
    %v3477 = vsel %vm1111, %v3281, 0
    %v3480 = vsel %vm1111, %v3282, 0
    %v3483 = vsel %vm1111, %v3283, 0
    %3485 = vmatprep.subr.mxu0 0.0
    %3486 = vmatpush1.msra.mxu0 %v3438
    %3487 = vmatprep.subr.mxu0 0.0
    %3488 = vmatpush1.msra.mxu0 %v3440
    %3489 = vmatprep.subr.mxu0 0.0
    %3490 = vmatpush1.msra.mxu0 %v3442
    %3491 = vmatprep.subr.mxu0 0.0
    %3492 = vmatpush1.msra.mxu0 %v3444
    %3493 = vmatprep.subr.mxu0 0.0
    %3494 = vmatpush1.msra.mxu0 %v3446
    %3495 = vmatprep.subr.mxu0 0.0
    %3496 = vmatpush1.msra.mxu0 %v3448
    %3497 = vmatprep.subr.mxu0 0.0
    %3498 = vmatpush1.msra.mxu0 %v3450
    %3499 = vmatprep.subr.mxu0 0.0
    %3500 = vmatpush1.msra.mxu0 %v3452
    %3501 = vmatprep.subr.mxu0 0.0
    %3502 = vmatpush1.msra.mxu0 0.0
    %3503 = vmatprep.subr.mxu0 0.0
    %3504 = vmatpush1.msra.mxu0 0.0
    %3505 = vmatprep.subr.mxu0 0.0
    %3506 = vmatpush1.msra.mxu0 0.0
    %3507 = vmatprep.subr.mxu0 0.0
    %3508 = vmatpush1.msra.mxu0 0.0
    %3509 = vmatprep.subr.mxu0 0.0
    %3510 = vmatpush1.msra.mxu0 0.0
    %3511 = vmatprep.subr.mxu0 0.0
    %3512 = vmatpush1.msra.mxu0 0.0
    %3513 = vmatprep.subr.mxu0 0.0
    %3514 = vmatpush1.msra.mxu0 0.0
    %3515 = vmatprep.subr.mxu0 0.0
    %3516 = vmatpush1.msra.mxu0 0.0
    %3517 = vmatprep.subr.mxu0 0.0
    %3518 = vmatpush1.msra.mxu0 0.0
    %3519 = vmatprep.subr.mxu0 0.0
    %3520 = vmatpush1.msra.mxu0 0.0
    %3521 = vmatprep.subr.mxu0 0.0
    %3522 = vmatpush1.msra.mxu0 0.0
    %3523 = vmatprep.subr.mxu0 0.0
    %3524 = vmatpush1.msra.mxu0 0.0
    %3525 = vmatprep.subr.mxu0 0.0
    %3526 = vmatpush1.msra.mxu0 0.0
    %3527 = vmatprep.subr.mxu0 0.0
    %3528 = vmatpush1.msra.mxu0 0.0
    %3529 = vmatprep.subr.mxu0 0.0
    %3530 = vmatpush1.msra.mxu0 0.0
    %3531 = vmatprep.subr.mxu0 0.0
    %3532 = vmatpush1.msra.mxu0 0.0
    %3533 = vmatprep.subr.mxu0 0.0
    %3534 = vmatpush1.msra.mxu0 0.0
    %3535 = vmatprep.subr.mxu0 0.0
    %3536 = vmatpush1.msra.mxu0 0.0
    %3537 = vmatprep.subr.mxu0 0.0
    %3538 = vmatpush1.msra.mxu0 0.0
    %3539 = vmatprep.subr.mxu0 0.0
    %3540 = vmatpush1.msra.mxu0 0.0
    %3541 = vmatprep.subr.mxu0 0.0
    %3542 = vmatpush1.msra.mxu0 0.0
    %3543 = vmatprep.subr.mxu0 0.0
    %3544 = vmatpush1.msra.mxu0 0.0
    %3545 = vmatprep.subr.mxu0 0.0
    %3546 = vmatpush1.msra.mxu0 0.0
    %3547 = vmatprep.subr.mxu0 0.0
    %3548 = vmatpush1.msra.mxu0 0.0
    %3549 = vmatprep.mubr.f32.mxu0 0.0
    %3550 = vmatmul.mubr.f32.gmra.mrb[0].mxu0 %v3462
    %v3551 = vpop.f32.mrb[0].mxu0
    %v3552 = vadd.f32 0.0, %v3551
    %v3553 = vpop.f32.mrb[0].mxu0
    %3554 = vmatprep.mubr.f32.mxu0 0.0
    %3555 = vmatmul.mubr.f32.gmra.mrb[0].mxu0 %v3465
    %v3556 = vpop.f32.mrb[0].mxu0
    %v3557 = vadd.f32 0.0, %v3556
    %v3558 = vpop.f32.mrb[0].mxu0
    %3559 = vmatprep.mubr.f32.mxu0 0.0
    %3560 = vmatmul.mubr.f32.gmra.mrb[0].mxu0 %v3468
    %v3561 = vpop.f32.mrb[0].mxu0
    %v3562 = vadd.f32 0.0, %v3561
    %v3563 = vpop.f32.mrb[0].mxu0
    %3564 = vmatprep.mubr.f32.mxu0 0.0
    %3565 = vmatmul.mubr.f32.gmra.mrb[0].mxu0 %v3471
    %v3566 = vpop.f32.mrb[0].mxu0
    %v3567 = vadd.f32 0.0, %v3566
    %v3568 = vpop.f32.mrb[0].mxu0
    %3569 = vmatprep.mubr.f32.mxu0 0.0
    %3570 = vmatmul.mubr.f32.gmra.mrb[0].mxu0 %v3474
    %v3571 = vpop.f32.mrb[0].mxu0
    %v3572 = vadd.f32 0.0, %v3571
    %v3573 = vpop.f32.mrb[0].mxu0
    %3574 = vmatprep.mubr.f32.mxu0 0.0
    %3575 = vmatmul.mubr.f32.gmra.mrb[0].mxu0 %v3477
    %v3576 = vpop.f32.mrb[0].mxu0
    %v3577 = vadd.f32 0.0, %v3576
    %v3578 = vpop.f32.mrb[0].mxu0
    %3579 = vmatprep.mubr.f32.mxu0 0.0
    %3580 = vmatmul.mubr.f32.gmra.mrb[0].mxu0 %v3480
    %v3581 = vpop.f32.mrb[0].mxu0
    %v3582 = vadd.f32 0.0, %v3581
    %v3583 = vpop.f32.mrb[0].mxu0
    %3584 = vmatprep.mubr.f32.mxu0 0.0
    %3585 = vmatmul.mubr.f32.gmra.mrb[0].mxu0 %v3483
    %v3586 = vpop.f32.mrb[0].mxu0
    %v3587 = vadd.f32 0.0, %v3586
    %v3588 = vpop.f32.mrb[0].mxu0
    %3589 = vdwg.mxu0
    %v3590 = vld [vmem:[#allocation11 + $0x10] sm:$0xff]
    %v3592 = vsel %vm804, %v3399, 0
    %v3595 = vsel %vm804, %v3404, 0
    %v3598 = vsel %vm804, %v3409, 0
    %v3601 = vsel %vm804, %v3414, 0
    %v3604 = vsel %vm804, %v3419, 0
    %v3607 = vsel %vm804, %v3424, 0
    %v3610 = vsel %vm804, %v3429, 0
    %v3613 = vsel %vm804, %v3434, 0
    %v3616 = vsel %vm804, %v3552, 0
    %v3619 = vsel %vm804, %v3557, 0
    %v3622 = vsel %vm804, %v3562, 0
    %v3625 = vsel %vm804, %v3567, 0
    %v3628 = vsel %vm804, %v3572, 0
    %v3631 = vsel %vm804, %v3577, 0
    %v3634 = vsel %vm804, %v3582, 0
    %v3637 = vsel %vm804, %v3587, 0
    %3639 = vmatprep.subr.mxu0 0.0
    %3640 = vmatpush1.msra.mxu0 %v3590
    %3641 = vmatprep.subr.mxu0 0.0
    %3642 = vmatpush1.msra.mxu0 0.0
    %3643 = vmatprep.subr.mxu0 0.0
    %3644 = vmatpush1.msra.mxu0 0.0
    %3645 = vmatprep.subr.mxu0 0.0
    %3646 = vmatpush1.msra.mxu0 0.0
    %3647 = vmatprep.subr.mxu0 0.0
    %3648 = vmatpush1.msra.mxu0 0.0
    %3649 = vmatprep.subr.mxu0 0.0
    %3650 = vmatpush1.msra.mxu0 0.0
    %3651 = vmatprep.subr.mxu0 0.0
    %3652 = vmatpush1.msra.mxu0 0.0
    %3653 = vmatprep.subr.mxu0 0.0
    %3654 = vmatpush1.msra.mxu0 0.0
    %3655 = vmatprep.subr.mxu0 0.0
    %3656 = vmatpush1.msra.mxu0 0.0
    %3657 = vmatprep.subr.mxu0 0.0
    %3658 = vmatpush1.msra.mxu0 0.0
    %3659 = vmatprep.subr.mxu0 0.0
    %3660 = vmatpush1.msra.mxu0 0.0
    %3661 = vmatprep.subr.mxu0 0.0
    %3662 = vmatpush1.msra.mxu0 0.0
    %3663 = vmatprep.subr.mxu0 0.0
    %3664 = vmatpush1.msra.mxu0 0.0
    %3665 = vmatprep.subr.mxu0 0.0
    %3666 = vmatpush1.msra.mxu0 0.0
    %3667 = vmatprep.subr.mxu0 0.0
    %3668 = vmatpush1.msra.mxu0 0.0
    %3669 = vmatprep.subr.mxu0 0.0
    %3670 = vmatpush1.msra.mxu0 0.0
    %3671 = vmatprep.subr.mxu0 0.0
    %3672 = vmatpush1.msra.mxu0 0.0
    %3673 = vmatprep.subr.mxu0 0.0
    %3674 = vmatpush1.msra.mxu0 0.0
    %3675 = vmatprep.subr.mxu0 0.0
    %3676 = vmatpush1.msra.mxu0 0.0
    %3677 = vmatprep.subr.mxu0 0.0
    %3678 = vmatpush1.msra.mxu0 0.0
    %3679 = vmatprep.subr.mxu0 0.0
    %3680 = vmatpush1.msra.mxu0 0.0
    %3681 = vmatprep.subr.mxu0 0.0
    %3682 = vmatpush1.msra.mxu0 0.0
    %3683 = vmatprep.subr.mxu0 0.0
    %3684 = vmatpush1.msra.mxu0 0.0
    %3685 = vmatprep.subr.mxu0 0.0
    %3686 = vmatpush1.msra.mxu0 0.0
    %3687 = vmatprep.subr.mxu0 0.0
    %3688 = vmatpush1.msra.mxu0 0.0
    %3689 = vmatprep.subr.mxu0 0.0
    %3690 = vmatpush1.msra.mxu0 0.0
    %3691 = vmatprep.subr.mxu0 0.0
    %3692 = vmatpush1.msra.mxu0 0.0
    %3693 = vmatprep.subr.mxu0 0.0
    %3694 = vmatpush1.msra.mxu0 0.0
    %3695 = vmatprep.subr.mxu0 0.0
    %3696 = vmatpush1.msra.mxu0 0.0
    %3697 = vmatprep.subr.mxu0 0.0
    %3698 = vmatpush1.msra.mxu0 0.0
    %3699 = vmatprep.subr.mxu0 0.0
    %3700 = vmatpush1.msra.mxu0 0.0
    %3701 = vmatprep.subr.mxu0 0.0
    %3702 = vmatpush1.msra.mxu0 0.0
    %3703 = vmatprep.mubr.f32.mxu0 0.0
    %3704 = vmatmul.mubr.f32.gmra.mrb[0].mxu0 %v3592
    %v3705 = vpop.f32.mrb[0].mxu0
    %v3706 = vadd.f32 0.0, %v3705
    %v3707 = vpop.f32.mrb[0].mxu0
    %3708 = vmatprep.mubr.f32.mxu0 0.0
    %3709 = vmatmul.mubr.f32.gmra.mrb[0].mxu0 %v3595
    %v3710 = vpop.f32.mrb[0].mxu0
    %v3711 = vadd.f32 0.0, %v3710
    %v3712 = vpop.f32.mrb[0].mxu0
    %3713 = vmatprep.mubr.f32.mxu0 0.0
    %3714 = vmatmul.mubr.f32.gmra.mrb[0].mxu0 %v3598
    %v3715 = vpop.f32.mrb[0].mxu0
    %v3716 = vadd.f32 0.0, %v3715
    %v3717 = vpop.f32.mrb[0].mxu0
    %3718 = vmatprep.mubr.f32.mxu0 0.0
    %3719 = vmatmul.mubr.f32.gmra.mrb[0].mxu0 %v3601
    %v3720 = vpop.f32.mrb[0].mxu0
    %v3721 = vadd.f32 0.0, %v3720
    %v3722 = vpop.f32.mrb[0].mxu0
    %3723 = vmatprep.mubr.f32.mxu0 0.0
    %3724 = vmatmul.mubr.f32.gmra.mrb[0].mxu0 %v3604
    %v3725 = vpop.f32.mrb[0].mxu0
    %v3726 = vadd.f32 0.0, %v3725
    %v3727 = vpop.f32.mrb[0].mxu0
    %3728 = vmatprep.mubr.f32.mxu0 0.0
    %3729 = vmatmul.mubr.f32.gmra.mrb[0].mxu0 %v3607
    %v3730 = vpop.f32.mrb[0].mxu0
    %v3731 = vadd.f32 0.0, %v3730
    %v3732 = vpop.f32.mrb[0].mxu0
    %3733 = vmatprep.mubr.f32.mxu0 0.0
    %3734 = vmatmul.mubr.f32.gmra.mrb[0].mxu0 %v3610
    %v3735 = vpop.f32.mrb[0].mxu0
    %v3736 = vadd.f32 0.0, %v3735
    %v3737 = vpop.f32.mrb[0].mxu0
    %3738 = vmatprep.mubr.f32.mxu0 0.0
    %3739 = vmatmul.mubr.f32.gmra.mrb[0].mxu0 %v3613
    %v3740 = vpop.f32.mrb[0].mxu0
    %v3741 = vadd.f32 0.0, %v3740
    %v3742 = vpop.f32.mrb[0].mxu0
    %3743 = vmatprep.mubr.f32.mxu0 0.0
    %3744 = vmatmul.mubr.f32.gmra.mrb[0].mxu0 %v3616
    %v3745 = vpop.f32.mrb[0].mxu0
    %v3746 = vadd.f32 0.0, %v3745
    %v3747 = vpop.f32.mrb[0].mxu0
    %3748 = vmatprep.mubr.f32.mxu0 0.0
    %3749 = vmatmul.mubr.f32.gmra.mrb[0].mxu0 %v3619
    %v3750 = vpop.f32.mrb[0].mxu0
    %v3751 = vadd.f32 0.0, %v3750
    %v3752 = vpop.f32.mrb[0].mxu0
    %3753 = vmatprep.mubr.f32.mxu0 0.0
    %3754 = vmatmul.mubr.f32.gmra.mrb[0].mxu0 %v3622
    %v3755 = vpop.f32.mrb[0].mxu0
    %v3756 = vadd.f32 0.0, %v3755
    %v3757 = vpop.f32.mrb[0].mxu0
    %3758 = vmatprep.mubr.f32.mxu0 0.0
    %3759 = vmatmul.mubr.f32.gmra.mrb[0].mxu0 %v3625
    %v3760 = vpop.f32.mrb[0].mxu0
    %v3761 = vadd.f32 0.0, %v3760
    %v3762 = vpop.f32.mrb[0].mxu0
    %3763 = vmatprep.mubr.f32.mxu0 0.0
    %3764 = vmatmul.mubr.f32.gmra.mrb[0].mxu0 %v3628
    %v3765 = vpop.f32.mrb[0].mxu0
    %v3766 = vadd.f32 0.0, %v3765
    %v3767 = vpop.f32.mrb[0].mxu0
    %3768 = vmatprep.mubr.f32.mxu0 0.0
    %3769 = vmatmul.mubr.f32.gmra.mrb[0].mxu0 %v3631
    %v3770 = vpop.f32.mrb[0].mxu0
    %v3771 = vadd.f32 0.0, %v3770
    %v3772 = vpop.f32.mrb[0].mxu0
    %3773 = vmatprep.mubr.f32.mxu0 0.0
    %3774 = vmatmul.mubr.f32.gmra.mrb[0].mxu0 %v3634
    %v3775 = vpop.f32.mrb[0].mxu0
    %v3776 = vadd.f32 0.0, %v3775
    %v3777 = vpop.f32.mrb[0].mxu0
    %3778 = vmatprep.mubr.f32.mxu0 0.0
    %3779 = vmatmul.mubr.f32.gmra.mrb[0].mxu0 %v3637
    %v3780 = vpop.f32.mrb[0].mxu0
    %v3781 = vadd.f32 0.0, %v3780
    %v3782 = vpop.f32.mrb[0].mxu0
    %3783 = vdwg.mxu0
    %v3784 = vadd.f32 %v2692, %v3706
    %v3785 = vadd.f32 %v2697, %v3711
    %v3786 = vadd.f32 %v2702, %v3716
    %v3787 = vadd.f32 %v2707, %v3721
    %v3788 = vadd.f32 %v2712, %v3726
    %v3789 = vadd.f32 %v2717, %v3731
    %v3790 = vadd.f32 %v2722, %v3736
    %v3791 = vadd.f32 %v2727, %v3741
    %v3792 = vadd.f32 %v2732, %v3746
    %v3793 = vadd.f32 %v2737, %v3751
    %v3794 = vadd.f32 %v2742, %v3756
    %v3795 = vadd.f32 %v2747, %v3761
    %v3796 = vadd.f32 %v2752, %v3766
    %v3797 = vadd.f32 %v2757, %v3771
    %v3798 = vadd.f32 %v2762, %v3776
    %v3799 = vadd.f32 %v2767, %v3781
    %3800 = vrot.lane.b32.xlu0 %v380, 104
    %v3801 = vpop.permute.xlu0 %3800
    %3802 = vrot.lane.b32.xlu0 %v381, 104
    %v3803 = vpop.permute.xlu0 %3802
    %3804 = vrot.lane.b32.xlu0 %v382, 104
    %v3805 = vpop.permute.xlu0 %3804
    %3806 = vrot.lane.b32.xlu0 %v383, 104
    %v3807 = vpop.permute.xlu0 %3806
    %3808 = vrot.lane.b32.xlu0 %v384, 104
    %v3809 = vpop.permute.xlu0 %3808
    %3810 = vrot.lane.b32.xlu0 %v385, 104
    %v3811 = vpop.permute.xlu0 %3810
    %3812 = vrot.lane.b32.xlu0 %v386, 104
    %v3813 = vpop.permute.xlu0 %3812
    %3814 = vrot.lane.b32.xlu0 %v387, 104
    %v3815 = vpop.permute.xlu0 %3814
    %3816 = vrot.lane.b32.xlu0 %v522, 104
    %v3817 = vpop.permute.xlu0 %3816
    %3818 = vrot.lane.b32.xlu0 %v527, 104
    %v3819 = vpop.permute.xlu0 %3818
    %3820 = vrot.lane.b32.xlu0 %v532, 104
    %v3821 = vpop.permute.xlu0 %3820
    %3822 = vrot.lane.b32.xlu0 %v537, 104
    %v3823 = vpop.permute.xlu0 %3822
    %3824 = vrot.lane.b32.xlu0 %v542, 104
    %v3825 = vpop.permute.xlu0 %3824
    %3826 = vrot.lane.b32.xlu0 %v547, 104
    %v3827 = vpop.permute.xlu0 %3826
    %3828 = vrot.lane.b32.xlu0 %v552, 104
    %v3829 = vpop.permute.xlu0 %3828
    %3830 = vrot.lane.b32.xlu0 %v557, 104
    %v3831 = vpop.permute.xlu0 %3830
    %v3832 = vsel %vm804, %v3801, 0
    %v3834 = vsel %vm804, %v3803, 0
    %v3836 = vsel %vm804, %v3805, 0
    %v3838 = vsel %vm804, %v3807, 0
    %v3840 = vsel %vm804, %v3809, 0
    %v3842 = vsel %vm804, %v3811, 0
    %v3844 = vsel %vm804, %v3813, 0
    %v3846 = vsel %vm804, %v3815, 0
    %v3848 = vsel %vm804, %v3817, 0
    %v3850 = vsel %vm804, %v3819, 0
    %v3852 = vsel %vm804, %v3821, 0
    %v3854 = vsel %vm804, %v3823, 0
    %v3856 = vsel %vm804, %v3825, 0
    %v3858 = vsel %vm804, %v3827, 0
    %v3860 = vsel %vm804, %v3829, 0
    %v3862 = vsel %vm804, %v3831, 0
    %3864 = vmatprep.subr.mxu0 0.0
    %3865 = vmatpush1.xpose.msra.mxu0 %v3848
    %3866 = vmatprep.subr.mxu0 0.0
    %3867 = vmatpush1.xpose.msra.mxu0 %v3850
    %3868 = vmatprep.subr.mxu0 0.0
    %3869 = vmatpush1.xpose.msra.mxu0 %v3852
    %3870 = vmatprep.subr.mxu0 0.0
    %3871 = vmatpush1.xpose.msra.mxu0 %v3854
    %3872 = vmatprep.subr.mxu0 0.0
    %3873 = vmatpush1.xpose.msra.mxu0 %v3856
    %3874 = vmatprep.subr.mxu0 0.0
    %3875 = vmatpush1.xpose.msra.mxu0 %v3858
    %3876 = vmatprep.subr.mxu0 0.0
    %3877 = vmatpush1.xpose.msra.mxu0 %v3860
    %3878 = vmatprep.subr.mxu0 0.0
    %3879 = vmatpush1.xpose.msra.mxu0 %v3862
    %3880 = vmatprep.subr.mxu0 0.0
    %3881 = vmatpush1.xpose.msra.mxu0 0.0
    %3882 = vmatprep.subr.mxu0 0.0
    %3883 = vmatpush1.xpose.msra.mxu0 0.0
    %3884 = vmatprep.subr.mxu0 0.0
    %3885 = vmatpush1.xpose.msra.mxu0 0.0
    %3886 = vmatprep.subr.mxu0 0.0
    %3887 = vmatpush1.xpose.msra.mxu0 0.0
    %3888 = vmatprep.subr.mxu0 0.0
    %3889 = vmatpush1.xpose.msra.mxu0 0.0
    %3890 = vmatprep.subr.mxu0 0.0
    %3891 = vmatpush1.xpose.msra.mxu0 0.0
    %3892 = vmatprep.subr.mxu0 0.0
    %3893 = vmatpush1.xpose.msra.mxu0 0.0
    %3894 = vmatprep.subr.mxu0 0.0
    %3895 = vmatpush1.xpose.msra.mxu0 0.0
    %3896 = vmatprep.subr.mxu0 0.0
    %3897 = vmatpush1.xpose.msra.mxu0 0.0
    %3898 = vmatprep.subr.mxu0 0.0
    %3899 = vmatpush1.xpose.msra.mxu0 0.0
    %3900 = vmatprep.subr.mxu0 0.0
    %3901 = vmatpush1.xpose.msra.mxu0 0.0
    %3902 = vmatprep.subr.mxu0 0.0
    %3903 = vmatpush1.xpose.msra.mxu0 0.0
    %3904 = vmatprep.subr.mxu0 0.0
    %3905 = vmatpush1.xpose.msra.mxu0 0.0
    %3906 = vmatprep.subr.mxu0 0.0
    %3907 = vmatpush1.xpose.msra.mxu0 0.0
    %3908 = vmatprep.subr.mxu0 0.0
    %3909 = vmatpush1.xpose.msra.mxu0 0.0
    %3910 = vmatprep.subr.mxu0 0.0
    %3911 = vmatpush1.xpose.msra.mxu0 0.0
    %3912 = vmatprep.subr.mxu0 0.0
    %3913 = vmatpush1.xpose.msra.mxu0 0.0
    %3914 = vmatprep.subr.mxu0 0.0
    %3915 = vmatpush1.xpose.msra.mxu0 0.0
    %3916 = vmatprep.subr.mxu0 0.0
    %3917 = vmatpush1.xpose.msra.mxu0 0.0
    %3918 = vmatprep.subr.mxu0 0.0
    %3919 = vmatpush1.xpose.msra.mxu0 0.0
    %3920 = vmatprep.subr.mxu0 0.0
    %3921 = vmatpush1.xpose.msra.mxu0 0.0
    %3922 = vmatprep.subr.mxu0 0.0
    %3923 = vmatpush1.xpose.msra.mxu0 0.0
    %3924 = vmatprep.subr.mxu0 0.0
    %3925 = vmatpush1.xpose.msra.mxu0 0.0
    %3926 = vmatprep.subr.mxu0 0.0
    %3927 = vmatpush1.xpose.msra.mxu0 0.0
    %3928 = vmatprep.mubr.f32.mxu0 0.0
    %3929 = vmatmul.mubr.f32.gmra.mrb[0].mxu0 %v3832
    %v3930 = vpop.f32.mrb[0].mxu0
    %v3931 = vadd.f32 0.0, %v3930
    %v3932 = vpop.f32.mrb[0].mxu0
    %3933 = vmatprep.mubr.f32.mxu0 0.0
    %3934 = vmatmul.mubr.f32.gmra.mrb[0].mxu0 %v3834
    %v3935 = vpop.f32.mrb[0].mxu0
    %v3936 = vadd.f32 0.0, %v3935
    %v3937 = vpop.f32.mrb[0].mxu0
    %3938 = vmatprep.mubr.f32.mxu0 0.0
    %3939 = vmatmul.mubr.f32.gmra.mrb[0].mxu0 %v3836
    %v3940 = vpop.f32.mrb[0].mxu0
    %v3941 = vadd.f32 0.0, %v3940
    %v3942 = vpop.f32.mrb[0].mxu0
    %3943 = vmatprep.mubr.f32.mxu0 0.0
    %3944 = vmatmul.mubr.f32.gmra.mrb[0].mxu0 %v3838
    %v3945 = vpop.f32.mrb[0].mxu0
    %v3946 = vadd.f32 0.0, %v3945
    %v3947 = vpop.f32.mrb[0].mxu0
    %3948 = vmatprep.mubr.f32.mxu0 0.0
    %3949 = vmatmul.mubr.f32.gmra.mrb[0].mxu0 %v3840
    %v3950 = vpop.f32.mrb[0].mxu0
    %v3951 = vadd.f32 0.0, %v3950
    %v3952 = vpop.f32.mrb[0].mxu0
    %3953 = vmatprep.mubr.f32.mxu0 0.0
    %3954 = vmatmul.mubr.f32.gmra.mrb[0].mxu0 %v3842
    %v3955 = vpop.f32.mrb[0].mxu0
    %v3956 = vadd.f32 0.0, %v3955
    %v3957 = vpop.f32.mrb[0].mxu0
    %3958 = vmatprep.mubr.f32.mxu0 0.0
    %3959 = vmatmul.mubr.f32.gmra.mrb[0].mxu0 %v3844
    %v3960 = vpop.f32.mrb[0].mxu0
    %v3961 = vadd.f32 0.0, %v3960
    %v3962 = vpop.f32.mrb[0].mxu0
    %3963 = vmatprep.mubr.f32.mxu0 0.0
    %3964 = vmatmul.mubr.f32.gmra.mrb[0].mxu0 %v3846
    %v3965 = vpop.f32.mrb[0].mxu0
    %v3966 = vadd.f32 0.0, %v3965
    %v3967 = vpop.f32.mrb[0].mxu0
    %3968 = vdwg.mxu0
    %3969 = vrot.lane.b32.xlu0 %v388, 104
    %v3970 = vpop.permute.xlu0 %3969
    %3971 = vrot.lane.b32.xlu0 %v389, 104
    %v3972 = vpop.permute.xlu0 %3971
    %3973 = vrot.lane.b32.xlu0 %v390, 104
    %v3974 = vpop.permute.xlu0 %3973
    %3975 = vrot.lane.b32.xlu0 %v391, 104
    %v3976 = vpop.permute.xlu0 %3975
    %3977 = vrot.lane.b32.xlu0 %v392, 104
    %v3978 = vpop.permute.xlu0 %3977
    %3979 = vrot.lane.b32.xlu0 %v393, 104
    %v3980 = vpop.permute.xlu0 %3979
    %3981 = vrot.lane.b32.xlu0 %v394, 104
    %v3982 = vpop.permute.xlu0 %3981
    %3983 = vrot.lane.b32.xlu0 %v395, 104
    %v3984 = vpop.permute.xlu0 %3983
    %3985 = vrot.lane.b32.xlu0 %v562, 104
    %v3986 = vpop.permute.xlu0 %3985
    %3987 = vrot.lane.b32.xlu0 %v567, 104
    %v3988 = vpop.permute.xlu0 %3987
    %3989 = vrot.lane.b32.xlu0 %v572, 104
    %v3990 = vpop.permute.xlu0 %3989
    %3991 = vrot.lane.b32.xlu0 %v577, 104
    %v3992 = vpop.permute.xlu0 %3991
    %3993 = vrot.lane.b32.xlu0 %v582, 104
    %v3994 = vpop.permute.xlu0 %3993
    %3995 = vrot.lane.b32.xlu0 %v587, 104
    %v3996 = vpop.permute.xlu0 %3995
    %3997 = vrot.lane.b32.xlu0 %v592, 104
    %v3998 = vpop.permute.xlu0 %3997
    %3999 = vrot.lane.b32.xlu0 %v597, 104
    %v4000 = vpop.permute.xlu0 %3999
    %v4001 = vsel %vm804, %v3970, 0
    %v4003 = vsel %vm804, %v3972, 0
    %v4005 = vsel %vm804, %v3974, 0
    %v4007 = vsel %vm804, %v3976, 0
    %v4009 = vsel %vm804, %v3978, 0
    %v4011 = vsel %vm804, %v3980, 0
    %v4013 = vsel %vm804, %v3982, 0
    %v4015 = vsel %vm804, %v3984, 0
    %v4017 = vsel %vm804, %v3986, 0
    %v4019 = vsel %vm804, %v3988, 0
    %v4021 = vsel %vm804, %v3990, 0
    %v4023 = vsel %vm804, %v3992, 0
    %v4025 = vsel %vm804, %v3994, 0
    %v4027 = vsel %vm804, %v3996, 0
    %v4029 = vsel %vm804, %v3998, 0
    %v4031 = vsel %vm804, %v4000, 0
    %4033 = vmatprep.subr.mxu0 0.0
    %4034 = vmatpush1.xpose.msra.mxu0 %v4017
    %4035 = vmatprep.subr.mxu0 0.0
    %4036 = vmatpush1.xpose.msra.mxu0 %v4019
    %4037 = vmatprep.subr.mxu0 0.0
    %4038 = vmatpush1.xpose.msra.mxu0 %v4021
    %4039 = vmatprep.subr.mxu0 0.0
    %4040 = vmatpush1.xpose.msra.mxu0 %v4023
    %4041 = vmatprep.subr.mxu0 0.0
    %4042 = vmatpush1.xpose.msra.mxu0 %v4025
    %4043 = vmatprep.subr.mxu0 0.0
    %4044 = vmatpush1.xpose.msra.mxu0 %v4027
    %4045 = vmatprep.subr.mxu0 0.0
    %4046 = vmatpush1.xpose.msra.mxu0 %v4029
    %4047 = vmatprep.subr.mxu0 0.0
    %4048 = vmatpush1.xpose.msra.mxu0 %v4031
    %4049 = vmatprep.subr.mxu0 0.0
    %4050 = vmatpush1.xpose.msra.mxu0 0.0
    %4051 = vmatprep.subr.mxu0 0.0
    %4052 = vmatpush1.xpose.msra.mxu0 0.0
    %4053 = vmatprep.subr.mxu0 0.0
    %4054 = vmatpush1.xpose.msra.mxu0 0.0
    %4055 = vmatprep.subr.mxu0 0.0
    %4056 = vmatpush1.xpose.msra.mxu0 0.0
    %4057 = vmatprep.subr.mxu0 0.0
    %4058 = vmatpush1.xpose.msra.mxu0 0.0
    %4059 = vmatprep.subr.mxu0 0.0
    %4060 = vmatpush1.xpose.msra.mxu0 0.0
    %4061 = vmatprep.subr.mxu0 0.0
    %4062 = vmatpush1.xpose.msra.mxu0 0.0
    %4063 = vmatprep.subr.mxu0 0.0
    %4064 = vmatpush1.xpose.msra.mxu0 0.0
    %4065 = vmatprep.subr.mxu0 0.0
    %4066 = vmatpush1.xpose.msra.mxu0 0.0
    %4067 = vmatprep.subr.mxu0 0.0
    %4068 = vmatpush1.xpose.msra.mxu0 0.0
    %4069 = vmatprep.subr.mxu0 0.0
    %4070 = vmatpush1.xpose.msra.mxu0 0.0
    %4071 = vmatprep.subr.mxu0 0.0
    %4072 = vmatpush1.xpose.msra.mxu0 0.0
    %4073 = vmatprep.subr.mxu0 0.0
    %4074 = vmatpush1.xpose.msra.mxu0 0.0
    %4075 = vmatprep.subr.mxu0 0.0
    %4076 = vmatpush1.xpose.msra.mxu0 0.0
    %4077 = vmatprep.subr.mxu0 0.0
    %4078 = vmatpush1.xpose.msra.mxu0 0.0
    %4079 = vmatprep.subr.mxu0 0.0
    %4080 = vmatpush1.xpose.msra.mxu0 0.0
    %4081 = vmatprep.subr.mxu0 0.0
    %4082 = vmatpush1.xpose.msra.mxu0 0.0
    %4083 = vmatprep.subr.mxu0 0.0
    %4084 = vmatpush1.xpose.msra.mxu0 0.0
    %4085 = vmatprep.subr.mxu0 0.0
    %4086 = vmatpush1.xpose.msra.mxu0 0.0
    %4087 = vmatprep.subr.mxu0 0.0
    %4088 = vmatpush1.xpose.msra.mxu0 0.0
    %4089 = vmatprep.subr.mxu0 0.0
    %4090 = vmatpush1.xpose.msra.mxu0 0.0
    %4091 = vmatprep.subr.mxu0 0.0
    %4092 = vmatpush1.xpose.msra.mxu0 0.0
    %4093 = vmatprep.subr.mxu0 0.0
    %4094 = vmatpush1.xpose.msra.mxu0 0.0
    %4095 = vmatprep.subr.mxu0 0.0
    %4096 = vmatpush1.xpose.msra.mxu0 0.0
    %4097 = vmatprep.mubr.f32.mxu0 0.0
    %4098 = vmatmul.mubr.f32.gmra.mrb[0].mxu0 %v4001
    %v4099 = vpop.f32.mrb[0].mxu0
    %v4100 = vadd.f32 0.0, %v4099
    %v4101 = vpop.f32.mrb[0].mxu0
    %4102 = vmatprep.mubr.f32.mxu0 0.0
    %4103 = vmatmul.mubr.f32.gmra.mrb[0].mxu0 %v4003
    %v4104 = vpop.f32.mrb[0].mxu0
    %v4105 = vadd.f32 0.0, %v4104
    %v4106 = vpop.f32.mrb[0].mxu0
    %4107 = vmatprep.mubr.f32.mxu0 0.0
    %4108 = vmatmul.mubr.f32.gmra.mrb[0].mxu0 %v4005
    %v4109 = vpop.f32.mrb[0].mxu0
    %v4110 = vadd.f32 0.0, %v4109
    %v4111 = vpop.f32.mrb[0].mxu0
    %4112 = vmatprep.mubr.f32.mxu0 0.0
    %4113 = vmatmul.mubr.f32.gmra.mrb[0].mxu0 %v4007
    %v4114 = vpop.f32.mrb[0].mxu0
    %v4115 = vadd.f32 0.0, %v4114
    %v4116 = vpop.f32.mrb[0].mxu0
    %4117 = vmatprep.mubr.f32.mxu0 0.0
    %4118 = vmatmul.mubr.f32.gmra.mrb[0].mxu0 %v4009
    %v4119 = vpop.f32.mrb[0].mxu0
    %v4120 = vadd.f32 0.0, %v4119
    %v4121 = vpop.f32.mrb[0].mxu0
    %4122 = vmatprep.mubr.f32.mxu0 0.0
    %4123 = vmatmul.mubr.f32.gmra.mrb[0].mxu0 %v4011
    %v4124 = vpop.f32.mrb[0].mxu0
    %v4125 = vadd.f32 0.0, %v4124
    %v4126 = vpop.f32.mrb[0].mxu0
    %4127 = vmatprep.mubr.f32.mxu0 0.0
    %4128 = vmatmul.mubr.f32.gmra.mrb[0].mxu0 %v4013
    %v4129 = vpop.f32.mrb[0].mxu0
    %v4130 = vadd.f32 0.0, %v4129
    %v4131 = vpop.f32.mrb[0].mxu0
    %4132 = vmatprep.mubr.f32.mxu0 0.0
    %4133 = vmatmul.mubr.f32.gmra.mrb[0].mxu0 %v4015
    %v4134 = vpop.f32.mrb[0].mxu0
    %v4135 = vadd.f32 0.0, %v4134
    %v4136 = vpop.f32.mrb[0].mxu0
    %4137 = vdwg.mxu0
    %v4138 = vsel %vm1111, %v3931, -inf
    %4139 = vmax.xlane.f32.xlu0 %v4138
    %v4140 = vpop.xlane.xlu0 %4139
    %v4141 = vsel %vm1111, %v3936, -inf
    %4142 = vmax.xlane.f32.xlu0 %v4141
    %v4143 = vpop.xlane.xlu0 %4142
    %v4144 = vsel %vm1111, %v3941, -inf
    %4145 = vmax.xlane.f32.xlu0 %v4144
    %v4146 = vpop.xlane.xlu0 %4145
    %v4147 = vsel %vm1111, %v3946, -inf
    %4148 = vmax.xlane.f32.xlu0 %v4147
    %v4149 = vpop.xlane.xlu0 %4148
    %v4150 = vsel %vm1111, %v3951, -inf
    %4151 = vmax.xlane.f32.xlu0 %v4150
    %v4152 = vpop.xlane.xlu0 %4151
    %v4153 = vsel %vm1111, %v3956, -inf
    %4154 = vmax.xlane.f32.xlu0 %v4153
    %v4155 = vpop.xlane.xlu0 %4154
    %v4156 = vsel %vm1111, %v3961, -inf
    %4157 = vmax.xlane.f32.xlu0 %v4156
    %v4158 = vpop.xlane.xlu0 %4157
    %v4159 = vsel %vm1111, %v3966, -inf
    %4160 = vmax.xlane.f32.xlu0 %v4159
    %v4161 = vpop.xlane.xlu0 %4160
    %v4162 = vsel %vm1111, %v4100, -inf
    %4163 = vmax.xlane.f32.xlu0 %v4162
    %v4164 = vpop.xlane.xlu0 %4163
    %v4165 = vsel %vm1111, %v4105, -inf
    %4166 = vmax.xlane.f32.xlu0 %v4165
    %v4167 = vpop.xlane.xlu0 %4166
    %v4168 = vsel %vm1111, %v4110, -inf
    %4169 = vmax.xlane.f32.xlu0 %v4168
    %v4170 = vpop.xlane.xlu0 %4169
    %v4171 = vsel %vm1111, %v4115, -inf
    %4172 = vmax.xlane.f32.xlu0 %v4171
    %v4173 = vpop.xlane.xlu0 %4172
    %v4174 = vsel %vm1111, %v4120, -inf
    %4175 = vmax.xlane.f32.xlu0 %v4174
    %v4176 = vpop.xlane.xlu0 %4175
    %v4177 = vsel %vm1111, %v4125, -inf
    %4178 = vmax.xlane.f32.xlu0 %v4177
    %v4179 = vpop.xlane.xlu0 %4178
    %v4180 = vsel %vm1111, %v4130, -inf
    %4181 = vmax.xlane.f32.xlu0 %v4180
    %v4182 = vpop.xlane.xlu0 %4181
    %v4183 = vsel %vm1111, %v4135, -inf
    %4184 = vmax.xlane.f32.xlu0 %v4183
    %v4185 = vpop.xlane.xlu0 %4184
    %v4186 = vsub.f32 %v3931, %v4140
    %v4187 = vsub.f32 %v3936, %v4143
    %v4188 = vsub.f32 %v3941, %v4146
    %v4189 = vsub.f32 %v3946, %v4149
    %v4190 = vsub.f32 %v3951, %v4152
    %v4191 = vsub.f32 %v3956, %v4155
    %v4192 = vsub.f32 %v3961, %v4158
    %v4193 = vsub.f32 %v3966, %v4161
    %v4194 = vsub.f32 %v4100, %v4164
    %v4195 = vsub.f32 %v4105, %v4167
    %v4196 = vsub.f32 %v4110, %v4170
    %v4197 = vsub.f32 %v4115, %v4173
    %v4198 = vsub.f32 %v4120, %v4176
    %v4199 = vsub.f32 %v4125, %v4179
    %v4200 = vsub.f32 %v4130, %v4182
    %v4201 = vsub.f32 %v4135, %v4185
    %v4202 = vmul.f32 %v4186, 1.442695
    %v4203 = vpow.pop %v4202
    %v4204 = vmul.f32 %v4187, 1.442695
    %v4205 = vpow.pop %v4204
    %v4206 = vmul.f32 %v4188, 1.442695
    %v4207 = vpow.pop %v4206
    %v4208 = vmul.f32 %v4189, 1.442695
    %v4209 = vpow.pop %v4208
    %v4210 = vmul.f32 %v4190, 1.442695
    %v4211 = vpow.pop %v4210
    %v4212 = vmul.f32 %v4191, 1.442695
    %v4213 = vpow.pop %v4212
    %v4214 = vmul.f32 %v4192, 1.442695
    %v4215 = vpow.pop %v4214
    %v4216 = vmul.f32 %v4193, 1.442695
    %v4217 = vpow.pop %v4216
    %v4218 = vmul.f32 %v4194, 1.442695
    %v4219 = vpow.pop %v4218
    %v4220 = vmul.f32 %v4195, 1.442695
    %v4221 = vpow.pop %v4220
    %v4222 = vmul.f32 %v4196, 1.442695
    %v4223 = vpow.pop %v4222
    %v4224 = vmul.f32 %v4197, 1.442695
    %v4225 = vpow.pop %v4224
    %v4226 = vmul.f32 %v4198, 1.442695
    %v4227 = vpow.pop %v4226
    %v4228 = vmul.f32 %v4199, 1.442695
    %v4229 = vpow.pop %v4228
    %v4230 = vmul.f32 %v4200, 1.442695
    %v4231 = vpow.pop %v4230
    %v4232 = vmul.f32 %v4201, 1.442695
    %v4233 = vpow.pop %v4232
    %v4234 = vsel %vm1111, %v4203, 0.0
    %4235 = vadd.xlane.f32.xlu0 %v4234
    %v4236 = vpop.xlane.xlu0 %4235
    %v4237 = vsel %vm1111, %v4205, 0.0
    %4238 = vadd.xlane.f32.xlu0 %v4237
    %v4239 = vpop.xlane.xlu0 %4238
    %v4240 = vsel %vm1111, %v4207, 0.0
    %4241 = vadd.xlane.f32.xlu0 %v4240
    %v4242 = vpop.xlane.xlu0 %4241
    %v4243 = vsel %vm1111, %v4209, 0.0
    %4244 = vadd.xlane.f32.xlu0 %v4243
    %v4245 = vpop.xlane.xlu0 %4244
    %v4246 = vsel %vm1111, %v4211, 0.0
    %4247 = vadd.xlane.f32.xlu0 %v4246
    %v4248 = vpop.xlane.xlu0 %4247
    %v4249 = vsel %vm1111, %v4213, 0.0
    %4250 = vadd.xlane.f32.xlu0 %v4249
    %v4251 = vpop.xlane.xlu0 %4250
    %v4252 = vsel %vm1111, %v4215, 0.0
    %4253 = vadd.xlane.f32.xlu0 %v4252
    %v4254 = vpop.xlane.xlu0 %4253
    %v4255 = vsel %vm1111, %v4217, 0.0
    %4256 = vadd.xlane.f32.xlu0 %v4255
    %v4257 = vpop.xlane.xlu0 %4256
    %v4258 = vsel %vm1111, %v4219, 0.0
    %4259 = vadd.xlane.f32.xlu0 %v4258
    %v4260 = vpop.xlane.xlu0 %4259
    %v4261 = vsel %vm1111, %v4221, 0.0
    %4262 = vadd.xlane.f32.xlu0 %v4261
    %v4263 = vpop.xlane.xlu0 %4262
    %v4264 = vsel %vm1111, %v4223, 0.0
    %4265 = vadd.xlane.f32.xlu0 %v4264
    %v4266 = vpop.xlane.xlu0 %4265
    %v4267 = vsel %vm1111, %v4225, 0.0
    %4268 = vadd.xlane.f32.xlu0 %v4267
    %v4269 = vpop.xlane.xlu0 %4268
    %v4270 = vsel %vm1111, %v4227, 0.0
    %4271 = vadd.xlane.f32.xlu0 %v4270
    %v4272 = vpop.xlane.xlu0 %4271
    %v4273 = vsel %vm1111, %v4229, 0.0
    %4274 = vadd.xlane.f32.xlu0 %v4273
    %v4275 = vpop.xlane.xlu0 %4274
    %v4276 = vsel %vm1111, %v4231, 0.0
    %4277 = vadd.xlane.f32.xlu0 %v4276
    %v4278 = vpop.xlane.xlu0 %4277
    %v4279 = vsel %vm1111, %v4233, 0.0
    %4280 = vadd.xlane.f32.xlu0 %v4279
    %v4281 = vpop.xlane.xlu0 %4280
    %v4282 = vrcp.pop %v4236
    %v4283 = vrcp.pop %v4239
    %v4284 = vrcp.pop %v4242
    %v4285 = vrcp.pop %v4245
    %v4286 = vrcp.pop %v4248
    %v4287 = vrcp.pop %v4251
    %v4288 = vrcp.pop %v4254
    %v4289 = vrcp.pop %v4257
    %v4290 = vrcp.pop %v4260
    %v4291 = vrcp.pop %v4263
    %v4292 = vrcp.pop %v4266
    %v4293 = vrcp.pop %v4269
    %v4294 = vrcp.pop %v4272
    %v4295 = vrcp.pop %v4275
    %v4296 = vrcp.pop %v4278
    %v4297 = vrcp.pop %v4281
    %v4298 = vmul.f32 %v4203, %v4282
    %v4299 = vmul.f32 %v4205, %v4283
    %v4300 = vmul.f32 %v4207, %v4284
    %v4301 = vmul.f32 %v4209, %v4285
    %v4302 = vmul.f32 %v4211, %v4286
    %v4303 = vmul.f32 %v4213, %v4287
    %v4304 = vmul.f32 %v4215, %v4288
    %v4305 = vmul.f32 %v4217, %v4289
    %v4306 = vmul.f32 %v4219, %v4290
    %v4307 = vmul.f32 %v4221, %v4291
    %v4308 = vmul.f32 %v4223, %v4292
    %v4309 = vmul.f32 %v4225, %v4293
    %v4310 = vmul.f32 %v4227, %v4294
    %v4311 = vmul.f32 %v4229, %v4295
    %v4312 = vmul.f32 %v4231, %v4296
    %v4313 = vmul.f32 %v4233, %v4297
    %4314 = vrot.lane.b32.xlu0 %v726, 104
    %v4315 = vpop.permute.xlu0 %4314
    %4316 = vrot.lane.b32.xlu0 %v731, 104
    %v4317 = vpop.permute.xlu0 %4316
    %4318 = vrot.lane.b32.xlu0 %v736, 104
    %v4319 = vpop.permute.xlu0 %4318
    %4320 = vrot.lane.b32.xlu0 %v741, 104
    %v4321 = vpop.permute.xlu0 %4320
    %4322 = vrot.lane.b32.xlu0 %v746, 104
    %v4323 = vpop.permute.xlu0 %4322
    %4324 = vrot.lane.b32.xlu0 %v751, 104
    %v4325 = vpop.permute.xlu0 %4324
    %4326 = vrot.lane.b32.xlu0 %v756, 104
    %v4327 = vpop.permute.xlu0 %4326
    %4328 = vrot.lane.b32.xlu0 %v761, 104
    %v4329 = vpop.permute.xlu0 %4328
    %v4339 = vsel %vm1111, %v4298, 0
    %v4342 = vsel %vm1111, %v4299, 0
    %v4345 = vsel %vm1111, %v4300, 0
    %v4348 = vsel %vm1111, %v4301, 0
    %v4351 = vsel %vm1111, %v4302, 0
    %v4354 = vsel %vm1111, %v4303, 0
    %v4357 = vsel %vm1111, %v4304, 0
    %v4360 = vsel %vm1111, %v4305, 0
    %4362 = vmatprep.subr.mxu0 0.0
    %4363 = vmatpush1.msra.mxu0 %v4315
    %4364 = vmatprep.subr.mxu0 0.0
    %4365 = vmatpush1.msra.mxu0 %v4317
    %4366 = vmatprep.subr.mxu0 0.0
    %4367 = vmatpush1.msra.mxu0 %v4319
    %4368 = vmatprep.subr.mxu0 0.0
    %4369 = vmatpush1.msra.mxu0 %v4321
    %4370 = vmatprep.subr.mxu0 0.0
    %4371 = vmatpush1.msra.mxu0 %v4323
    %4372 = vmatprep.subr.mxu0 0.0
    %4373 = vmatpush1.msra.mxu0 %v4325
    %4374 = vmatprep.subr.mxu0 0.0
    %4375 = vmatpush1.msra.mxu0 %v4327
    %4376 = vmatprep.subr.mxu0 0.0
    %4377 = vmatpush1.msra.mxu0 %v4329
    %4378 = vmatprep.subr.mxu0 0.0
    %4379 = vmatpush1.msra.mxu0 0.0
    %4380 = vmatprep.subr.mxu0 0.0
    %4381 = vmatpush1.msra.mxu0 0.0
    %4382 = vmatprep.subr.mxu0 0.0
    %4383 = vmatpush1.msra.mxu0 0.0
    %4384 = vmatprep.subr.mxu0 0.0
    %4385 = vmatpush1.msra.mxu0 0.0
    %4386 = vmatprep.subr.mxu0 0.0
    %4387 = vmatpush1.msra.mxu0 0.0
    %4388 = vmatprep.subr.mxu0 0.0
    %4389 = vmatpush1.msra.mxu0 0.0
    %4390 = vmatprep.subr.mxu0 0.0
    %4391 = vmatpush1.msra.mxu0 0.0
    %4392 = vmatprep.subr.mxu0 0.0
    %4393 = vmatpush1.msra.mxu0 0.0
    %4394 = vmatprep.subr.mxu0 0.0
    %4395 = vmatpush1.msra.mxu0 0.0
    %4396 = vmatprep.subr.mxu0 0.0
    %4397 = vmatpush1.msra.mxu0 0.0
    %4398 = vmatprep.subr.mxu0 0.0
    %4399 = vmatpush1.msra.mxu0 0.0
    %4400 = vmatprep.subr.mxu0 0.0
    %4401 = vmatpush1.msra.mxu0 0.0
    %4402 = vmatprep.subr.mxu0 0.0
    %4403 = vmatpush1.msra.mxu0 0.0
    %4404 = vmatprep.subr.mxu0 0.0
    %4405 = vmatpush1.msra.mxu0 0.0
    %4406 = vmatprep.subr.mxu0 0.0
    %4407 = vmatpush1.msra.mxu0 0.0
    %4408 = vmatprep.subr.mxu0 0.0
    %4409 = vmatpush1.msra.mxu0 0.0
    %4410 = vmatprep.subr.mxu0 0.0
    %4411 = vmatpush1.msra.mxu0 0.0
    %4412 = vmatprep.subr.mxu0 0.0
    %4413 = vmatpush1.msra.mxu0 0.0
    %4414 = vmatprep.subr.mxu0 0.0
    %4415 = vmatpush1.msra.mxu0 0.0
    %4416 = vmatprep.subr.mxu0 0.0
    %4417 = vmatpush1.msra.mxu0 0.0
    %4418 = vmatprep.subr.mxu0 0.0
    %4419 = vmatpush1.msra.mxu0 0.0
    %4420 = vmatprep.subr.mxu0 0.0
    %4421 = vmatpush1.msra.mxu0 0.0
    %4422 = vmatprep.subr.mxu0 0.0
    %4423 = vmatpush1.msra.mxu0 0.0
    %4424 = vmatprep.subr.mxu0 0.0
    %4425 = vmatpush1.msra.mxu0 0.0
    %4426 = vmatprep.mubr.f32.mxu0 0.0
    %4427 = vmatmul.mubr.f32.gmra.mrb[0].mxu0 %v4339
    %v4428 = vpop.f32.mrb[0].mxu0
    %v4429 = vadd.f32 0.0, %v4428
    %v4430 = vpop.f32.mrb[0].mxu0
    %4431 = vmatprep.mubr.f32.mxu0 0.0
    %4432 = vmatmul.mubr.f32.gmra.mrb[0].mxu0 %v4342
    %v4433 = vpop.f32.mrb[0].mxu0
    %v4434 = vadd.f32 0.0, %v4433
    %v4435 = vpop.f32.mrb[0].mxu0
    %4436 = vmatprep.mubr.f32.mxu0 0.0
    %4437 = vmatmul.mubr.f32.gmra.mrb[0].mxu0 %v4345
    %v4438 = vpop.f32.mrb[0].mxu0
    %v4439 = vadd.f32 0.0, %v4438
    %v4440 = vpop.f32.mrb[0].mxu0
    %4441 = vmatprep.mubr.f32.mxu0 0.0
    %4442 = vmatmul.mubr.f32.gmra.mrb[0].mxu0 %v4348
    %v4443 = vpop.f32.mrb[0].mxu0
    %v4444 = vadd.f32 0.0, %v4443
    %v4445 = vpop.f32.mrb[0].mxu0
    %4446 = vmatprep.mubr.f32.mxu0 0.0
    %4447 = vmatmul.mubr.f32.gmra.mrb[0].mxu0 %v4351
    %v4448 = vpop.f32.mrb[0].mxu0
    %v4449 = vadd.f32 0.0, %v4448
    %v4450 = vpop.f32.mrb[0].mxu0
    %4451 = vmatprep.mubr.f32.mxu0 0.0
    %4452 = vmatmul.mubr.f32.gmra.mrb[0].mxu0 %v4354
    %v4453 = vpop.f32.mrb[0].mxu0
    %v4454 = vadd.f32 0.0, %v4453
    %v4455 = vpop.f32.mrb[0].mxu0
    %4456 = vmatprep.mubr.f32.mxu0 0.0
    %4457 = vmatmul.mubr.f32.gmra.mrb[0].mxu0 %v4357
    %v4458 = vpop.f32.mrb[0].mxu0
    %v4459 = vadd.f32 0.0, %v4458
    %v4460 = vpop.f32.mrb[0].mxu0
    %4461 = vmatprep.mubr.f32.mxu0 0.0
    %4462 = vmatmul.mubr.f32.gmra.mrb[0].mxu0 %v4360
    %v4463 = vpop.f32.mrb[0].mxu0
    %v4464 = vadd.f32 0.0, %v4463
    %v4465 = vpop.f32.mrb[0].mxu0
    %4466 = vdwg.mxu0
    %4467 = vrot.lane.b32.xlu0 %v766, 104
    %v4468 = vpop.permute.xlu0 %4467
    %4469 = vrot.lane.b32.xlu0 %v771, 104
    %v4470 = vpop.permute.xlu0 %4469
    %4471 = vrot.lane.b32.xlu0 %v776, 104
    %v4472 = vpop.permute.xlu0 %4471
    %4473 = vrot.lane.b32.xlu0 %v781, 104
    %v4474 = vpop.permute.xlu0 %4473
    %4475 = vrot.lane.b32.xlu0 %v786, 104
    %v4476 = vpop.permute.xlu0 %4475
    %4477 = vrot.lane.b32.xlu0 %v791, 104
    %v4478 = vpop.permute.xlu0 %4477
    %4479 = vrot.lane.b32.xlu0 %v796, 104
    %v4480 = vpop.permute.xlu0 %4479
    %4481 = vrot.lane.b32.xlu0 %v801, 104
    %v4482 = vpop.permute.xlu0 %4481
    %v4492 = vsel %vm1111, %v4306, 0
    %v4495 = vsel %vm1111, %v4307, 0
    %v4498 = vsel %vm1111, %v4308, 0
    %v4501 = vsel %vm1111, %v4309, 0
    %v4504 = vsel %vm1111, %v4310, 0
    %v4507 = vsel %vm1111, %v4311, 0
    %v4510 = vsel %vm1111, %v4312, 0
    %v4513 = vsel %vm1111, %v4313, 0
    %4515 = vmatprep.subr.mxu0 0.0
    %4516 = vmatpush1.msra.mxu0 %v4468
    %4517 = vmatprep.subr.mxu0 0.0
    %4518 = vmatpush1.msra.mxu0 %v4470
    %4519 = vmatprep.subr.mxu0 0.0
    %4520 = vmatpush1.msra.mxu0 %v4472
    %4521 = vmatprep.subr.mxu0 0.0
    %4522 = vmatpush1.msra.mxu0 %v4474
    %4523 = vmatprep.subr.mxu0 0.0
    %4524 = vmatpush1.msra.mxu0 %v4476
    %4525 = vmatprep.subr.mxu0 0.0
    %4526 = vmatpush1.msra.mxu0 %v4478
    %4527 = vmatprep.subr.mxu0 0.0
    %4528 = vmatpush1.msra.mxu0 %v4480
    %4529 = vmatprep.subr.mxu0 0.0
    %4530 = vmatpush1.msra.mxu0 %v4482
    %4531 = vmatprep.subr.mxu0 0.0
    %4532 = vmatpush1.msra.mxu0 0.0
    %4533 = vmatprep.subr.mxu0 0.0
    %4534 = vmatpush1.msra.mxu0 0.0
    %4535 = vmatprep.subr.mxu0 0.0
    %4536 = vmatpush1.msra.mxu0 0.0
    %4537 = vmatprep.subr.mxu0 0.0
    %4538 = vmatpush1.msra.mxu0 0.0
    %4539 = vmatprep.subr.mxu0 0.0
    %4540 = vmatpush1.msra.mxu0 0.0
    %4541 = vmatprep.subr.mxu0 0.0
    %4542 = vmatpush1.msra.mxu0 0.0
    %4543 = vmatprep.subr.mxu0 0.0
    %4544 = vmatpush1.msra.mxu0 0.0
    %4545 = vmatprep.subr.mxu0 0.0
    %4546 = vmatpush1.msra.mxu0 0.0
    %4547 = vmatprep.subr.mxu0 0.0
    %4548 = vmatpush1.msra.mxu0 0.0
    %4549 = vmatprep.subr.mxu0 0.0
    %4550 = vmatpush1.msra.mxu0 0.0
    %4551 = vmatprep.subr.mxu0 0.0
    %4552 = vmatpush1.msra.mxu0 0.0
    %4553 = vmatprep.subr.mxu0 0.0
    %4554 = vmatpush1.msra.mxu0 0.0
    %4555 = vmatprep.subr.mxu0 0.0
    %4556 = vmatpush1.msra.mxu0 0.0
    %4557 = vmatprep.subr.mxu0 0.0
    %4558 = vmatpush1.msra.mxu0 0.0
    %4559 = vmatprep.subr.mxu0 0.0
    %4560 = vmatpush1.msra.mxu0 0.0
    %4561 = vmatprep.subr.mxu0 0.0
    %4562 = vmatpush1.msra.mxu0 0.0
    %4563 = vmatprep.subr.mxu0 0.0
    %4564 = vmatpush1.msra.mxu0 0.0
    %4565 = vmatprep.subr.mxu0 0.0
    %4566 = vmatpush1.msra.mxu0 0.0
    %4567 = vmatprep.subr.mxu0 0.0
    %4568 = vmatpush1.msra.mxu0 0.0
    %4569 = vmatprep.subr.mxu0 0.0
    %4570 = vmatpush1.msra.mxu0 0.0
    %4571 = vmatprep.subr.mxu0 0.0
    %4572 = vmatpush1.msra.mxu0 0.0
    %4573 = vmatprep.subr.mxu0 0.0
    %4574 = vmatpush1.msra.mxu0 0.0
    %4575 = vmatprep.subr.mxu0 0.0
    %4576 = vmatpush1.msra.mxu0 0.0
    %4577 = vmatprep.subr.mxu0 0.0
    %4578 = vmatpush1.msra.mxu0 0.0
    %4579 = vmatprep.mubr.f32.mxu0 0.0
    %4580 = vmatmul.mubr.f32.gmra.mrb[0].mxu0 %v4492
    %v4581 = vpop.f32.mrb[0].mxu0
    %v4582 = vadd.f32 0.0, %v4581
    %v4583 = vpop.f32.mrb[0].mxu0
    %4584 = vmatprep.mubr.f32.mxu0 0.0
    %4585 = vmatmul.mubr.f32.gmra.mrb[0].mxu0 %v4495
    %v4586 = vpop.f32.mrb[0].mxu0
    %v4587 = vadd.f32 0.0, %v4586
    %v4588 = vpop.f32.mrb[0].mxu0
    %4589 = vmatprep.mubr.f32.mxu0 0.0
    %4590 = vmatmul.mubr.f32.gmra.mrb[0].mxu0 %v4498
    %v4591 = vpop.f32.mrb[0].mxu0
    %v4592 = vadd.f32 0.0, %v4591
    %v4593 = vpop.f32.mrb[0].mxu0
    %4594 = vmatprep.mubr.f32.mxu0 0.0
    %4595 = vmatmul.mubr.f32.gmra.mrb[0].mxu0 %v4501
    %v4596 = vpop.f32.mrb[0].mxu0
    %v4597 = vadd.f32 0.0, %v4596
    %v4598 = vpop.f32.mrb[0].mxu0
    %4599 = vmatprep.mubr.f32.mxu0 0.0
    %4600 = vmatmul.mubr.f32.gmra.mrb[0].mxu0 %v4504
    %v4601 = vpop.f32.mrb[0].mxu0
    %v4602 = vadd.f32 0.0, %v4601
    %v4603 = vpop.f32.mrb[0].mxu0
    %4604 = vmatprep.mubr.f32.mxu0 0.0
    %4605 = vmatmul.mubr.f32.gmra.mrb[0].mxu0 %v4507
    %v4606 = vpop.f32.mrb[0].mxu0
    %v4607 = vadd.f32 0.0, %v4606
    %v4608 = vpop.f32.mrb[0].mxu0
    %4609 = vmatprep.mubr.f32.mxu0 0.0
    %4610 = vmatmul.mubr.f32.gmra.mrb[0].mxu0 %v4510
    %v4611 = vpop.f32.mrb[0].mxu0
    %v4612 = vadd.f32 0.0, %v4611
    %v4613 = vpop.f32.mrb[0].mxu0
    %4614 = vmatprep.mubr.f32.mxu0 0.0
    %4615 = vmatmul.mubr.f32.gmra.mrb[0].mxu0 %v4513
    %v4616 = vpop.f32.mrb[0].mxu0
    %v4617 = vadd.f32 0.0, %v4616
    %v4618 = vpop.f32.mrb[0].mxu0
    %4619 = vdwg.mxu0
    %v4620 = vld [vmem:[#allocation11 + $0x18] sm:$0xff]
    %v4622 = vsel %vm804, %v4429, 0
    %v4625 = vsel %vm804, %v4434, 0
    %v4628 = vsel %vm804, %v4439, 0
    %v4631 = vsel %vm804, %v4444, 0
    %v4634 = vsel %vm804, %v4449, 0
    %v4637 = vsel %vm804, %v4454, 0
    %v4640 = vsel %vm804, %v4459, 0
    %v4643 = vsel %vm804, %v4464, 0
    %v4646 = vsel %vm804, %v4582, 0
    %v4649 = vsel %vm804, %v4587, 0
    %v4652 = vsel %vm804, %v4592, 0
    %v4655 = vsel %vm804, %v4597, 0
    %v4658 = vsel %vm804, %v4602, 0
    %v4661 = vsel %vm804, %v4607, 0
    %v4664 = vsel %vm804, %v4612, 0
    %v4667 = vsel %vm804, %v4617, 0
    %4669 = vmatprep.subr.mxu0 0.0
    %4670 = vmatpush1.msra.mxu0 %v4620
    %4671 = vmatprep.subr.mxu0 0.0
    %4672 = vmatpush1.msra.mxu0 0.0
    %4673 = vmatprep.subr.mxu0 0.0
    %4674 = vmatpush1.msra.mxu0 0.0
    %4675 = vmatprep.subr.mxu0 0.0
    %4676 = vmatpush1.msra.mxu0 0.0
    %4677 = vmatprep.subr.mxu0 0.0
    %4678 = vmatpush1.msra.mxu0 0.0
    %4679 = vmatprep.subr.mxu0 0.0
    %4680 = vmatpush1.msra.mxu0 0.0
    %4681 = vmatprep.subr.mxu0 0.0
    %4682 = vmatpush1.msra.mxu0 0.0
    %4683 = vmatprep.subr.mxu0 0.0
    %4684 = vmatpush1.msra.mxu0 0.0
    %4685 = vmatprep.subr.mxu0 0.0
    %4686 = vmatpush1.msra.mxu0 0.0
    %4687 = vmatprep.subr.mxu0 0.0
    %4688 = vmatpush1.msra.mxu0 0.0
    %4689 = vmatprep.subr.mxu0 0.0
    %4690 = vmatpush1.msra.mxu0 0.0
    %4691 = vmatprep.subr.mxu0 0.0
    %4692 = vmatpush1.msra.mxu0 0.0
    %4693 = vmatprep.subr.mxu0 0.0
    %4694 = vmatpush1.msra.mxu0 0.0
    %4695 = vmatprep.subr.mxu0 0.0
    %4696 = vmatpush1.msra.mxu0 0.0
    %4697 = vmatprep.subr.mxu0 0.0
    %4698 = vmatpush1.msra.mxu0 0.0
    %4699 = vmatprep.subr.mxu0 0.0
    %4700 = vmatpush1.msra.mxu0 0.0
    %4701 = vmatprep.subr.mxu0 0.0
    %4702 = vmatpush1.msra.mxu0 0.0
    %4703 = vmatprep.subr.mxu0 0.0
    %4704 = vmatpush1.msra.mxu0 0.0
    %4705 = vmatprep.subr.mxu0 0.0
    %4706 = vmatpush1.msra.mxu0 0.0
    %4707 = vmatprep.subr.mxu0 0.0
    %4708 = vmatpush1.msra.mxu0 0.0
    %4709 = vmatprep.subr.mxu0 0.0
    %4710 = vmatpush1.msra.mxu0 0.0
    %4711 = vmatprep.subr.mxu0 0.0
    %4712 = vmatpush1.msra.mxu0 0.0
    %4713 = vmatprep.subr.mxu0 0.0
    %4714 = vmatpush1.msra.mxu0 0.0
    %4715 = vmatprep.subr.mxu0 0.0
    %4716 = vmatpush1.msra.mxu0 0.0
    %4717 = vmatprep.subr.mxu0 0.0
    %4718 = vmatpush1.msra.mxu0 0.0
    %4719 = vmatprep.subr.mxu0 0.0
    %4720 = vmatpush1.msra.mxu0 0.0
    %4721 = vmatprep.subr.mxu0 0.0
    %4722 = vmatpush1.msra.mxu0 0.0
    %4723 = vmatprep.subr.mxu0 0.0
    %4724 = vmatpush1.msra.mxu0 0.0
    %4725 = vmatprep.subr.mxu0 0.0
    %4726 = vmatpush1.msra.mxu0 0.0
    %4727 = vmatprep.subr.mxu0 0.0
    %4728 = vmatpush1.msra.mxu0 0.0
    %4729 = vmatprep.subr.mxu0 0.0
    %4730 = vmatpush1.msra.mxu0 0.0
    %4731 = vmatprep.subr.mxu0 0.0
    %4732 = vmatpush1.msra.mxu0 0.0
    %4733 = vmatprep.mubr.f32.mxu0 0.0
    %4734 = vmatmul.mubr.f32.gmra.mrb[0].mxu0 %v4622
    %v4735 = vpop.f32.mrb[0].mxu0
    %v4736 = vadd.f32 0.0, %v4735
    %v4737 = vpop.f32.mrb[0].mxu0
    %4738 = vmatprep.mubr.f32.mxu0 0.0
    %4739 = vmatmul.mubr.f32.gmra.mrb[0].mxu0 %v4625
    %v4740 = vpop.f32.mrb[0].mxu0
    %v4741 = vadd.f32 0.0, %v4740
    %v4742 = vpop.f32.mrb[0].mxu0
    %4743 = vmatprep.mubr.f32.mxu0 0.0
    %4744 = vmatmul.mubr.f32.gmra.mrb[0].mxu0 %v4628
    %v4745 = vpop.f32.mrb[0].mxu0
    %v4746 = vadd.f32 0.0, %v4745
    %v4747 = vpop.f32.mrb[0].mxu0
    %4748 = vmatprep.mubr.f32.mxu0 0.0
    %4749 = vmatmul.mubr.f32.gmra.mrb[0].mxu0 %v4631
    %v4750 = vpop.f32.mrb[0].mxu0
    %v4751 = vadd.f32 0.0, %v4750
    %v4752 = vpop.f32.mrb[0].mxu0
    %4753 = vmatprep.mubr.f32.mxu0 0.0
    %4754 = vmatmul.mubr.f32.gmra.mrb[0].mxu0 %v4634
    %v4755 = vpop.f32.mrb[0].mxu0
    %v4756 = vadd.f32 0.0, %v4755
    %v4757 = vpop.f32.mrb[0].mxu0
    %4758 = vmatprep.mubr.f32.mxu0 0.0
    %4759 = vmatmul.mubr.f32.gmra.mrb[0].mxu0 %v4637
    %v4760 = vpop.f32.mrb[0].mxu0
    %v4761 = vadd.f32 0.0, %v4760
    %v4762 = vpop.f32.mrb[0].mxu0
    %4763 = vmatprep.mubr.f32.mxu0 0.0
    %4764 = vmatmul.mubr.f32.gmra.mrb[0].mxu0 %v4640
    %v4765 = vpop.f32.mrb[0].mxu0
    %v4766 = vadd.f32 0.0, %v4765
    %v4767 = vpop.f32.mrb[0].mxu0
    %4768 = vmatprep.mubr.f32.mxu0 0.0
    %4769 = vmatmul.mubr.f32.gmra.mrb[0].mxu0 %v4643
    %v4770 = vpop.f32.mrb[0].mxu0
    %v4771 = vadd.f32 0.0, %v4770
    %v4772 = vpop.f32.mrb[0].mxu0
    %4773 = vmatprep.mubr.f32.mxu0 0.0
    %4774 = vmatmul.mubr.f32.gmra.mrb[0].mxu0 %v4646
    %v4775 = vpop.f32.mrb[0].mxu0
    %v4776 = vadd.f32 0.0, %v4775
    %v4777 = vpop.f32.mrb[0].mxu0
    %4778 = vmatprep.mubr.f32.mxu0 0.0
    %4779 = vmatmul.mubr.f32.gmra.mrb[0].mxu0 %v4649
    %v4780 = vpop.f32.mrb[0].mxu0
    %v4781 = vadd.f32 0.0, %v4780
    %v4782 = vpop.f32.mrb[0].mxu0
    %4783 = vmatprep.mubr.f32.mxu0 0.0
    %4784 = vmatmul.mubr.f32.gmra.mrb[0].mxu0 %v4652
    %v4785 = vpop.f32.mrb[0].mxu0
    %v4786 = vadd.f32 0.0, %v4785
    %v4787 = vpop.f32.mrb[0].mxu0
    %4788 = vmatprep.mubr.f32.mxu0 0.0
    %4789 = vmatmul.mubr.f32.gmra.mrb[0].mxu0 %v4655
    %v4790 = vpop.f32.mrb[0].mxu0
    %v4791 = vadd.f32 0.0, %v4790
    %v4792 = vpop.f32.mrb[0].mxu0
    %4793 = vmatprep.mubr.f32.mxu0 0.0
    %4794 = vmatmul.mubr.f32.gmra.mrb[0].mxu0 %v4658
    %v4795 = vpop.f32.mrb[0].mxu0
    %v4796 = vadd.f32 0.0, %v4795
    %v4797 = vpop.f32.mrb[0].mxu0
    %4798 = vmatprep.mubr.f32.mxu0 0.0
    %4799 = vmatmul.mubr.f32.gmra.mrb[0].mxu0 %v4661
    %v4800 = vpop.f32.mrb[0].mxu0
    %v4801 = vadd.f32 0.0, %v4800
    %v4802 = vpop.f32.mrb[0].mxu0
    %4803 = vmatprep.mubr.f32.mxu0 0.0
    %4804 = vmatmul.mubr.f32.gmra.mrb[0].mxu0 %v4664
    %v4805 = vpop.f32.mrb[0].mxu0
    %v4806 = vadd.f32 0.0, %v4805
    %v4807 = vpop.f32.mrb[0].mxu0
    %4808 = vmatprep.mubr.f32.mxu0 0.0
    %4809 = vmatmul.mubr.f32.gmra.mrb[0].mxu0 %v4667
    %v4810 = vpop.f32.mrb[0].mxu0
    %v4811 = vadd.f32 0.0, %v4810
    %v4812 = vpop.f32.mrb[0].mxu0
    %4813 = vdwg.mxu0
    %v4814 = vadd.f32 %v3784, %v4736
    %v4815 = vadd.f32 %v3785, %v4741
    %v4816 = vadd.f32 %v3786, %v4746
    %v4817 = vadd.f32 %v3787, %v4751
    %v4818 = vadd.f32 %v3788, %v4756
    %v4819 = vadd.f32 %v3789, %v4761
    %v4820 = vadd.f32 %v3790, %v4766
    %v4821 = vadd.f32 %v3791, %v4771
    %v4822 = vadd.f32 %v3792, %v4776
    %v4823 = vadd.f32 %v3793, %v4781
    %v4824 = vadd.f32 %v3794, %v4786
    %v4825 = vadd.f32 %v3795, %v4791
    %v4826 = vadd.f32 %v3796, %v4796
    %v4827 = vadd.f32 %v3797, %v4801
    %v4828 = vadd.f32 %v3798, %v4806
    %v4829 = vadd.f32 %v3799, %v4811
    %v4830 = vld [vmem:[%s10] sm:$0x1]
    %v4832 = vlaneseq
    %v4833 = vshrl.u32 %v4832, 7
    %v4834 = vsub.s32 0, %v4833
    %v4835 = vrot.slane %v4830, %v4834
    %v4837 = vadd.f32 %v4814, %v4835
    %v4838 = vadd.f32 %v4815, %v4835
    %v4839 = vadd.f32 %v4816, %v4835
    %v4840 = vadd.f32 %v4817, %v4835
    %v4841 = vadd.f32 %v4818, %v4835
    %v4842 = vadd.f32 %v4819, %v4835
    %v4843 = vadd.f32 %v4820, %v4835
    %v4844 = vadd.f32 %v4821, %v4835
    %v4845 = vadd.f32 %v4822, %v4835
    %v4846 = vadd.f32 %v4823, %v4835
    %v4847 = vadd.f32 %v4824, %v4835
    %v4848 = vadd.f32 %v4825, %v4835
    %v4849 = vadd.f32 %v4826, %v4835
    %v4850 = vadd.f32 %v4827, %v4835
    %v4851 = vadd.f32 %v4828, %v4835
    %v4852 = vadd.f32 %v4829, %v4835
    %v4853 = vsel %vm186, %v4837, 0.0
    %v4854 = vsel %vm186, %v4838, 0.0
    %v4855 = vadd.f32 %v4853, %v4854
    %v4856 = vsel %vm186, %v4839, 0.0
    %v4857 = vadd.f32 %v4855, %v4856
    %v4858 = vsel %vm186, %v4840, 0.0
    %v4859 = vadd.f32 %v4857, %v4858
    %v4860 = vsel %vm186, %v4841, 0.0
    %v4861 = vadd.f32 %v4859, %v4860
    %v4862 = vsel %vm186, %v4842, 0.0
    %v4863 = vadd.f32 %v4861, %v4862
    %v4864 = vsel %vm186, %v4843, 0.0
    %v4865 = vadd.f32 %v4863, %v4864
    %v4866 = vsel %vm186, %v4844, 0.0
    %v4867 = vadd.f32 %v4865, %v4866
    %v4868 = vsel %vm186, %v4845, 0.0
    %v4869 = vadd.f32 %v4867, %v4868
    %v4870 = vsel %vm186, %v4846, 0.0
    %v4871 = vadd.f32 %v4869, %v4870
    %v4872 = vsel %vm186, %v4847, 0.0
    %v4873 = vadd.f32 %v4871, %v4872
    %v4874 = vsel %vm186, %v4848, 0.0
    %v4875 = vadd.f32 %v4873, %v4874
    %v4876 = vsel %vm186, %v4849, 0.0
    %v4877 = vadd.f32 %v4875, %v4876
    %v4878 = vsel %vm186, %v4850, 0.0
    %v4879 = vadd.f32 %v4877, %v4878
    %v4880 = vsel %vm186, %v4851, 0.0
    %v4881 = vadd.f32 %v4879, %v4880
    %v4882 = vsel %vm186, %v4852, 0.0
    %v4883 = vadd.f32 %v4881, %v4882
    %v4884 = vrot.slane %v4883, 4
    %v4885 = vadd.f32 %v4883, %v4884
    %v4886 = vrot.slane %v4885, 2
    %v4887 = vadd.f32 %v4885, %v4886
    %v4888 = vrot.slane %v4887, 1
    %v4889 = vadd.f32 %v4887, %v4888
    %v4890 = vrcp.pop 128.0
    %v4891 = vmul.f32 %v4889, %v4890
    %v4892 = vmul.f32 %v4837, %v4837
    %v4893 = vmul.f32 %v4838, %v4838
    %v4894 = vmul.f32 %v4839, %v4839
    %v4895 = vmul.f32 %v4840, %v4840
    %v4896 = vmul.f32 %v4841, %v4841
    %v4897 = vmul.f32 %v4842, %v4842
    %v4898 = vmul.f32 %v4843, %v4843
    %v4899 = vmul.f32 %v4844, %v4844
    %v4900 = vmul.f32 %v4845, %v4845
    %v4901 = vmul.f32 %v4846, %v4846
    %v4902 = vmul.f32 %v4847, %v4847
    %v4903 = vmul.f32 %v4848, %v4848
    %v4904 = vmul.f32 %v4849, %v4849
    %v4905 = vmul.f32 %v4850, %v4850
    %v4906 = vmul.f32 %v4851, %v4851
    %v4907 = vmul.f32 %v4852, %v4852
    %v4908 = vsel %vm186, %v4892, 0.0
    %v4909 = vsel %vm186, %v4893, 0.0
    %v4910 = vadd.f32 %v4908, %v4909
    %v4911 = vsel %vm186, %v4894, 0.0
    %v4912 = vadd.f32 %v4910, %v4911
    %v4913 = vsel %vm186, %v4895, 0.0
    %v4914 = vadd.f32 %v4912, %v4913
    %v4915 = vsel %vm186, %v4896, 0.0
    %v4916 = vadd.f32 %v4914, %v4915
    %v4917 = vsel %vm186, %v4897, 0.0
    %v4918 = vadd.f32 %v4916, %v4917
    %v4919 = vsel %vm186, %v4898, 0.0
    %v4920 = vadd.f32 %v4918, %v4919
    %v4921 = vsel %vm186, %v4899, 0.0
    %v4922 = vadd.f32 %v4920, %v4921
    %v4923 = vsel %vm186, %v4900, 0.0
    %v4924 = vadd.f32 %v4922, %v4923
    %v4925 = vsel %vm186, %v4901, 0.0
    %v4926 = vadd.f32 %v4924, %v4925
    %v4927 = vsel %vm186, %v4902, 0.0
    %v4928 = vadd.f32 %v4926, %v4927
    %v4929 = vsel %vm186, %v4903, 0.0
    %v4930 = vadd.f32 %v4928, %v4929
    %v4931 = vsel %vm186, %v4904, 0.0
    %v4932 = vadd.f32 %v4930, %v4931
    %v4933 = vsel %vm186, %v4905, 0.0
    %v4934 = vadd.f32 %v4932, %v4933
    %v4935 = vsel %vm186, %v4906, 0.0
    %v4936 = vadd.f32 %v4934, %v4935
    %v4937 = vsel %vm186, %v4907, 0.0
    %v4938 = vadd.f32 %v4936, %v4937
    %v4939 = vrot.slane %v4938, 4
    %v4940 = vadd.f32 %v4938, %v4939
    %v4941 = vrot.slane %v4940, 2
    %v4942 = vadd.f32 %v4940, %v4941
    %v4943 = vrot.slane %v4942, 1
    %v4944 = vadd.f32 %v4942, %v4943
    %v4945 = vmul.f32 %v4944, %v4890
    %v4946 = vmul.f32 %v4891, %v4891
    %v4947 = vsub.f32 %v4945, %v4946
    %v4948 = vsub.f32 %v4837, %v4891
    %v4949 = vsub.f32 %v4838, %v4891
    %v4950 = vsub.f32 %v4839, %v4891
    %v4951 = vsub.f32 %v4840, %v4891
    %v4952 = vsub.f32 %v4841, %v4891
    %v4953 = vsub.f32 %v4842, %v4891
    %v4954 = vsub.f32 %v4843, %v4891
    %v4955 = vsub.f32 %v4844, %v4891
    %v4956 = vsub.f32 %v4845, %v4891
    %v4957 = vsub.f32 %v4846, %v4891
    %v4958 = vsub.f32 %v4847, %v4891
    %v4959 = vsub.f32 %v4848, %v4891
    %v4960 = vsub.f32 %v4849, %v4891
    %v4961 = vsub.f32 %v4850, %v4891
    %v4962 = vsub.f32 %v4851, %v4891
    %v4963 = vsub.f32 %v4852, %v4891
    %v4964 = vadd.f32 %v4947, 1e-05
    %v4965 = vrsqrt.pop %v4964
    %v4966 = vmul.f32 %v4948, %v4965
    %v4967 = vmul.f32 %v4949, %v4965
    %v4968 = vmul.f32 %v4950, %v4965
    %v4969 = vmul.f32 %v4951, %v4965
    %v4970 = vmul.f32 %v4952, %v4965
    %v4971 = vmul.f32 %v4953, %v4965
    %v4972 = vmul.f32 %v4954, %v4965
    %v4973 = vmul.f32 %v4955, %v4965
    %v4974 = vmul.f32 %v4956, %v4965
    %v4975 = vmul.f32 %v4957, %v4965
    %v4976 = vmul.f32 %v4958, %v4965
    %v4977 = vmul.f32 %v4959, %v4965
    %v4978 = vmul.f32 %v4960, %v4965
    %v4979 = vmul.f32 %v4961, %v4965
    %v4980 = vmul.f32 %v4962, %v4965
    %v4981 = vmul.f32 %v4963, %v4965
    %v4982 = vld [vmem:[%s11] sm:$0x1]
    %v4984 = vlaneseq
    %v4985 = vshrl.u32 %v4984, 7
    %v4986 = vsub.s32 0, %v4985
    %v4987 = vrot.slane %v4982, %v4986
    %v4989 = vmul.f32 %v4966, %v4987
    %v4990 = vmul.f32 %v4967, %v4987
    %v4991 = vmul.f32 %v4968, %v4987
    %v4992 = vmul.f32 %v4969, %v4987
    %v4993 = vmul.f32 %v4970, %v4987
    %v4994 = vmul.f32 %v4971, %v4987
    %v4995 = vmul.f32 %v4972, %v4987
    %v4996 = vmul.f32 %v4973, %v4987
    %v4997 = vmul.f32 %v4974, %v4987
    %v4998 = vmul.f32 %v4975, %v4987
    %v4999 = vmul.f32 %v4976, %v4987
    %v5000 = vmul.f32 %v4977, %v4987
    %v5001 = vmul.f32 %v4978, %v4987
    %v5002 = vmul.f32 %v4979, %v4987
    %v5003 = vmul.f32 %v4980, %v4987
    %v5004 = vmul.f32 %v4981, %v4987
    %v5005 = vld [vmem:[%s12] sm:$0x1]
    %v5007 = vlaneseq
    %v5008 = vshrl.u32 %v5007, 7
    %v5009 = vsub.s32 0, %v5008
    %v5010 = vrot.slane %v5005, %v5009
    %v5012 = vadd.f32 %v4989, %v5010
    %v5013 = vadd.f32 %v4990, %v5010
    %v5014 = vadd.f32 %v4991, %v5010
    %v5015 = vadd.f32 %v4992, %v5010
    %v5016 = vadd.f32 %v4993, %v5010
    %v5017 = vadd.f32 %v4994, %v5010
    %v5018 = vadd.f32 %v4995, %v5010
    %v5019 = vadd.f32 %v4996, %v5010
    %v5020 = vadd.f32 %v4997, %v5010
    %v5021 = vadd.f32 %v4998, %v5010
    %v5022 = vadd.f32 %v4999, %v5010
    %v5023 = vadd.f32 %v5000, %v5010
    %v5024 = vadd.f32 %v5001, %v5010
    %v5025 = vadd.f32 %v5002, %v5010
    %v5026 = vadd.f32 %v5003, %v5010
    %v5027 = vadd.f32 %v5004, %v5010
    %5028 = vst.msk [vmem:[#allocation13] sm:$0xff] %vm186, %v5012
    %5029 = vst.msk [vmem:[#allocation13 + $0x8] sm:$0xff] %vm186, %v5013
    %5030 = vst.msk [vmem:[#allocation13 + $0x10] sm:$0xff] %vm186, %v5014
    %5031 = vst.msk [vmem:[#allocation13 + $0x18] sm:$0xff] %vm186, %v5015
    %5032 = vst.msk [vmem:[#allocation13 + $0x20] sm:$0xff] %vm186, %v5016
    %5033 = vst.msk [vmem:[#allocation13 + $0x28] sm:$0xff] %vm186, %v5017
    %5034 = vst.msk [vmem:[#allocation13 + $0x30] sm:$0xff] %vm186, %v5018
    %5035 = vst.msk [vmem:[#allocation13 + $0x38] sm:$0xff] %vm186, %v5019
    %5036 = vst.msk [vmem:[#allocation13 + $0x40] sm:$0xff] %vm186, %v5020
    %5037 = vst.msk [vmem:[#allocation13 + $0x48] sm:$0xff] %vm186, %v5021
    %5038 = vst.msk [vmem:[#allocation13 + $0x50] sm:$0xff] %vm186, %v5022
    %5039 = vst.msk [vmem:[#allocation13 + $0x58] sm:$0xff] %vm186, %v5023
    %5040 = vst.msk [vmem:[#allocation13 + $0x60] sm:$0xff] %vm186, %v5024
    %5041 = vst.msk [vmem:[#allocation13 + $0x68] sm:$0xff] %vm186, %v5025
    %5042 = vst.msk [vmem:[#allocation13 + $0x70] sm:$0xff] %vm186, %v5026
    %5043 = vst.msk [vmem:[#allocation13 + $0x78] sm:$0xff] %vm186, %v5027
    // Predicated region
    $region78: #{encoder_attention_block.1} parent=1 // pred_check
      _
    $region79: #{encoder_attention_block.1} parent=1 // pred_check_branch
      %5045 = sbr.rel (0) target = $region81
    $region80: #{encoder_attention_block.1} parent=1 // pred_region
      %s5047 = ssub.s32 2048, 2048
      %5048 = vsyncadd [#allocation4], %s5047
      %s5049 = sshll.u32 [#allocation13], 4
      %s5050 = int_to_ptr.vmem [resolvable:$true] %s5049
      %5055 = dma.vmem_to_hbm [thread:$0]  %s5050, 2048, %s13, [#allocation4], 128, 128, 8
    $region81: #{encoder_attention_block.1} parent=1 // pred_fallthru
      _
    // Predicated region
    $region82: #{encoder_attention_block.1} parent=1 // pred_check
      _
    $region83: #{encoder_attention_block.1} parent=1 // pred_check_branch
      %5057 = sbr.rel (0) target = $region85
    $region84: #{encoder_attention_block.1} parent=1 // pred_region
      %5058 = dma.done [#allocation4], 2048
    $region85: #{encoder_attention_block.1} parent=1 // pred_fallthru
      _
    %5059 = vsyncpa [#allocation3], 1
    %5060 = vsyncpa [#allocation6], 1
    %5061 = vsyncpa [#allocation9], 1
    %5062 = vsyncpa [#allocation12], 1
    %5063 = vsyncpa [#allocation4], 1

</llo_original>
